<compile_context>
chip_gen: v6e
topology: v6e:2x2x1
jax: 0.10.0
libtpu: 0.0.40
codegen_flags: <defaults>
</compile_context>

<pallas_src>
import jax
import jax.numpy as jnp
from jax.experimental import pallas as pl
from jax.experimental.pallas import tpu as pltpu

K = 5  # Chebyshev filter order (conv_kwargs K=5 in the module)


# ------------------------------ kernel ------------------------------

def graph_embedder_kernel(xs_ref, lap_ref, lap2_ref, w1_ref, b1_ref, w2_hbm_ref,
                          b2_ref, pool_ref, out_ref, w2_buf, a1_ref, w2_sem):
    # ---- (1) kick off the w2 HBM->VMEM DMA; hidden under everything below ----
    w2_copy = pltpu.make_async_copy(w2_hbm_ref, w2_buf, w2_sem)
    w2_copy.start()

    n2 = lap_ref.shape[0]          # 2N (fwd + bwd stacked)
    n = n2 // 2
    f_pad = xs_ref.shape[1]

    # ---- (2) Chebyshev polynomial matrices of the block-diag Laplacian ----
    # Shared by both layers; the only serial chain, paid once at full width.
    lap_b = lap_ref[...]           # bf16 blkdiag(L_fwd, L_bwd)
    lap2_b = lap2_ref[...]         # bf16 2*lap (exact)
    row = jax.lax.broadcasted_iota(jnp.int32, (n2, n2), 0)
    col = jax.lax.broadcasted_iota(jnp.int32, (n2, n2), 1)
    eye_f = (row == col).astype(jnp.float32)

    mats = [lap_b]                               # T_1 = L
    t_prev_f = eye_f                             # T_0 (f32 carry)
    t_cur_f = lap_b.astype(jnp.float32)          # T_1 (f32 carry)
    t_cur_b = lap_b
    for _ in range(2, K):                        # T_k = 2 L T_{k-1} - T_{k-2}
        t_next_f = jnp.dot(lap2_b, t_cur_b,
                           preferred_element_type=jnp.float32) - t_prev_f
        t_next_b = t_next_f.astype(jnp.bfloat16)
        mats.append(t_next_b)
        t_prev_f, t_cur_f, t_cur_b = t_cur_f, t_next_f, t_next_b
    cheb = jnp.concatenate(mats, axis=0)         # [(K-1)*2N, 2N] bf16

    # ---- (3) layer 1: terms -> lane-padded pack -> one wide weight matmul ----
    x_stk_b = xs_ref[...]                                        # [2N, F_pad] bf16
    terms1_b = jnp.dot(cheb, x_stk_b,
                       preferred_element_type=jnp.float32).astype(jnp.bfloat16)

    a1_ref[...] = jnp.zeros_like(a1_ref)         # zero 128-lane-padded pack buffer
    a1_ref[:, 0:f_pad] = x_stk_b[:n, :]          # k = 0, fwd   (T_0 = I)
    a1_ref[:, f_pad:2 * f_pad] = x_stk_b[n:, :]  # k = 0, bwd
    for k in range(1, K):
        for d in range(2):
            r = (k - 1) * n2 + d * n
            off = (2 * k + d) * f_pad
            a1_ref[:, off:off + f_pad] = terms1_b[r:r + n, :]

    h1 = jnp.maximum(jnp.dot(a1_ref[...], w1_ref[...],
                             preferred_element_type=jnp.float32) + b1_ref[...], 0.0)

    # ---- (4) layer 2: terms (full 128-lane blocks) -> wide matmul ----
    h1_b = h1.astype(jnp.bfloat16)
    h1_stk_b = jnp.concatenate([h1_b, h1_b], axis=0)             # [2N, HID]
    terms2_b = jnp.dot(cheb, h1_stk_b,
                       preferred_element_type=jnp.float32).astype(jnp.bfloat16)

    pieces = [h1_b, h1_b]                                        # k = 0, fwd / bwd
    for k in range(1, K):
        for d in range(2):
            r = (k - 1) * n2 + d * n
            pieces.append(terms2_b[r:r + n, :])
    a2 = jnp.concatenate(pieces, axis=-1)                        # [N, 2*K*HID] bf16

    w2_copy.wait()                                               # w2 now resident
    h2 = jnp.maximum(jnp.dot(a2, w2_buf[...],
                             preferred_element_type=jnp.float32) + b2_ref[...], 0.0)

    # ---- (5) global mean pool via row-normalized membership matrix ----
    out_ref[...] = jnp.dot(pool_ref[...], h2.astype(jnp.bfloat16),
                           preferred_element_type=jnp.float32)


# ------------------------------ wrapper ------------------------------

def _stack_dir_weights(wf, wb):
    """[K,F_in,F_out] x2 -> [2*K*F_in, F_out], matching the kernel's per-k
    (fwd-half, bwd-half) lane packing order."""
    k, f_in, f_out = wf.shape
    return jnp.stack([wf, wb], axis=1).reshape(2 * k * f_in, f_out)


def graph_embedder(x, lf, lb, params, pool):
    n, f_in = x.shape
    g = pool.shape[0]
    hid = params["w1f"].shape[-1]
    emb = params["w2f"].shape[-1]
    f_pad = ((f_in + 7) // 8) * 8               # sublane-friendly feature padding

    # ---- host-side prep (plain JAX): pad, stack directions, cast to bf16 ----
    x_p = jnp.pad(x, ((0, 0), (0, f_pad - f_in)))
    x_stk = jnp.concatenate([x_p, x_p], axis=0).astype(jnp.bfloat16)    # [2N, F_pad]

    lap = jnp.zeros((2 * n, 2 * n), jnp.float32)
    lap = lap.at[:n, :n].set(lf).at[n:, n:].set(lb)
    lap_b = lap.astype(jnp.bfloat16)
    lap2_b = (lap_b.astype(jnp.float32) * 2.0).astype(jnp.bfloat16)     # exact

    w1f_p = jnp.pad(params["w1f"], ((0, 0), (0, f_pad - f_in), (0, 0)))
    w1b_p = jnp.pad(params["w1b"], ((0, 0), (0, f_pad - f_in), (0, 0)))
    w1 = _stack_dir_weights(w1f_p, w1b_p)                               # [2K*F_pad, HID]
    c1 = 2 * K * f_pad
    c1_pad = ((c1 + 127) // 128) * 128          # pad packed contraction to 128 lanes
    w1 = jnp.pad(w1, ((0, c1_pad - c1), (0, 0))).astype(jnp.bfloat16)   # [128, HID]

    w2 = _stack_dir_weights(params["w2f"], params["w2b"]).astype(jnp.bfloat16)  # [2K*HID, EMB]
    b1 = (params["b1f"] + params["b1b"]).astype(jnp.float32)            # folded bias
    b2 = (params["b2f"] + params["b2b"]).astype(jnp.float32)
    pool_b = pool.astype(jnp.bfloat16)

    args = (x_stk, lap_b, lap2_b, w1, b1, w2, b2, pool_b)

    # advisory cost estimate (cheb recursion + term matmuls + weight matmuls + pool)
    n2 = 2 * n
    flops = ((K - 2) * 2 * n2 * n2 * n2
             + 2 * ((K - 1) * n2) * n2 * f_pad
             + 2 * n * c1_pad * hid
             + 2 * ((K - 1) * n2) * n2 * hid
             + 2 * n * (2 * K * hid) * emb
             + 2 * g * n * emb)
    bytes_accessed = sum(int(a.size) * a.dtype.itemsize for a in args) + g * emb * 4

    vmem = lambda: pl.BlockSpec(memory_space=pltpu.MemorySpace.VMEM)
    in_specs = [vmem(), vmem(), vmem(), vmem(), vmem(),
                pl.BlockSpec(memory_space=pl.ANY),      # w2 stays in HBM; DMA'd in-kernel
                vmem(), vmem()]

    return pl.pallas_call(
        graph_embedder_kernel,
        out_shape=jax.ShapeDtypeStruct((g, emb), jnp.float32),
        in_specs=in_specs,
        out_specs=vmem(),
        scratch_shapes=[pltpu.VMEM((2 * K * hid, emb), jnp.bfloat16),   # w2 landing buffer
                        pltpu.VMEM((n, c1_pad), jnp.bfloat16),          # layer-1 packed acts
                        pltpu.SemaphoreType.DMA(())],
        cost_estimate=pl.CostEstimate(flops=int(flops), transcendentals=0,
                                      bytes_accessed=int(bytes_accessed)),
    )(*args)


# ------------------------- glue / references (plain JAX) -------------------------

def scaled_laplacian(adj, lambda_max):
    """L~ = 2/lambda_max * (I - D^-1/2 A D^-1/2) - I  (sym normalization)."""
    n = adj.shape[0]
    deg = adj.sum(axis=1)
    dinv = jnp.where(deg > 0, 1.0 / jnp.sqrt(deg), 0.0)
    a_norm = dinv[:, None] * adj * dinv[None, :]
    lap = jnp.eye(n, dtype=jnp.float32) - a_norm
    return (2.0 / lambda_max) * lap - jnp.eye(n, dtype=jnp.float32)


def glorot(key, shape):
    fan_in, fan_out = shape[-2], shape[-1]
    std = (2.0 / (fan_in + fan_out)) ** 0.5
    return std * jax.random.normal(key, shape, dtype=jnp.float32)


def init_params(key, f_in, hid, emb):
    ks = jax.random.split(key, 8)
    return {
        "w1f": glorot(ks[0], (K, f_in, hid)),
        "b1f": 0.1 * jax.random.normal(ks[1], (1, hid), dtype=jnp.float32),
        "w1b": glorot(ks[2], (K, f_in, hid)),
        "b1b": 0.1 * jax.random.normal(ks[3], (1, hid), dtype=jnp.float32),
        "w2f": glorot(ks[4], (K, hid, emb)),
        "b2f": 0.1 * jax.random.normal(ks[5], (1, emb), dtype=jnp.float32),
        "w2b": glorot(ks[6], (K, hid, emb)),
        "b2b": 0.1 * jax.random.normal(ks[7], (1, emb), dtype=jnp.float32),
    }


def cheb_ref_f32(x, lap, w, b):
    tx0 = x
    acc = tx0 @ w[0]
    tx1 = lap @ x
    acc = acc + tx1 @ w[1]
    for k in range(2, K):
        tx2 = 2.0 * (lap @ tx1) - tx0
        acc = acc + tx2 @ w[k]
        tx0, tx1 = tx1, tx2
    return acc + b


def ref_forward_f32(x, lf, lb, p, pool):
    h1 = jnp.maximum(cheb_ref_f32(x, lf, p["w1f"], p["b1f"])
                     + cheb_ref_f32(x, lb, p["w1b"], p["b1b"]), 0.0)
    h2 = jnp.maximum(cheb_ref_f32(h1, lf, p["w2f"], p["b2f"])
                     + cheb_ref_f32(h1, lb, p["w2b"], p["b2b"]), 0.0)
    return pool @ h2


def _cheb_mats_bf16(lap_f32):
    """T_1..T_{K-1} in bf16, mirroring the kernel's matrix-recursion cast points."""
    lap_b = lap_f32.astype(jnp.bfloat16)
    lap2_b = (lap_b.astype(jnp.float32) * 2.0).astype(jnp.bfloat16)
    eye = jnp.eye(lap_f32.shape[0], dtype=jnp.float32)
    mats = [lap_b]
    t_prev_f = eye
    t_cur_f = lap_b.astype(jnp.float32)
    t_cur_b = lap_b
    for _ in range(2, K):
        t_next_f = jnp.dot(lap2_b, t_cur_b,
                           preferred_element_type=jnp.float32) - t_prev_f
        t_next_b = t_next_f.astype(jnp.bfloat16)
        mats.append(t_next_b)
        t_prev_f, t_cur_f, t_cur_b = t_cur_f, t_next_f, t_next_b
    return mats


def _bidir_bf16(x_b, mats_f, mats_b, wf, wb, bias):
    """One BidirectionalBlock with the kernel's bf16/f32 cast points."""
    wf_b, wb_b = wf.astype(jnp.bfloat16), wb.astype(jnp.bfloat16)
    acc = jnp.dot(x_b, wf_b[0], preferred_element_type=jnp.float32)
    acc = acc + jnp.dot(x_b, wb_b[0], preferred_element_type=jnp.float32)
    for k in range(1, K):
        tf_k = jnp.dot(mats_f[k - 1], x_b,
                       preferred_element_type=jnp.float32).astype(jnp.bfloat16)
        tb_k = jnp.dot(mats_b[k - 1], x_b,
                       preferred_element_type=jnp.float32).astype(jnp.bfloat16)
        acc = acc + jnp.dot(tf_k, wf_b[k], preferred_element_type=jnp.float32)
        acc = acc + jnp.dot(tb_k, wb_b[k], preferred_element_type=jnp.float32)
    return jnp.maximum(acc + bias, 0.0)


def ref_forward_bf16(x, lf, lb, p, pool):
    mats_f = _cheb_mats_bf16(lf)
    mats_b = _cheb_mats_bf16(lb)
    h1 = _bidir_bf16(x.astype(jnp.bfloat16), mats_f, mats_b,
                     p["w1f"], p["w1b"], p["b1f"] + p["b1b"])
    h2 = _bidir_bf16(h1.astype(jnp.bfloat16), mats_f, mats_b,
                     p["w2f"], p["w2b"], p["b2f"] + p["b2b"])
    return jnp.dot(pool.astype(jnp.bfloat16), h2.astype(jnp.bfloat16),
                   preferred_element_type=jnp.float32)


# ------------------------------ test harness ------------------------------

if __name__ == "__main__":
    N_PER_GRAPH, G = 32, 2
    N = N_PER_GRAPH * G
    F_IN, HID, EMB = 4, 128, 512          # cheb_conv_hidden_dim=128, embedding_dim=512
    LAMBDA_MAX = 3.0

    key = jax.random.PRNGKey(0)
    k_x, k_p = jax.random.split(key)
    x = jax.random.normal(k_x, (N, F_IN), dtype=jnp.float32)

    # Deterministic directed path graph per sample (parent -> child edges).
    src, dst, batch = [], [], []
    for g in range(G):
        off = g * N_PER_GRAPH
        for i in range(N_PER_GRAPH):
            batch.append(g)
            if i > 0:
                src.append(off + i - 1)
                dst.append(off + i)
    src = jnp.array(src, jnp.int32)
    dst = jnp.array(dst, jnp.int32)
    batch = jnp.array(batch, jnp.int32)

    # edge_weight_idx=None in the module -> unit edge weights.
    a_fwd = jnp.zeros((N, N), jnp.float32).at[dst, src].set(1.0)  # source_to_target
    a_bwd = a_fwd.T                                               # target_to_source
    lf = scaled_laplacian(a_bwd, LAMBDA_MAX)   # flow='target_to_source' branch
    lb = scaled_laplacian(a_fwd, LAMBDA_MAX)   # reversed-flow branch

    # Global mean pool as a row-normalized membership matrix.
    pool = (jnp.arange(G)[:, None] == batch[None, :]).astype(jnp.float32)
    pool = pool / pool.sum(axis=1, keepdims=True)

    params = init_params(k_p, F_IN, HID, EMB)

    out = graph_embedder(x, lf, lb, params, pool)
    out = jax.block_until_ready(out)

    assert out.shape == (G, EMB)
    assert bool(jnp.all(jnp.isfinite(out)))

    # Tight check against a reference that mirrors the kernel's bf16/f32 cast
    # points (validates the precomputed-T_k restructuring + packed matmuls).
    ref_b = ref_forward_bf16(x, lf, lb, params, pool)
    assert jnp.allclose(out, ref_b, atol=5e-3, rtol=5e-3), \
        float(jnp.max(jnp.abs(out - ref_b)))

    # Loose sanity check against the pure-f32 reference.
    ref_f = ref_forward_f32(x, lf, lb, params, pool)
    assert jnp.allclose(out, ref_f, atol=1e-1, rtol=1e-1), \
        float(jnp.max(jnp.abs(out - ref_f)))

    print("KERNEL_OK")
</pallas_src>

<mosaic_0001>
module attributes {stable_mosaic.version = 11 : i64} {
  func.func @graph_embedder_kernel(%arg0: memref<128x8xbf16, #tpu.memory_space<vmem>>, %arg1: memref<128x128xbf16, #tpu.memory_space<vmem>>, %arg2: memref<128x128xbf16, #tpu.memory_space<vmem>>, %arg3: memref<128x128xbf16, #tpu.memory_space<vmem>>, %arg4: memref<1x128xf32, #tpu.memory_space<vmem>>, %arg5: memref<1280x512xbf16, #tpu.memory_space<any>>, %arg6: memref<1x512xf32, #tpu.memory_space<vmem>>, %arg7: memref<2x64xbf16, #tpu.memory_space<vmem>>, %arg8: memref<2x512xf32, #tpu.memory_space<vmem>>, %arg9: memref<1280x512xbf16, #tpu.memory_space<vmem>>, %arg10: memref<64x128xbf16, #tpu.memory_space<vmem>>, %arg11: memref<!tpu.dma_semaphore, #tpu.memory_space<semaphore_mem>>) attributes {dimension_semantics = [], scalar_prefetch = 0 : i64, scratch_operands = 3 : i64, tpu.core_type = #tpu.core_type<tc>} {
    tpu.enqueue_dma source(%arg5 : memref<1280x512xbf16, #tpu.memory_space<any>>) target(%arg9 : memref<1280x512xbf16, #tpu.memory_space<vmem>>) target_semaphore(%arg11 : memref<!tpu.dma_semaphore, #tpu.memory_space<semaphore_mem>>)
    %c0 = arith.constant 0 : index
    %c0_0 = arith.constant 0 : index
    %0 = vector.load %arg1[%c0, %c0_0] : memref<128x128xbf16, #tpu.memory_space<vmem>>, vector<128x128xbf16>
    %c0_1 = arith.constant 0 : index
    %c0_2 = arith.constant 0 : index
    %1 = vector.load %arg2[%c0_1, %c0_2] : memref<128x128xbf16, #tpu.memory_space<vmem>>, vector<128x128xbf16>
    %2 = tpu.iota {dimensions = array<i32: 0>} : vector<128x128xi32>
    %3 = tpu.iota {dimensions = array<i32: 1>} : vector<128x128xi32>
    %4 = arith.cmpi eq, %2, %3 : vector<128x128xi32>
    %5 = arith.extui %4 : vector<128x128xi1> to vector<128x128xi32>
    %6 = arith.sitofp %5 : vector<128x128xi32> to vector<128x128xf32>
    %7 = arith.extf %0 : vector<128x128xbf16> to vector<128x128xf32>
    %cst = arith.constant dense<0.000000e+00> : vector<128x128xf32>
    %8 = tpu.matmul %1, %0, %cst {dimension_numbers = #tpu.dot_dimension_numbers<[1], [0], [0], [1], [0, 0, 1, 1], [], []>} : vector<128x128xbf16>, vector<128x128xbf16>, vector<128x128xf32> -> vector<128x128xf32>
    %9 = arith.subf %8, %6 : vector<128x128xf32>
    %10 = arith.truncf %9 : vector<128x128xf32> to vector<128x128xbf16>
    %cst_3 = arith.constant dense<0.000000e+00> : vector<128x128xf32>
    %11 = tpu.matmul %1, %10, %cst_3 {dimension_numbers = #tpu.dot_dimension_numbers<[1], [0], [0], [1], [0, 0, 1, 1], [], []>} : vector<128x128xbf16>, vector<128x128xbf16>, vector<128x128xf32> -> vector<128x128xf32>
    %12 = arith.subf %11, %7 : vector<128x128xf32>
    %13 = arith.truncf %12 : vector<128x128xf32> to vector<128x128xbf16>
    %cst_4 = arith.constant dense<0.000000e+00> : vector<128x128xf32>
    %14 = tpu.matmul %1, %13, %cst_4 {dimension_numbers = #tpu.dot_dimension_numbers<[1], [0], [0], [1], [0, 0, 1, 1], [], []>} : vector<128x128xbf16>, vector<128x128xbf16>, vector<128x128xf32> -> vector<128x128xf32>
    %15 = arith.subf %14, %9 : vector<128x128xf32>
    %16 = arith.truncf %15 : vector<128x128xf32> to vector<128x128xbf16>
    %17 = tpu.concatenate %0, %10, %13, %16 in 0 : vector<128x128xbf16>, vector<128x128xbf16>, vector<128x128xbf16>, vector<128x128xbf16> -> vector<512x128xbf16>
    %c0_5 = arith.constant 0 : index
    %c0_6 = arith.constant 0 : index
    %18 = vector.load %arg0[%c0_5, %c0_6] : memref<128x8xbf16, #tpu.memory_space<vmem>>, vector<128x8xbf16>
    %cst_7 = arith.constant dense<0.000000e+00> : vector<512x8xf32>
    %19 = tpu.matmul %17, %18, %cst_7 {dimension_numbers = #tpu.dot_dimension_numbers<[1], [0], [0], [1], [0, 0, 1, 1], [], []>} : vector<512x128xbf16>, vector<128x8xbf16>, vector<512x8xf32> -> vector<512x8xf32>
    %20 = arith.truncf %19 : vector<512x8xf32> to vector<512x8xbf16>
    %cst_8 = arith.constant 0.000000e+00 : bf16
    %21 = vector.broadcast %cst_8 : bf16 to vector<64x128xbf16>
    %c0_9 = arith.constant 0 : index
    %c0_10 = arith.constant 0 : index
    %22 = vector.load %arg10[%c0_9, %c0_10] : memref<64x128xbf16, #tpu.memory_space<vmem>>, vector<64x128xbf16>
    tpu.vector_store %arg10[%c0_9, %c0_10], %21 {strides = array<i32>} : memref<64x128xbf16, #tpu.memory_space<vmem>>, vector<64x128xbf16>,
    %23 = vector.extract_strided_slice %18 {offsets = [0, 0], sizes = [64, 8], strides = [1, 1]} : vector<128x8xbf16> to vector<64x8xbf16>
    %c0_11 = arith.constant 0 : index
    %c0_12 = arith.constant 0 : index
    %24 = vector.load %arg10[%c0_11, %c0_12] : memref<64x128xbf16, #tpu.memory_space<vmem>>, vector<64x8xbf16>
    tpu.vector_store %arg10[%c0_11, %c0_12], %23 {strides = array<i32>} : memref<64x128xbf16, #tpu.memory_space<vmem>>, vector<64x8xbf16>,
    %25 = vector.extract_strided_slice %18 {offsets = [64, 0], sizes = [64, 8], strides = [1, 1]} : vector<128x8xbf16> to vector<64x8xbf16>
    %c0_13 = arith.constant 0 : index
    %c8 = arith.constant 8 : index
    %26 = vector.load %arg10[%c0_13, %c8] : memref<64x128xbf16, #tpu.memory_space<vmem>>, vector<64x8xbf16>
    tpu.vector_store %arg10[%c0_13, %c8], %25 {strides = array<i32>} : memref<64x128xbf16, #tpu.memory_space<vmem>>, vector<64x8xbf16>,
    %27 = vector.extract_strided_slice %20 {offsets = [0, 0], sizes = [64, 8], strides = [1, 1]} : vector<512x8xbf16> to vector<64x8xbf16>
    %c0_14 = arith.constant 0 : index
    %c16 = arith.constant 16 : index
    %28 = vector.load %arg10[%c0_14, %c16] : memref<64x128xbf16, #tpu.memory_space<vmem>>, vector<64x8xbf16>
    tpu.vector_store %arg10[%c0_14, %c16], %27 {strides = array<i32>} : memref<64x128xbf16, #tpu.memory_space<vmem>>, vector<64x8xbf16>,
    %29 = vector.extract_strided_slice %20 {offsets = [64, 0], sizes = [64, 8], strides = [1, 1]} : vector<512x8xbf16> to vector<64x8xbf16>
    %c0_15 = arith.constant 0 : index
    %c24 = arith.constant 24 : index
    %30 = vector.load %arg10[%c0_15, %c24] : memref<64x128xbf16, #tpu.memory_space<vmem>>, vector<64x8xbf16>
    tpu.vector_store %arg10[%c0_15, %c24], %29 {strides = array<i32>} : memref<64x128xbf16, #tpu.memory_space<vmem>>, vector<64x8xbf16>,
    %31 = vector.extract_strided_slice %20 {offsets = [128, 0], sizes = [64, 8], strides = [1, 1]} : vector<512x8xbf16> to vector<64x8xbf16>
    %c0_16 = arith.constant 0 : index
    %c32 = arith.constant 32 : index
    %32 = vector.load %arg10[%c0_16, %c32] : memref<64x128xbf16, #tpu.memory_space<vmem>>, vector<64x8xbf16>
    tpu.vector_store %arg10[%c0_16, %c32], %31 {strides = array<i32>} : memref<64x128xbf16, #tpu.memory_space<vmem>>, vector<64x8xbf16>,
    %33 = vector.extract_strided_slice %20 {offsets = [192, 0], sizes = [64, 8], strides = [1, 1]} : vector<512x8xbf16> to vector<64x8xbf16>
    %c0_17 = arith.constant 0 : index
    %c40 = arith.constant 40 : index
    %34 = vector.load %arg10[%c0_17, %c40] : memref<64x128xbf16, #tpu.memory_space<vmem>>, vector<64x8xbf16>
    tpu.vector_store %arg10[%c0_17, %c40], %33 {strides = array<i32>} : memref<64x128xbf16, #tpu.memory_space<vmem>>, vector<64x8xbf16>,
    %35 = vector.extract_strided_slice %20 {offsets = [256, 0], sizes = [64, 8], strides = [1, 1]} : vector<512x8xbf16> to vector<64x8xbf16>
    %c0_18 = arith.constant 0 : index
    %c48 = arith.constant 48 : index
    %36 = vector.load %arg10[%c0_18, %c48] : memref<64x128xbf16, #tpu.memory_space<vmem>>, vector<64x8xbf16>
    tpu.vector_store %arg10[%c0_18, %c48], %35 {strides = array<i32>} : memref<64x128xbf16, #tpu.memory_space<vmem>>, vector<64x8xbf16>,
    %37 = vector.extract_strided_slice %20 {offsets = [320, 0], sizes = [64, 8], strides = [1, 1]} : vector<512x8xbf16> to vector<64x8xbf16>
    %c0_19 = arith.constant 0 : index
    %c56 = arith.constant 56 : index
    %38 = vector.load %arg10[%c0_19, %c56] : memref<64x128xbf16, #tpu.memory_space<vmem>>, vector<64x8xbf16>
    tpu.vector_store %arg10[%c0_19, %c56], %37 {strides = array<i32>} : memref<64x128xbf16, #tpu.memory_space<vmem>>, vector<64x8xbf16>,
    %39 = vector.extract_strided_slice %20 {offsets = [384, 0], sizes = [64, 8], strides = [1, 1]} : vector<512x8xbf16> to vector<64x8xbf16>
    %c0_20 = arith.constant 0 : index
    %c64 = arith.constant 64 : index
    %40 = vector.load %arg10[%c0_20, %c64] : memref<64x128xbf16, #tpu.memory_space<vmem>>, vector<64x8xbf16>
    tpu.vector_store %arg10[%c0_20, %c64], %39 {strides = array<i32>} : memref<64x128xbf16, #tpu.memory_space<vmem>>, vector<64x8xbf16>,
    %41 = vector.extract_strided_slice %20 {offsets = [448, 0], sizes = [64, 8], strides = [1, 1]} : vector<512x8xbf16> to vector<64x8xbf16>
    %c0_21 = arith.constant 0 : index
    %c72 = arith.constant 72 : index
    %42 = vector.load %arg10[%c0_21, %c72] : memref<64x128xbf16, #tpu.memory_space<vmem>>, vector<64x8xbf16>
    tpu.vector_store %arg10[%c0_21, %c72], %41 {strides = array<i32>} : memref<64x128xbf16, #tpu.memory_space<vmem>>, vector<64x8xbf16>,
    %c0_22 = arith.constant 0 : index
    %c0_23 = arith.constant 0 : index
    %43 = vector.load %arg10[%c0_22, %c0_23] : memref<64x128xbf16, #tpu.memory_space<vmem>>, vector<64x128xbf16>
    %c0_24 = arith.constant 0 : index
    %c0_25 = arith.constant 0 : index
    %44 = vector.load %arg3[%c0_24, %c0_25] : memref<128x128xbf16, #tpu.memory_space<vmem>>, vector<128x128xbf16>
    %cst_26 = arith.constant dense<0.000000e+00> : vector<64x128xf32>
    %45 = tpu.matmul %43, %44, %cst_26 {dimension_numbers = #tpu.dot_dimension_numbers<[1], [0], [0], [1], [0, 0, 1, 1], [], []>} : vector<64x128xbf16>, vector<128x128xbf16>, vector<64x128xf32> -> vector<64x128xf32>
    %c0_27 = arith.constant 0 : index
    %c0_28 = arith.constant 0 : index
    %46 = vector.load %arg4[%c0_27, %c0_28] : memref<1x128xf32, #tpu.memory_space<vmem>>, vector<1x128xf32>
    %47 = vector.broadcast %46 : vector<1x128xf32> to vector<64x128xf32>
    %48 = arith.addf %45, %47 : vector<64x128xf32>
    %cst_29 = arith.constant 0.000000e+00 : f32
    %49 = vector.broadcast %cst_29 : f32 to vector<64x128xf32>
    %50 = arith.maximumf %48, %49 : vector<64x128xf32>
    %51 = arith.truncf %50 : vector<64x128xf32> to vector<64x128xbf16>
    %52 = tpu.concatenate %51, %51 in 0 : vector<64x128xbf16>, vector<64x128xbf16> -> vector<128x128xbf16>
    %cst_30 = arith.constant dense<0.000000e+00> : vector<512x128xf32>
    %53 = tpu.matmul %17, %52, %cst_30 {dimension_numbers = #tpu.dot_dimension_numbers<[1], [0], [0], [1], [0, 0, 1, 1], [], []>} : vector<512x128xbf16>, vector<128x128xbf16>, vector<512x128xf32> -> vector<512x128xf32>
    %54 = arith.truncf %53 : vector<512x128xf32> to vector<512x128xbf16>
    %55 = vector.extract_strided_slice %54 {offsets = [0, 0], sizes = [64, 128], strides = [1, 1]} : vector<512x128xbf16> to vector<64x128xbf16>
    %56 = vector.extract_strided_slice %54 {offsets = [64, 0], sizes = [64, 128], strides = [1, 1]} : vector<512x128xbf16> to vector<64x128xbf16>
    %57 = vector.extract_strided_slice %54 {offsets = [128, 0], sizes = [64, 128], strides = [1, 1]} : vector<512x128xbf16> to vector<64x128xbf16>
    %58 = vector.extract_strided_slice %54 {offsets = [192, 0], sizes = [64, 128], strides = [1, 1]} : vector<512x128xbf16> to vector<64x128xbf16>
    %59 = vector.extract_strided_slice %54 {offsets = [256, 0], sizes = [64, 128], strides = [1, 1]} : vector<512x128xbf16> to vector<64x128xbf16>
    %60 = vector.extract_strided_slice %54 {offsets = [320, 0], sizes = [64, 128], strides = [1, 1]} : vector<512x128xbf16> to vector<64x128xbf16>
    %61 = vector.extract_strided_slice %54 {offsets = [384, 0], sizes = [64, 128], strides = [1, 1]} : vector<512x128xbf16> to vector<64x128xbf16>
    %62 = vector.extract_strided_slice %54 {offsets = [448, 0], sizes = [64, 128], strides = [1, 1]} : vector<512x128xbf16> to vector<64x128xbf16>
    %63 = tpu.concatenate %51, %51, %55, %56, %57, %58, %59, %60, %61, %62 in 1 : vector<64x128xbf16>, vector<64x128xbf16>, vector<64x128xbf16>, vector<64x128xbf16>, vector<64x128xbf16>, vector<64x128xbf16>, vector<64x128xbf16>, vector<64x128xbf16>, vector<64x128xbf16>, vector<64x128xbf16> -> vector<64x1280xbf16>
    tpu.wait_dma2 semaphore(%arg11 : memref<!tpu.dma_semaphore, #tpu.memory_space<semaphore_mem>>) src(%arg5 : memref<1280x512xbf16, #tpu.memory_space<any>>) dst(%arg9 : memref<1280x512xbf16, #tpu.memory_space<vmem>>)
    %c0_31 = arith.constant 0 : index
    %c0_32 = arith.constant 0 : index
    %64 = vector.load %arg9[%c0_31, %c0_32] : memref<1280x512xbf16, #tpu.memory_space<vmem>>, vector<1280x512xbf16>
    %cst_33 = arith.constant dense<0.000000e+00> : vector<64x512xf32>
    %65 = tpu.matmul %63, %64, %cst_33 {dimension_numbers = #tpu.dot_dimension_numbers<[1], [0], [0], [1], [0, 0, 1, 1], [], []>} : vector<64x1280xbf16>, vector<1280x512xbf16>, vector<64x512xf32> -> vector<64x512xf32>
    %c0_34 = arith.constant 0 : index
    %c0_35 = arith.constant 0 : index
    %66 = vector.load %arg6[%c0_34, %c0_35] : memref<1x512xf32, #tpu.memory_space<vmem>>, vector<1x512xf32>
    %67 = vector.broadcast %66 : vector<1x512xf32> to vector<64x512xf32>
    %68 = arith.addf %65, %67 : vector<64x512xf32>
    %cst_36 = arith.constant 0.000000e+00 : f32
    %69 = vector.broadcast %cst_36 : f32 to vector<64x512xf32>
    %70 = arith.maximumf %68, %69 : vector<64x512xf32>
    %c0_37 = arith.constant 0 : index
    %c0_38 = arith.constant 0 : index
    %71 = vector.load %arg7[%c0_37, %c0_38] : memref<2x64xbf16, #tpu.memory_space<vmem>>, vector<2x64xbf16>
    %72 = arith.truncf %70 : vector<64x512xf32> to vector<64x512xbf16>
    %cst_39 = arith.constant dense<0.000000e+00> : vector<2x512xf32>
    %73 = tpu.matmul %71, %72, %cst_39 {dimension_numbers = #tpu.dot_dimension_numbers<[1], [0], [0], [1], [0, 0, 1, 1], [], []>} : vector<2x64xbf16>, vector<64x512xbf16>, vector<2x512xf32> -> vector<2x512xf32>
    %c0_40 = arith.constant 0 : index
    %c0_41 = arith.constant 0 : index
    %74 = vector.load %arg8[%c0_40, %c0_41] : memref<2x512xf32, #tpu.memory_space<vmem>>, vector<2x512xf32>
    tpu.vector_store %arg8[%c0_40, %c0_41], %73 {strides = array<i32>} : memref<2x512xf32, #tpu.memory_space<vmem>>, vector<2x512xf32>,
    return
  }
}

</mosaic_0001>

<llo_original>
// kernel: tpu_custom_call.1
$region0: #{tpu_custom_call.1}
  #allocation0 [shape = 'u32[]', space=smem, size = 0x4, offset = 0x4, fixed_abs, tag = 'smem constant byte address 0x4 - core index']
  #allocation1 [shape = 'u32[144,128]{1,0:T(1,128)}', space=vmem, size = 0x12000, scoped, tag = 'internal scratch']
  #allocation2 [shape = 'bf16[1280,512]{1,0:T(8,128)(2,1)}', space=vmem, size = 0x140000, scoped, tag = 'scratch operand']
  #allocation3 [shape = 'bf16[64,128]{1,0:T(8,128)(2,1)}', space=vmem, size = 0x4000, scoped, tag = 'scratch operand']
  #allocation4 [shape = 's32[1]{0}', space=sflag, size = 0x4, scoped, tag = 'scratch operand']
  #allocation17 [shape = 's32[]', space=sflag, size = 0x4, offset = 0, fixed_abs, tag = 'sflag constant byte address 0x0 - dummy sync flag']
  #allocation18 [shape = 's32[]', space=sflag, size = 0x4, offset = 0, fixed_abs, tag = 'sflag constant byte address 0x0 - dummy sync flag']
  #allocation19 [shape = 'u32[]', space=smem, size = 0x4, offset = 0x44, fixed_abs, tag = 'smem constant byte address 0x44 - assertion arg 0']
  #allocation20 [shape = 'u32[]', space=smem, size = 0x4, offset = 0x48, fixed_abs, tag = 'smem constant byte address 0x48 - assertion arg 1']
  %s0 = inlined_call_operand.vmem [shape: bf16[128,8], index: 0, kind: input, shape index: {}]
  %s1 = inlined_call_operand.hbm [shape: bf16[128,128], index: 1, kind: input, shape index: {}]
  %s2 = inlined_call_operand.hbm [shape: bf16[128,128], index: 2, kind: input, shape index: {}]
  %s3 = inlined_call_operand.hbm [shape: bf16[128,128], index: 3, kind: input, shape index: {}]
  %s4 = inlined_call_operand.hbm [shape: f32[1,128], index: 4, kind: input, shape index: {}]
  %s5 = inlined_call_operand.hbm [shape: bf16[1280,512], index: 5, kind: input, shape index: {}]
  %s6 = inlined_call_operand.hbm [shape: f32[1,512], index: 6, kind: input, shape index: {}]
  %s7 = inlined_call_operand.hbm [shape: bf16[2,64], index: 7, kind: input, shape index: {}]
  %s8 = inlined_call_operand.hbm [shape: f32[2,512], index: 8, kind: output, shape index: {}]
  %s9 = sld [smem:[#allocation0]]
  $region66: #{tpu_custom_call.1} parent=0
    _
  %s11 = ssub.s32 1, %s9
  %s12 = scalar_select 0, %s11, %s9
  $region1: #{tpu_custom_call.1} parent=0
    #allocation5 [shape = 'u8[32768]{0}', space=vmem, size = 0x8000, scoped, tag = 'input window, operand 1, single buffered']
    #allocation6 [shape = 's32[1]{0}', space=sflag, size = 0x4, scoped, tag = 'scoped memory for tpu_custom_call.1']
    #allocation7 [shape = 's32[1]{0}', space=sflag, size = 0x4, scoped, tag = 'scoped memory for tpu_custom_call.1']
    #allocation8 [shape = 'u8[32768]{0}', space=vmem, size = 0x8000, scoped, tag = 'input window, operand 2, single buffered']
    #allocation9 [shape = 's32[1]{0}', space=sflag, size = 0x4, scoped, tag = 'scoped memory for tpu_custom_call.1']
    #allocation10 [shape = 'u8[32768]{0}', space=vmem, size = 0x8000, scoped, tag = 'input window, operand 3, single buffered']
    #allocation11 [shape = 'u8[512]{0}', space=vmem, size = 0x400, scoped, tag = 'input window, operand 4, single buffered']
    #allocation12 [shape = 's32[1]{0}', space=sflag, size = 0x4, scoped, tag = 'scoped memory for tpu_custom_call.1']
    #allocation13 [shape = 'u8[2048]{0}', space=vmem, size = 0x800, scoped, tag = 'input window, operand 6, single buffered']
    #allocation14 [shape = 'u8[512]{0}', space=vmem, size = 0x400, scoped, tag = 'input window, operand 7, single buffered']
    #allocation15 [shape = 's32[1]{0}', space=sflag, size = 0x4, scoped, tag = 'scoped memory for tpu_custom_call.1']
    #allocation16 [shape = 'u8[4096]{0}', space=vmem, size = 0x1000, scoped, tag = 'output window, operand 0, single buffered']
    %13 = vsyncpa [#allocation6], 0
    %14 = vsyncpa [#allocation9], 0
    %15 = vsyncpa [#allocation12], 0
    %16 = vsyncpa [#allocation15], 0
    %17 = vsyncpa [#allocation7], 0
    // Predicated region
    $region2: #{tpu_custom_call.1} parent=1 // pred_check
      _
    $region3: #{tpu_custom_call.1} parent=1 // pred_check_branch
      %19 = sbr.rel (0) target = $region5
    $region4: #{tpu_custom_call.1} parent=1 // pred_region
      _
    $region5: #{tpu_custom_call.1} parent=1 // pred_fallthru
      _
    // Predicated region
    $region6: #{tpu_custom_call.1} parent=1 // pred_check
      _
    $region7: #{tpu_custom_call.1} parent=1 // pred_check_branch
      %21 = sbr.rel (0) target = $region9
    $region8: #{tpu_custom_call.1} parent=1 // pred_region
      %s23 = ssub.s32 1024, 1024
      %24 = vsyncadd [#allocation6], %s23
      %s25 = sshll.u32 [#allocation5], 4
      %s26 = int_to_ptr.vmem [resolvable:$true] %s25
      %31 = dma.hbm_to_vmem [thread:$0]  %s1, 1024, %s26, [#allocation6], 64, 64, 4
    $region9: #{tpu_custom_call.1} parent=1 // pred_fallthru
      _
    // Predicated region
    $region10: #{tpu_custom_call.1} parent=1 // pred_check
      _
    $region11: #{tpu_custom_call.1} parent=1 // pred_check_branch
      %33 = sbr.rel (0) target = $region13
    $region12: #{tpu_custom_call.1} parent=1 // pred_region
      %s35 = ssub.s32 1024, 1024
      %36 = vsyncadd [#allocation9], %s35
      %s37 = sshll.u32 [#allocation8], 4
      %s38 = int_to_ptr.vmem [resolvable:$true] %s37
      %43 = dma.hbm_to_vmem [thread:$0]  %s2, 1024, %s38, [#allocation9], 64, 64, 4
    $region13: #{tpu_custom_call.1} parent=1 // pred_fallthru
      _
    // Predicated region
    $region14: #{tpu_custom_call.1} parent=1 // pred_check
      _
    $region15: #{tpu_custom_call.1} parent=1 // pred_check_branch
      %45 = sbr.rel (0) target = $region17
    $region16: #{tpu_custom_call.1} parent=1 // pred_region
      %s47 = ssub.s32 1024, 1024
      %48 = vsyncadd [#allocation9], %s47
      %s49 = sshll.u32 [#allocation10], 4
      %s50 = int_to_ptr.vmem [resolvable:$true] %s49
      %55 = dma.hbm_to_vmem [thread:$0]  %s3, 1024, %s50, [#allocation9], 64, 64, 4
    $region17: #{tpu_custom_call.1} parent=1 // pred_fallthru
      _
    // Predicated region
    $region18: #{tpu_custom_call.1} parent=1 // pred_check
      _
    $region19: #{tpu_custom_call.1} parent=1 // pred_check_branch
      %57 = sbr.rel (0) target = $region21
    $region20: #{tpu_custom_call.1} parent=1 // pred_region
      %s59 = ssub.s32 16, 16
      %60 = vsyncadd [#allocation12], %s59
      %s62 = sshll.u32 [#allocation11], 4
      %s63 = int_to_ptr.vmem [resolvable:$true] %s62
      %65 = dma.hbm_to_vmem [thread:$0]  %s4, 16, %s63, [#allocation12]
    $region21: #{tpu_custom_call.1} parent=1 // pred_fallthru
      _
    // Predicated region
    $region22: #{tpu_custom_call.1} parent=1 // pred_check
      _
    $region23: #{tpu_custom_call.1} parent=1 // pred_check_branch
      %67 = sbr.rel (0) target = $region25
    $region24: #{tpu_custom_call.1} parent=1 // pred_region
      %s69 = ssub.s32 64, 64
      %70 = vsyncadd [#allocation12], %s69
      %s72 = sshll.u32 [#allocation13], 4
      %s73 = int_to_ptr.vmem [resolvable:$true] %s72
      %75 = dma.hbm_to_vmem [thread:$0]  %s6, 64, %s73, [#allocation12]
    $region25: #{tpu_custom_call.1} parent=1 // pred_fallthru
      _
    // Predicated region
    $region26: #{tpu_custom_call.1} parent=1 // pred_check
      _
    $region27: #{tpu_custom_call.1} parent=1 // pred_check_branch
      %77 = sbr.rel (0) target = $region29
    $region28: #{tpu_custom_call.1} parent=1 // pred_region
      %s79 = ssub.s32 16, 16
      %80 = vsyncadd [#allocation15], %s79
      %s82 = sshll.u32 [#allocation14], 4
      %s83 = int_to_ptr.vmem [resolvable:$true] %s82
      %85 = dma.hbm_to_vmem [thread:$0]  %s7, 16, %s83, [#allocation15]
    $region29: #{tpu_custom_call.1} parent=1 // pred_fallthru
      _
    // Predicated region
    $region30: #{tpu_custom_call.1} parent=1 // pred_check
      _
    $region31: #{tpu_custom_call.1} parent=1 // pred_check_branch
      %87 = sbr.rel (0) target = $region33
    $region32: #{tpu_custom_call.1} parent=1 // pred_region
      %88 = dma.done [#allocation6], 1024
    $region33: #{tpu_custom_call.1} parent=1 // pred_fallthru
      _
    // Predicated region
    $region34: #{tpu_custom_call.1} parent=1 // pred_check
      _
    $region35: #{tpu_custom_call.1} parent=1 // pred_check_branch
      %90 = sbr.rel (0) target = $region37
    $region36: #{tpu_custom_call.1} parent=1 // pred_region
      %91 = dma.done [#allocation9], 1024
    $region37: #{tpu_custom_call.1} parent=1 // pred_fallthru
      _
    // Predicated region
    $region38: #{tpu_custom_call.1} parent=1 // pred_check
      _
    $region39: #{tpu_custom_call.1} parent=1 // pred_check_branch
      %93 = sbr.rel (0) target = $region41
    $region40: #{tpu_custom_call.1} parent=1 // pred_region
      %94 = dma.done [#allocation9], 1024
    $region41: #{tpu_custom_call.1} parent=1 // pred_fallthru
      _
    // Predicated region
    $region42: #{tpu_custom_call.1} parent=1 // pred_check
      _
    $region43: #{tpu_custom_call.1} parent=1 // pred_check_branch
      %96 = sbr.rel (0) target = $region45
    $region44: #{tpu_custom_call.1} parent=1 // pred_region
      %97 = dma.done [#allocation12], 16
    $region45: #{tpu_custom_call.1} parent=1 // pred_fallthru
      _
    // Predicated region
    $region46: #{tpu_custom_call.1} parent=1 // pred_check
      _
    $region47: #{tpu_custom_call.1} parent=1 // pred_check_branch
      %99 = sbr.rel (0) target = $region49
    $region48: #{tpu_custom_call.1} parent=1 // pred_region
      %100 = dma.done [#allocation12], 64
    $region49: #{tpu_custom_call.1} parent=1 // pred_fallthru
      _
    // Predicated region
    $region50: #{tpu_custom_call.1} parent=1 // pred_check
      _
    $region51: #{tpu_custom_call.1} parent=1 // pred_check_branch
      %102 = sbr.rel (0) target = $region53
    $region52: #{tpu_custom_call.1} parent=1 // pred_region
      %103 = dma.done [#allocation15], 16
    $region53: #{tpu_custom_call.1} parent=1 // pred_fallthru
      _
    // Predicated region
    $region54: #{tpu_custom_call.1} parent=1 // pred_check
      _
    $region55: #{tpu_custom_call.1} parent=1 // pred_check_branch
      %106 = sbr.rel target = $region57
    $region56: #{tpu_custom_call.1} parent=1 // pred_region
      %107 = sst [smem:[#allocation19]] [#allocation18]
      %108 = sst [smem:[#allocation20]] [#allocation17]
    $region57: #{tpu_custom_call.1} parent=1 // pred_fallthru
      _
    %110 = shalt.err (0)
    %s112 = sshll.u32 [#allocation2], 4
    %s113 = int_to_ptr.vmem [resolvable:$true] %s112
    %115 = dma.hbm_to_vmem [thread:$0]  %s5, 40960, %s113, [#allocation4]
    %v116 = vld [vmem:[#allocation5] sm:$0xf]
    %v117 = vld [vmem:[#allocation5 + $0x4] sm:$0xf]
    %v118 = vld [vmem:[#allocation5 + $0x8] sm:$0xf]
    %v119 = vld [vmem:[#allocation5 + $0xc] sm:$0xf]
    %v120 = vld [vmem:[#allocation5 + $0x10] sm:$0xf]
    %v121 = vld [vmem:[#allocation5 + $0x14] sm:$0xf]
    %v122 = vld [vmem:[#allocation5 + $0x18] sm:$0xf]
    %v123 = vld [vmem:[#allocation5 + $0x1c] sm:$0xf]
    %v124 = vld [vmem:[#allocation5 + $0x20] sm:$0xf]
    %v125 = vld [vmem:[#allocation5 + $0x24] sm:$0xf]
    %v126 = vld [vmem:[#allocation5 + $0x28] sm:$0xf]
    %v127 = vld [vmem:[#allocation5 + $0x2c] sm:$0xf]
    %v128 = vld [vmem:[#allocation5 + $0x30] sm:$0xf]
    %v129 = vld [vmem:[#allocation5 + $0x34] sm:$0xf]
    %v130 = vld [vmem:[#allocation5 + $0x38] sm:$0xf]
    %v131 = vld [vmem:[#allocation5 + $0x3c] sm:$0xf]
    %v132 = vld [vmem:[#allocation8] sm:$0xf]
    %v133 = vld [vmem:[#allocation8 + $0x4] sm:$0xf]
    %v134 = vld [vmem:[#allocation8 + $0x8] sm:$0xf]
    %v135 = vld [vmem:[#allocation8 + $0xc] sm:$0xf]
    %v136 = vld [vmem:[#allocation8 + $0x10] sm:$0xf]
    %v137 = vld [vmem:[#allocation8 + $0x14] sm:$0xf]
    %v138 = vld [vmem:[#allocation8 + $0x18] sm:$0xf]
    %v139 = vld [vmem:[#allocation8 + $0x1c] sm:$0xf]
    %v140 = vld [vmem:[#allocation8 + $0x20] sm:$0xf]
    %v141 = vld [vmem:[#allocation8 + $0x24] sm:$0xf]
    %v142 = vld [vmem:[#allocation8 + $0x28] sm:$0xf]
    %v143 = vld [vmem:[#allocation8 + $0x2c] sm:$0xf]
    %v144 = vld [vmem:[#allocation8 + $0x30] sm:$0xf]
    %v145 = vld [vmem:[#allocation8 + $0x34] sm:$0xf]
    %v146 = vld [vmem:[#allocation8 + $0x38] sm:$0xf]
    %v147 = vld [vmem:[#allocation8 + $0x3c] sm:$0xf]
    %v148 = vlaneseq
    %v149 = vshrl.u32 %v148, 7
    %v150 = vadd.s32 %v149, 8
    %v151 = vadd.s32 %v149, 16
    %v152 = vadd.s32 %v149, 24
    %v153 = vadd.s32 %v149, 32
    %v154 = vadd.s32 %v149, 40
    %v155 = vadd.s32 %v149, 48
    %v156 = vadd.s32 %v149, 56
    %v157 = vadd.s32 %v149, 64
    %v158 = vadd.s32 %v149, 72
    %v159 = vadd.s32 %v149, 80
    %v160 = vadd.s32 %v149, 88
    %v161 = vadd.s32 %v149, 96
    %v162 = vadd.s32 %v149, 104
    %v163 = vadd.s32 %v149, 112
    %v164 = vadd.s32 %v149, 120
    %v165 = vlaneseq
    %v166 = vand.u32 %v165, 127
    %vm167 = vcmp.eq.s32.totalorder %v149, %v166
    %vm168 = vcmp.eq.s32.totalorder %v150, %v166
    %vm169 = vcmp.eq.s32.totalorder %v151, %v166
    %vm170 = vcmp.eq.s32.totalorder %v152, %v166
    %vm171 = vcmp.eq.s32.totalorder %v153, %v166
    %vm172 = vcmp.eq.s32.totalorder %v154, %v166
    %vm173 = vcmp.eq.s32.totalorder %v155, %v166
    %vm174 = vcmp.eq.s32.totalorder %v156, %v166
    %vm175 = vcmp.eq.s32.totalorder %v157, %v166
    %vm176 = vcmp.eq.s32.totalorder %v158, %v166
    %vm177 = vcmp.eq.s32.totalorder %v159, %v166
    %vm178 = vcmp.eq.s32.totalorder %v160, %v166
    %vm179 = vcmp.eq.s32.totalorder %v161, %v166
    %vm180 = vcmp.eq.s32.totalorder %v162, %v166
    %vm181 = vcmp.eq.s32.totalorder %v163, %v166
    %vm182 = vcmp.eq.s32.totalorder %v164, %v166
    %v183 = vsel %vm167, 1, 0
    %v184 = vsel %vm168, 1, 0
    %v185 = vsel %vm169, 1, 0
    %v186 = vsel %vm170, 1, 0
    %v187 = vsel %vm171, 1, 0
    %v188 = vsel %vm172, 1, 0
    %v189 = vsel %vm173, 1, 0
    %v190 = vsel %vm174, 1, 0
    %v191 = vsel %vm175, 1, 0
    %v192 = vsel %vm176, 1, 0
    %v193 = vsel %vm177, 1, 0
    %v194 = vsel %vm178, 1, 0
    %v195 = vsel %vm179, 1, 0
    %v196 = vsel %vm180, 1, 0
    %v197 = vsel %vm181, 1, 0
    %v198 = vsel %vm182, 1, 0
    %v199 = vcvt.s32.f32 %v183
    %v200 = vcvt.s32.f32 %v184
    %v201 = vcvt.s32.f32 %v185
    %v202 = vcvt.s32.f32 %v186
    %v203 = vcvt.s32.f32 %v187
    %v204 = vcvt.s32.f32 %v188
    %v205 = vcvt.s32.f32 %v189
    %v206 = vcvt.s32.f32 %v190
    %v207 = vcvt.s32.f32 %v191
    %v208 = vcvt.s32.f32 %v192
    %v209 = vcvt.s32.f32 %v193
    %v210 = vcvt.s32.f32 %v194
    %v211 = vcvt.s32.f32 %v195
    %v212 = vcvt.s32.f32 %v196
    %v213 = vcvt.s32.f32 %v197
    %v214 = vcvt.s32.f32 %v198
    %v215 = vunpack.c.l.bf16 %v116
    %v216 = vunpack.c.l.bf16 %v117
    %v217 = vunpack.c.l.bf16 %v118
    %v218 = vunpack.c.l.bf16 %v119
    %v219 = vunpack.c.l.bf16 %v120
    %v220 = vunpack.c.l.bf16 %v121
    %v221 = vunpack.c.l.bf16 %v122
    %v222 = vunpack.c.l.bf16 %v123
    %v223 = vunpack.c.l.bf16 %v124
    %v224 = vunpack.c.l.bf16 %v125
    %v225 = vunpack.c.l.bf16 %v126
    %v226 = vunpack.c.l.bf16 %v127
    %v227 = vunpack.c.l.bf16 %v128
    %v228 = vunpack.c.l.bf16 %v129
    %v229 = vunpack.c.l.bf16 %v130
    %v230 = vunpack.c.l.bf16 %v131
    %v247 = vunpack.c.l.b16 %v132
    %v248 = vunpack.c.l.b16 %v133
    %v249 = vunpack.c.l.b16 %v134
    %v250 = vunpack.c.l.b16 %v135
    %v251 = vunpack.c.l.b16 %v136
    %v252 = vunpack.c.l.b16 %v137
    %v253 = vunpack.c.l.b16 %v138
    %v254 = vunpack.c.l.b16 %v139
    %v255 = vunpack.c.l.b16 %v140
    %v256 = vunpack.c.l.b16 %v141
    %v257 = vunpack.c.l.b16 %v142
    %v258 = vunpack.c.l.b16 %v143
    %v259 = vunpack.c.l.b16 %v144
    %v260 = vunpack.c.l.b16 %v145
    %v261 = vunpack.c.l.b16 %v146
    %v262 = vunpack.c.l.b16 %v147
    %v263 = vpack.c.b16 %v248, %v247
    %v264 = vpack.c.b16 %v250, %v249
    %v265 = vpack.c.b16 %v252, %v251
    %v266 = vpack.c.b16 %v254, %v253
    %v267 = vpack.c.b16 %v256, %v255
    %v268 = vpack.c.b16 %v258, %v257
    %v269 = vpack.c.b16 %v260, %v259
    %v270 = vpack.c.b16 %v262, %v261
    %v295 = vunpack.c.l.b16 %v116
    %v296 = vunpack.c.l.b16 %v117
    %v297 = vunpack.c.l.b16 %v118
    %v298 = vunpack.c.l.b16 %v119
    %v299 = vunpack.c.l.b16 %v120
    %v300 = vunpack.c.l.b16 %v121
    %v301 = vunpack.c.l.b16 %v122
    %v302 = vunpack.c.l.b16 %v123
    %v303 = vunpack.c.l.b16 %v124
    %v304 = vunpack.c.l.b16 %v125
    %v305 = vunpack.c.l.b16 %v126
    %v306 = vunpack.c.l.b16 %v127
    %v307 = vunpack.c.l.b16 %v128
    %v308 = vunpack.c.l.b16 %v129
    %v309 = vunpack.c.l.b16 %v130
    %v310 = vunpack.c.l.b16 %v131
    %v311 = vpack.c.b16 %v296, %v295
    %v312 = vpack.c.b16 %v298, %v297
    %v313 = vpack.c.b16 %v300, %v299
    %v314 = vpack.c.b16 %v302, %v301
    %v315 = vpack.c.b16 %v304, %v303
    %v316 = vpack.c.b16 %v306, %v305
    %v317 = vpack.c.b16 %v308, %v307
    %v318 = vpack.c.b16 %v310, %v309
    %327 = vmatprep.subr.bf16.mxu0 0
    %328 = vmatpush1.bf16.msra.mxu0 %v318
    %329 = vmatprep.subr.bf16.mxu0 0
    %330 = vmatpush1.bf16.msra.mxu0 %v317
    %331 = vmatprep.subr.bf16.mxu0 0
    %332 = vmatpush1.bf16.msra.mxu0 %v316
    %333 = vmatprep.subr.bf16.mxu0 0
    %334 = vmatpush1.bf16.msra.mxu0 %v315
    %335 = vmatprep.subr.bf16.mxu0 0
    %336 = vmatpush1.bf16.msra.mxu0 %v314
    %337 = vmatprep.subr.bf16.mxu0 0
    %338 = vmatpush1.bf16.msra.mxu0 %v313
    %339 = vmatprep.subr.bf16.mxu0 0
    %340 = vmatpush1.bf16.msra.mxu0 %v312
    %341 = vmatprep.subr.bf16.mxu0 0
    %342 = vmatpush1.bf16.msra.mxu0 %v311
    %343 = vmatprep.subr.bf16.mxu0 0
    %344 = vmatpush2.bf16.msra.mxu0 0
    %345 = vmatprep.subr.bf16.mxu0 0
    %346 = vmatpush2.bf16.msra.mxu0 0
    %347 = vmatprep.subr.bf16.mxu0 0
    %348 = vmatpush2.bf16.msra.mxu0 0
    %349 = vmatprep.subr.bf16.mxu0 0
    %350 = vmatpush2.bf16.msra.mxu0 0
    %351 = vmatprep.subr.bf16.mxu0 0
    %352 = vmatpush2.bf16.msra.mxu0 0
    %353 = vmatprep.subr.bf16.mxu0 0
    %354 = vmatpush2.bf16.msra.mxu0 0
    %355 = vmatprep.subr.bf16.mxu0 0
    %356 = vmatpush2.bf16.msra.mxu0 0
    %357 = vmatprep.subr.bf16.mxu0 0
    %358 = vmatpush2.bf16.msra.mxu0 0
    %359 = vmatprep.mubr.bf16.mxu0 0
    %360 = vmatmul.mubr.bf16.gmra.mxu0 %v263
    %v361 = vpop.f32.mrf.mxu0
    %v362 = vadd.f32 0.0, %v361
    %v363 = vpop.f32.mrf.mxu0
    %v364 = vpop.f32.mrf.mxu0
    %v365 = vadd.f32 0.0, %v364
    %v366 = vpop.f32.mrf.mxu0
    %367 = vmatprep.mubr.bf16.mxu0 0
    %368 = vmatmul.mubr.bf16.gmra.mxu0 %v264
    %v369 = vpop.f32.mrf.mxu0
    %v370 = vadd.f32 0.0, %v369
    %v371 = vpop.f32.mrf.mxu0
    %v372 = vpop.f32.mrf.mxu0
    %v373 = vadd.f32 0.0, %v372
    %v374 = vpop.f32.mrf.mxu0
    %375 = vmatprep.mubr.bf16.mxu0 0
    %376 = vmatmul.mubr.bf16.gmra.mxu0 %v265
    %v377 = vpop.f32.mrf.mxu0
    %v378 = vadd.f32 0.0, %v377
    %v379 = vpop.f32.mrf.mxu0
    %v380 = vpop.f32.mrf.mxu0
    %v381 = vadd.f32 0.0, %v380
    %v382 = vpop.f32.mrf.mxu0
    %383 = vmatprep.mubr.bf16.mxu0 0
    %384 = vmatmul.mubr.bf16.gmra.mxu0 %v266
    %v385 = vpop.f32.mrf.mxu0
    %v386 = vadd.f32 0.0, %v385
    %v387 = vpop.f32.mrf.mxu0
    %v388 = vpop.f32.mrf.mxu0
    %v389 = vadd.f32 0.0, %v388
    %v390 = vpop.f32.mrf.mxu0
    %391 = vmatprep.mubr.bf16.mxu0 0
    %392 = vmatmul.mubr.bf16.gmra.mxu0 %v267
    %v393 = vpop.f32.mrf.mxu0
    %v394 = vadd.f32 0.0, %v393
    %v395 = vpop.f32.mrf.mxu0
    %v396 = vpop.f32.mrf.mxu0
    %v397 = vadd.f32 0.0, %v396
    %v398 = vpop.f32.mrf.mxu0
    %399 = vmatprep.mubr.bf16.mxu0 0
    %400 = vmatmul.mubr.bf16.gmra.mxu0 %v268
    %v401 = vpop.f32.mrf.mxu0
    %v402 = vadd.f32 0.0, %v401
    %v403 = vpop.f32.mrf.mxu0
    %v404 = vpop.f32.mrf.mxu0
    %v405 = vadd.f32 0.0, %v404
    %v406 = vpop.f32.mrf.mxu0
    %407 = vmatprep.mubr.bf16.mxu0 0
    %408 = vmatmul.mubr.bf16.gmra.mxu0 %v269
    %v409 = vpop.f32.mrf.mxu0
    %v410 = vadd.f32 0.0, %v409
    %v411 = vpop.f32.mrf.mxu0
    %v412 = vpop.f32.mrf.mxu0
    %v413 = vadd.f32 0.0, %v412
    %v414 = vpop.f32.mrf.mxu0
    %415 = vmatprep.mubr.bf16.mxu0 0
    %416 = vmatmul.mubr.bf16.gmra.mxu0 %v270
    %v417 = vpop.f32.mrf.mxu0
    %v418 = vadd.f32 0.0, %v417
    %v419 = vpop.f32.mrf.mxu0
    %v420 = vpop.f32.mrf.mxu0
    %v421 = vadd.f32 0.0, %v420
    %v422 = vpop.f32.mrf.mxu0
    %423 = vdwg.mxu0
    %v424 = vsub.f32 %v362, %v199
    %v425 = vsub.f32 %v365, %v200
    %v426 = vsub.f32 %v370, %v201
    %v427 = vsub.f32 %v373, %v202
    %v428 = vsub.f32 %v378, %v203
    %v429 = vsub.f32 %v381, %v204
    %v430 = vsub.f32 %v386, %v205
    %v431 = vsub.f32 %v389, %v206
    %v432 = vsub.f32 %v394, %v207
    %v433 = vsub.f32 %v397, %v208
    %v434 = vsub.f32 %v402, %v209
    %v435 = vsub.f32 %v405, %v210
    %v436 = vsub.f32 %v410, %v211
    %v437 = vsub.f32 %v413, %v212
    %v438 = vsub.f32 %v418, %v213
    %v439 = vsub.f32 %v421, %v214
    %v440 = vpack.c.bf16 %v425, %v424
    %v441 = vpack.c.bf16 %v427, %v426
    %v442 = vpack.c.bf16 %v429, %v428
    %v443 = vpack.c.bf16 %v431, %v430
    %v444 = vpack.c.bf16 %v433, %v432
    %v445 = vpack.c.bf16 %v435, %v434
    %v446 = vpack.c.bf16 %v437, %v436
    %v447 = vpack.c.bf16 %v439, %v438
    %448 = vmatprep.subr.bf16.mxu0 0
    %449 = vmatpush1.bf16.msra.mxu0 %v447
    %450 = vmatprep.subr.bf16.mxu0 0
    %451 = vmatpush1.bf16.msra.mxu0 %v446
    %452 = vmatprep.subr.bf16.mxu0 0
    %453 = vmatpush1.bf16.msra.mxu0 %v445
    %454 = vmatprep.subr.bf16.mxu0 0
    %455 = vmatpush1.bf16.msra.mxu0 %v444
    %456 = vmatprep.subr.bf16.mxu0 0
    %457 = vmatpush1.bf16.msra.mxu0 %v443
    %458 = vmatprep.subr.bf16.mxu0 0
    %459 = vmatpush1.bf16.msra.mxu0 %v442
    %460 = vmatprep.subr.bf16.mxu0 0
    %461 = vmatpush1.bf16.msra.mxu0 %v441
    %462 = vmatprep.subr.bf16.mxu0 0
    %463 = vmatpush1.bf16.msra.mxu0 %v440
    %464 = vmatprep.subr.bf16.mxu0 0
    %465 = vmatpush2.bf16.msra.mxu0 0
    %466 = vmatprep.subr.bf16.mxu0 0
    %467 = vmatpush2.bf16.msra.mxu0 0
    %468 = vmatprep.subr.bf16.mxu0 0
    %469 = vmatpush2.bf16.msra.mxu0 0
    %470 = vmatprep.subr.bf16.mxu0 0
    %471 = vmatpush2.bf16.msra.mxu0 0
    %472 = vmatprep.subr.bf16.mxu0 0
    %473 = vmatpush2.bf16.msra.mxu0 0
    %474 = vmatprep.subr.bf16.mxu0 0
    %475 = vmatpush2.bf16.msra.mxu0 0
    %476 = vmatprep.subr.bf16.mxu0 0
    %477 = vmatpush2.bf16.msra.mxu0 0
    %478 = vmatprep.subr.bf16.mxu0 0
    %479 = vmatpush2.bf16.msra.mxu0 0
    %480 = vmatprep.mubr.bf16.mxu0 0
    %481 = vmatmul.mubr.bf16.gmra.mxu0 %v263
    %v482 = vpop.f32.mrf.mxu0
    %v483 = vadd.f32 0.0, %v482
    %v484 = vpop.f32.mrf.mxu0
    %v485 = vpop.f32.mrf.mxu0
    %v486 = vadd.f32 0.0, %v485
    %v487 = vpop.f32.mrf.mxu0
    %488 = vmatprep.mubr.bf16.mxu0 0
    %489 = vmatmul.mubr.bf16.gmra.mxu0 %v264
    %v490 = vpop.f32.mrf.mxu0
    %v491 = vadd.f32 0.0, %v490
    %v492 = vpop.f32.mrf.mxu0
    %v493 = vpop.f32.mrf.mxu0
    %v494 = vadd.f32 0.0, %v493
    %v495 = vpop.f32.mrf.mxu0
    %496 = vmatprep.mubr.bf16.mxu0 0
    %497 = vmatmul.mubr.bf16.gmra.mxu0 %v265
    %v498 = vpop.f32.mrf.mxu0
    %v499 = vadd.f32 0.0, %v498
    %v500 = vpop.f32.mrf.mxu0
    %v501 = vpop.f32.mrf.mxu0
    %v502 = vadd.f32 0.0, %v501
    %v503 = vpop.f32.mrf.mxu0
    %504 = vmatprep.mubr.bf16.mxu0 0
    %505 = vmatmul.mubr.bf16.gmra.mxu0 %v266
    %v506 = vpop.f32.mrf.mxu0
    %v507 = vadd.f32 0.0, %v506
    %v508 = vpop.f32.mrf.mxu0
    %v509 = vpop.f32.mrf.mxu0
    %v510 = vadd.f32 0.0, %v509
    %v511 = vpop.f32.mrf.mxu0
    %512 = vmatprep.mubr.bf16.mxu0 0
    %513 = vmatmul.mubr.bf16.gmra.mxu0 %v267
    %v514 = vpop.f32.mrf.mxu0
    %v515 = vadd.f32 0.0, %v514
    %v516 = vpop.f32.mrf.mxu0
    %v517 = vpop.f32.mrf.mxu0
    %v518 = vadd.f32 0.0, %v517
    %v519 = vpop.f32.mrf.mxu0
    %520 = vmatprep.mubr.bf16.mxu0 0
    %521 = vmatmul.mubr.bf16.gmra.mxu0 %v268
    %v522 = vpop.f32.mrf.mxu0
    %v523 = vadd.f32 0.0, %v522
    %v524 = vpop.f32.mrf.mxu0
    %v525 = vpop.f32.mrf.mxu0
    %v526 = vadd.f32 0.0, %v525
    %v527 = vpop.f32.mrf.mxu0
    %528 = vmatprep.mubr.bf16.mxu0 0
    %529 = vmatmul.mubr.bf16.gmra.mxu0 %v269
    %v530 = vpop.f32.mrf.mxu0
    %v531 = vadd.f32 0.0, %v530
    %v532 = vpop.f32.mrf.mxu0
    %v533 = vpop.f32.mrf.mxu0
    %v534 = vadd.f32 0.0, %v533
    %v535 = vpop.f32.mrf.mxu0
    %536 = vmatprep.mubr.bf16.mxu0 0
    %537 = vmatmul.mubr.bf16.gmra.mxu0 %v270
    %v538 = vpop.f32.mrf.mxu0
    %v539 = vadd.f32 0.0, %v538
    %v540 = vpop.f32.mrf.mxu0
    %v541 = vpop.f32.mrf.mxu0
    %v542 = vadd.f32 0.0, %v541
    %v543 = vpop.f32.mrf.mxu0
    %544 = vdwg.mxu0
    %v545 = vsub.f32 %v483, %v215
    %v546 = vsub.f32 %v486, %v216
    %v547 = vsub.f32 %v491, %v217
    %v548 = vsub.f32 %v494, %v218
    %v549 = vsub.f32 %v499, %v219
    %v550 = vsub.f32 %v502, %v220
    %v551 = vsub.f32 %v507, %v221
    %v552 = vsub.f32 %v510, %v222
    %v553 = vsub.f32 %v515, %v223
    %v554 = vsub.f32 %v518, %v224
    %v555 = vsub.f32 %v523, %v225
    %v556 = vsub.f32 %v526, %v226
    %v557 = vsub.f32 %v531, %v227
    %v558 = vsub.f32 %v534, %v228
    %v559 = vsub.f32 %v539, %v229
    %v560 = vsub.f32 %v542, %v230
    %v561 = vpack.c.bf16 %v546, %v545
    %v562 = vpack.c.bf16 %v548, %v547
    %v563 = vpack.c.bf16 %v550, %v549
    %v564 = vpack.c.bf16 %v552, %v551
    %v565 = vpack.c.bf16 %v554, %v553
    %v566 = vpack.c.bf16 %v556, %v555
    %v567 = vpack.c.bf16 %v558, %v557
    %v568 = vpack.c.bf16 %v560, %v559
    %569 = vmatprep.subr.bf16.mxu0 0
    %570 = vmatpush1.bf16.msra.mxu0 %v568
    %571 = vmatprep.subr.bf16.mxu0 0
    %572 = vmatpush1.bf16.msra.mxu0 %v567
    %573 = vmatprep.subr.bf16.mxu0 0
    %574 = vmatpush1.bf16.msra.mxu0 %v566
    %575 = vmatprep.subr.bf16.mxu0 0
    %576 = vmatpush1.bf16.msra.mxu0 %v565
    %577 = vmatprep.subr.bf16.mxu0 0
    %578 = vmatpush1.bf16.msra.mxu0 %v564
    %579 = vmatprep.subr.bf16.mxu0 0
    %580 = vmatpush1.bf16.msra.mxu0 %v563
    %581 = vmatprep.subr.bf16.mxu0 0
    %582 = vmatpush1.bf16.msra.mxu0 %v562
    %583 = vmatprep.subr.bf16.mxu0 0
    %584 = vmatpush1.bf16.msra.mxu0 %v561
    %585 = vmatprep.subr.bf16.mxu0 0
    %586 = vmatpush2.bf16.msra.mxu0 0
    %587 = vmatprep.subr.bf16.mxu0 0
    %588 = vmatpush2.bf16.msra.mxu0 0
    %589 = vmatprep.subr.bf16.mxu0 0
    %590 = vmatpush2.bf16.msra.mxu0 0
    %591 = vmatprep.subr.bf16.mxu0 0
    %592 = vmatpush2.bf16.msra.mxu0 0
    %593 = vmatprep.subr.bf16.mxu0 0
    %594 = vmatpush2.bf16.msra.mxu0 0
    %595 = vmatprep.subr.bf16.mxu0 0
    %596 = vmatpush2.bf16.msra.mxu0 0
    %597 = vmatprep.subr.bf16.mxu0 0
    %598 = vmatpush2.bf16.msra.mxu0 0
    %599 = vmatprep.subr.bf16.mxu0 0
    %600 = vmatpush2.bf16.msra.mxu0 0
    %601 = vmatprep.mubr.bf16.mxu0 0
    %602 = vmatmul.mubr.bf16.gmra.mxu0 %v263
    %v603 = vpop.f32.mrf.mxu0
    %v604 = vadd.f32 0.0, %v603
    %v605 = vpop.f32.mrf.mxu0
    %v606 = vpop.f32.mrf.mxu0
    %v607 = vadd.f32 0.0, %v606
    %v608 = vpop.f32.mrf.mxu0
    %609 = vmatprep.mubr.bf16.mxu0 0
    %610 = vmatmul.mubr.bf16.gmra.mxu0 %v264
    %v611 = vpop.f32.mrf.mxu0
    %v612 = vadd.f32 0.0, %v611
    %v613 = vpop.f32.mrf.mxu0
    %v614 = vpop.f32.mrf.mxu0
    %v615 = vadd.f32 0.0, %v614
    %v616 = vpop.f32.mrf.mxu0
    %617 = vmatprep.mubr.bf16.mxu0 0
    %618 = vmatmul.mubr.bf16.gmra.mxu0 %v265
    %v619 = vpop.f32.mrf.mxu0
    %v620 = vadd.f32 0.0, %v619
    %v621 = vpop.f32.mrf.mxu0
    %v622 = vpop.f32.mrf.mxu0
    %v623 = vadd.f32 0.0, %v622
    %v624 = vpop.f32.mrf.mxu0
    %625 = vmatprep.mubr.bf16.mxu0 0
    %626 = vmatmul.mubr.bf16.gmra.mxu0 %v266
    %v627 = vpop.f32.mrf.mxu0
    %v628 = vadd.f32 0.0, %v627
    %v629 = vpop.f32.mrf.mxu0
    %v630 = vpop.f32.mrf.mxu0
    %v631 = vadd.f32 0.0, %v630
    %v632 = vpop.f32.mrf.mxu0
    %633 = vmatprep.mubr.bf16.mxu0 0
    %634 = vmatmul.mubr.bf16.gmra.mxu0 %v267
    %v635 = vpop.f32.mrf.mxu0
    %v636 = vadd.f32 0.0, %v635
    %v637 = vpop.f32.mrf.mxu0
    %v638 = vpop.f32.mrf.mxu0
    %v639 = vadd.f32 0.0, %v638
    %v640 = vpop.f32.mrf.mxu0
    %641 = vmatprep.mubr.bf16.mxu0 0
    %642 = vmatmul.mubr.bf16.gmra.mxu0 %v268
    %v643 = vpop.f32.mrf.mxu0
    %v644 = vadd.f32 0.0, %v643
    %v645 = vpop.f32.mrf.mxu0
    %v646 = vpop.f32.mrf.mxu0
    %v647 = vadd.f32 0.0, %v646
    %v648 = vpop.f32.mrf.mxu0
    %649 = vmatprep.mubr.bf16.mxu0 0
    %650 = vmatmul.mubr.bf16.gmra.mxu0 %v269
    %v651 = vpop.f32.mrf.mxu0
    %v652 = vadd.f32 0.0, %v651
    %v653 = vpop.f32.mrf.mxu0
    %v654 = vpop.f32.mrf.mxu0
    %v655 = vadd.f32 0.0, %v654
    %v656 = vpop.f32.mrf.mxu0
    %657 = vmatprep.mubr.bf16.mxu0 0
    %658 = vmatmul.mubr.bf16.gmra.mxu0 %v270
    %v659 = vpop.f32.mrf.mxu0
    %v660 = vadd.f32 0.0, %v659
    %v661 = vpop.f32.mrf.mxu0
    %v662 = vpop.f32.mrf.mxu0
    %v663 = vadd.f32 0.0, %v662
    %v664 = vpop.f32.mrf.mxu0
    %665 = vdwg.mxu0
    %v666 = vsub.f32 %v604, %v424
    %v667 = vsub.f32 %v607, %v425
    %v668 = vsub.f32 %v612, %v426
    %v669 = vsub.f32 %v615, %v427
    %v670 = vsub.f32 %v620, %v428
    %v671 = vsub.f32 %v623, %v429
    %v672 = vsub.f32 %v628, %v430
    %v673 = vsub.f32 %v631, %v431
    %v674 = vsub.f32 %v636, %v432
    %v675 = vsub.f32 %v639, %v433
    %v676 = vsub.f32 %v644, %v434
    %v677 = vsub.f32 %v647, %v435
    %v678 = vsub.f32 %v652, %v436
    %v679 = vsub.f32 %v655, %v437
    %v680 = vsub.f32 %v660, %v438
    %v681 = vsub.f32 %v663, %v439
    %v682 = vpack.c.bf16 %v667, %v666
    %v683 = vpack.c.bf16 %v669, %v668
    %v684 = vpack.c.bf16 %v671, %v670
    %v685 = vpack.c.bf16 %v673, %v672
    %v686 = vpack.c.bf16 %v675, %v674
    %v687 = vpack.c.bf16 %v677, %v676
    %v688 = vpack.c.bf16 %v679, %v678
    %v689 = vpack.c.bf16 %v681, %v680
    %v690 = vld [vmem:[%s0] sm:$0xf]
    %v691 = vld [vmem:[%s0 + $0x4] sm:$0xf]
    %v692 = vld [vmem:[%s0 + $0x8] sm:$0xf]
    %v693 = vld [vmem:[%s0 + $0xc] sm:$0xf]
    %v694 = vld [vmem:[%s0 + $0x10] sm:$0xf]
    %v695 = vld [vmem:[%s0 + $0x14] sm:$0xf]
    %v696 = vld [vmem:[%s0 + $0x18] sm:$0xf]
    %v697 = vld [vmem:[%s0 + $0x1c] sm:$0xf]
    %v698 = vld [vmem:[%s0 + $0x20] sm:$0xf]
    %v699 = vld [vmem:[%s0 + $0x24] sm:$0xf]
    %v700 = vld [vmem:[%s0 + $0x28] sm:$0xf]
    %v701 = vld [vmem:[%s0 + $0x2c] sm:$0xf]
    %v702 = vld [vmem:[%s0 + $0x30] sm:$0xf]
    %v703 = vld [vmem:[%s0 + $0x34] sm:$0xf]
    %v704 = vld [vmem:[%s0 + $0x38] sm:$0xf]
    %v705 = vld [vmem:[%s0 + $0x3c] sm:$0xf]
    %v722 = vunpack.c.l.b16 %v690
    %v723 = vunpack.c.l.b16 %v691
    %v724 = vunpack.c.l.b16 %v692
    %v725 = vunpack.c.l.b16 %v693
    %v726 = vunpack.c.l.b16 %v694
    %v727 = vunpack.c.l.b16 %v695
    %v728 = vunpack.c.l.b16 %v696
    %v729 = vunpack.c.l.b16 %v697
    %v730 = vunpack.c.l.b16 %v698
    %v731 = vunpack.c.l.b16 %v699
    %v732 = vunpack.c.l.b16 %v700
    %v733 = vunpack.c.l.b16 %v701
    %v734 = vunpack.c.l.b16 %v702
    %v735 = vunpack.c.l.b16 %v703
    %v736 = vunpack.c.l.b16 %v704
    %v737 = vunpack.c.l.b16 %v705
    %v738 = vpack.c.b16 %v723, %v722
    %v739 = vpack.c.b16 %v725, %v724
    %v740 = vpack.c.b16 %v727, %v726
    %v741 = vpack.c.b16 %v729, %v728
    %v742 = vpack.c.b16 %v731, %v730
    %v743 = vpack.c.b16 %v733, %v732
    %v744 = vpack.c.b16 %v735, %v734
    %v745 = vpack.c.b16 %v737, %v736
    %754 = vmatprep.subr.bf16.mxu0 0
    %755 = vmatpush1.bf16.msra.mxu0 %v745
    %756 = vmatprep.subr.bf16.mxu0 0
    %757 = vmatpush1.bf16.msra.mxu0 %v744
    %758 = vmatprep.subr.bf16.mxu0 0
    %759 = vmatpush1.bf16.msra.mxu0 %v743
    %760 = vmatprep.subr.bf16.mxu0 0
    %761 = vmatpush1.bf16.msra.mxu0 %v742
    %762 = vmatprep.subr.bf16.mxu0 0
    %763 = vmatpush1.bf16.msra.mxu0 %v741
    %764 = vmatprep.subr.bf16.mxu0 0
    %765 = vmatpush1.bf16.msra.mxu0 %v740
    %766 = vmatprep.subr.bf16.mxu0 0
    %767 = vmatpush1.bf16.msra.mxu0 %v739
    %768 = vmatprep.subr.bf16.mxu0 0
    %769 = vmatpush1.bf16.msra.mxu0 %v738
    %770 = vmatprep.subr.bf16.mxu0 0
    %771 = vmatpush2.bf16.msra.mxu0 0
    %772 = vmatprep.subr.bf16.mxu0 0
    %773 = vmatpush2.bf16.msra.mxu0 0
    %774 = vmatprep.subr.bf16.mxu0 0
    %775 = vmatpush2.bf16.msra.mxu0 0
    %776 = vmatprep.subr.bf16.mxu0 0
    %777 = vmatpush2.bf16.msra.mxu0 0
    %778 = vmatprep.subr.bf16.mxu0 0
    %779 = vmatpush2.bf16.msra.mxu0 0
    %780 = vmatprep.subr.bf16.mxu0 0
    %781 = vmatpush2.bf16.msra.mxu0 0
    %782 = vmatprep.subr.bf16.mxu0 0
    %783 = vmatpush2.bf16.msra.mxu0 0
    %784 = vmatprep.subr.bf16.mxu0 0
    %785 = vmatpush2.bf16.msra.mxu0 0
    %786 = vmatprep.mubr.bf16.mxu0 0
    %787 = vmatmul.mubr.bf16.gmra.mxu0 %v311
    %v788 = vpop.f32.mrf.mxu0
    %v789 = vadd.f32 0.0, %v788
    %v790 = vpop.f32.mrf.mxu0
    %v791 = vpop.f32.mrf.mxu0
    %v792 = vadd.f32 0.0, %v791
    %v793 = vpop.f32.mrf.mxu0
    %794 = vmatprep.mubr.bf16.mxu0 0
    %795 = vmatmul.mubr.bf16.gmra.mxu0 %v312
    %v796 = vpop.f32.mrf.mxu0
    %v797 = vadd.f32 0.0, %v796
    %v798 = vpop.f32.mrf.mxu0
    %v799 = vpop.f32.mrf.mxu0
    %v800 = vadd.f32 0.0, %v799
    %v801 = vpop.f32.mrf.mxu0
    %802 = vmatprep.mubr.bf16.mxu0 0
    %803 = vmatmul.mubr.bf16.gmra.mxu0 %v313
    %v804 = vpop.f32.mrf.mxu0
    %v805 = vadd.f32 0.0, %v804
    %v806 = vpop.f32.mrf.mxu0
    %v807 = vpop.f32.mrf.mxu0
    %v808 = vadd.f32 0.0, %v807
    %v809 = vpop.f32.mrf.mxu0
    %810 = vmatprep.mubr.bf16.mxu0 0
    %811 = vmatmul.mubr.bf16.gmra.mxu0 %v314
    %v812 = vpop.f32.mrf.mxu0
    %v813 = vadd.f32 0.0, %v812
    %v814 = vpop.f32.mrf.mxu0
    %v815 = vpop.f32.mrf.mxu0
    %v816 = vadd.f32 0.0, %v815
    %v817 = vpop.f32.mrf.mxu0
    %818 = vmatprep.mubr.bf16.mxu0 0
    %819 = vmatmul.mubr.bf16.gmra.mxu0 %v315
    %v820 = vpop.f32.mrf.mxu0
    %v821 = vadd.f32 0.0, %v820
    %v822 = vpop.f32.mrf.mxu0
    %v823 = vpop.f32.mrf.mxu0
    %v824 = vadd.f32 0.0, %v823
    %v825 = vpop.f32.mrf.mxu0
    %826 = vmatprep.mubr.bf16.mxu0 0
    %827 = vmatmul.mubr.bf16.gmra.mxu0 %v316
    %v828 = vpop.f32.mrf.mxu0
    %v829 = vadd.f32 0.0, %v828
    %v830 = vpop.f32.mrf.mxu0
    %v831 = vpop.f32.mrf.mxu0
    %v832 = vadd.f32 0.0, %v831
    %v833 = vpop.f32.mrf.mxu0
    %834 = vmatprep.mubr.bf16.mxu0 0
    %835 = vmatmul.mubr.bf16.gmra.mxu0 %v317
    %v836 = vpop.f32.mrf.mxu0
    %v837 = vadd.f32 0.0, %v836
    %v838 = vpop.f32.mrf.mxu0
    %v839 = vpop.f32.mrf.mxu0
    %v840 = vadd.f32 0.0, %v839
    %v841 = vpop.f32.mrf.mxu0
    %842 = vmatprep.mubr.bf16.mxu0 0
    %843 = vmatmul.mubr.bf16.gmra.mxu0 %v318
    %v844 = vpop.f32.mrf.mxu0
    %v845 = vadd.f32 0.0, %v844
    %v846 = vpop.f32.mrf.mxu0
    %v847 = vpop.f32.mrf.mxu0
    %v848 = vadd.f32 0.0, %v847
    %v849 = vpop.f32.mrf.mxu0
    %850 = vmatprep.mubr.bf16.mxu0 0
    %851 = vmatmul.mubr.bf16.gmra.mxu0 %v440
    %v852 = vpop.f32.mrf.mxu0
    %v853 = vadd.f32 0.0, %v852
    %v854 = vpop.f32.mrf.mxu0
    %v855 = vpop.f32.mrf.mxu0
    %v856 = vadd.f32 0.0, %v855
    %v857 = vpop.f32.mrf.mxu0
    %858 = vmatprep.mubr.bf16.mxu0 0
    %859 = vmatmul.mubr.bf16.gmra.mxu0 %v441
    %v860 = vpop.f32.mrf.mxu0
    %v861 = vadd.f32 0.0, %v860
    %v862 = vpop.f32.mrf.mxu0
    %v863 = vpop.f32.mrf.mxu0
    %v864 = vadd.f32 0.0, %v863
    %v865 = vpop.f32.mrf.mxu0
    %866 = vmatprep.mubr.bf16.mxu0 0
    %867 = vmatmul.mubr.bf16.gmra.mxu0 %v442
    %v868 = vpop.f32.mrf.mxu0
    %v869 = vadd.f32 0.0, %v868
    %v870 = vpop.f32.mrf.mxu0
    %v871 = vpop.f32.mrf.mxu0
    %v872 = vadd.f32 0.0, %v871
    %v873 = vpop.f32.mrf.mxu0
    %874 = vmatprep.mubr.bf16.mxu0 0
    %875 = vmatmul.mubr.bf16.gmra.mxu0 %v443
    %v876 = vpop.f32.mrf.mxu0
    %v877 = vadd.f32 0.0, %v876
    %v878 = vpop.f32.mrf.mxu0
    %v879 = vpop.f32.mrf.mxu0
    %v880 = vadd.f32 0.0, %v879
    %v881 = vpop.f32.mrf.mxu0
    %882 = vmatprep.mubr.bf16.mxu0 0
    %883 = vmatmul.mubr.bf16.gmra.mxu0 %v444
    %v884 = vpop.f32.mrf.mxu0
    %v885 = vadd.f32 0.0, %v884
    %v886 = vpop.f32.mrf.mxu0
    %v887 = vpop.f32.mrf.mxu0
    %v888 = vadd.f32 0.0, %v887
    %v889 = vpop.f32.mrf.mxu0
    %890 = vmatprep.mubr.bf16.mxu0 0
    %891 = vmatmul.mubr.bf16.gmra.mxu0 %v445
    %v892 = vpop.f32.mrf.mxu0
    %v893 = vadd.f32 0.0, %v892
    %v894 = vpop.f32.mrf.mxu0
    %v895 = vpop.f32.mrf.mxu0
    %v896 = vadd.f32 0.0, %v895
    %v897 = vpop.f32.mrf.mxu0
    %898 = vmatprep.mubr.bf16.mxu0 0
    %899 = vmatmul.mubr.bf16.gmra.mxu0 %v446
    %v900 = vpop.f32.mrf.mxu0
    %v901 = vadd.f32 0.0, %v900
    %v902 = vpop.f32.mrf.mxu0
    %v903 = vpop.f32.mrf.mxu0
    %v904 = vadd.f32 0.0, %v903
    %v905 = vpop.f32.mrf.mxu0
    %906 = vmatprep.mubr.bf16.mxu0 0
    %907 = vmatmul.mubr.bf16.gmra.mxu0 %v447
    %v908 = vpop.f32.mrf.mxu0
    %v909 = vadd.f32 0.0, %v908
    %v910 = vpop.f32.mrf.mxu0
    %v911 = vpop.f32.mrf.mxu0
    %v912 = vadd.f32 0.0, %v911
    %v913 = vpop.f32.mrf.mxu0
    %914 = vmatprep.mubr.bf16.mxu0 0
    %915 = vmatmul.mubr.bf16.gmra.mxu0 %v561
    %v916 = vpop.f32.mrf.mxu0
    %v917 = vadd.f32 0.0, %v916
    %v918 = vpop.f32.mrf.mxu0
    %v919 = vpop.f32.mrf.mxu0
    %v920 = vadd.f32 0.0, %v919
    %v921 = vpop.f32.mrf.mxu0
    %922 = vmatprep.mubr.bf16.mxu0 0
    %923 = vmatmul.mubr.bf16.gmra.mxu0 %v562
    %v924 = vpop.f32.mrf.mxu0
    %v925 = vadd.f32 0.0, %v924
    %v926 = vpop.f32.mrf.mxu0
    %v927 = vpop.f32.mrf.mxu0
    %v928 = vadd.f32 0.0, %v927
    %v929 = vpop.f32.mrf.mxu0
    %930 = vmatprep.mubr.bf16.mxu0 0
    %931 = vmatmul.mubr.bf16.gmra.mxu0 %v563
    %v932 = vpop.f32.mrf.mxu0
    %v933 = vadd.f32 0.0, %v932
    %v934 = vpop.f32.mrf.mxu0
    %v935 = vpop.f32.mrf.mxu0
    %v936 = vadd.f32 0.0, %v935
    %v937 = vpop.f32.mrf.mxu0
    %938 = vmatprep.mubr.bf16.mxu0 0
    %939 = vmatmul.mubr.bf16.gmra.mxu0 %v564
    %v940 = vpop.f32.mrf.mxu0
    %v941 = vadd.f32 0.0, %v940
    %v942 = vpop.f32.mrf.mxu0
    %v943 = vpop.f32.mrf.mxu0
    %v944 = vadd.f32 0.0, %v943
    %v945 = vpop.f32.mrf.mxu0
    %946 = vmatprep.mubr.bf16.mxu0 0
    %947 = vmatmul.mubr.bf16.gmra.mxu0 %v565
    %v948 = vpop.f32.mrf.mxu0
    %v949 = vadd.f32 0.0, %v948
    %v950 = vpop.f32.mrf.mxu0
    %v951 = vpop.f32.mrf.mxu0
    %v952 = vadd.f32 0.0, %v951
    %v953 = vpop.f32.mrf.mxu0
    %954 = vmatprep.mubr.bf16.mxu0 0
    %955 = vmatmul.mubr.bf16.gmra.mxu0 %v566
    %v956 = vpop.f32.mrf.mxu0
    %v957 = vadd.f32 0.0, %v956
    %v958 = vpop.f32.mrf.mxu0
    %v959 = vpop.f32.mrf.mxu0
    %v960 = vadd.f32 0.0, %v959
    %v961 = vpop.f32.mrf.mxu0
    %962 = vmatprep.mubr.bf16.mxu0 0
    %963 = vmatmul.mubr.bf16.gmra.mxu0 %v567
    %v964 = vpop.f32.mrf.mxu0
    %v965 = vadd.f32 0.0, %v964
    %v966 = vpop.f32.mrf.mxu0
    %v967 = vpop.f32.mrf.mxu0
    %v968 = vadd.f32 0.0, %v967
    %v969 = vpop.f32.mrf.mxu0
    %970 = vmatprep.mubr.bf16.mxu0 0
    %971 = vmatmul.mubr.bf16.gmra.mxu0 %v568
    %v972 = vpop.f32.mrf.mxu0
    %v973 = vadd.f32 0.0, %v972
    %v974 = vpop.f32.mrf.mxu0
    %v975 = vpop.f32.mrf.mxu0
    %v976 = vadd.f32 0.0, %v975
    %v977 = vpop.f32.mrf.mxu0
    %978 = vmatprep.mubr.bf16.mxu0 0
    %979 = vmatmul.mubr.bf16.gmra.mxu0 %v682
    %v980 = vpop.f32.mrf.mxu0
    %v981 = vadd.f32 0.0, %v980
    %v982 = vpop.f32.mrf.mxu0
    %v983 = vpop.f32.mrf.mxu0
    %v984 = vadd.f32 0.0, %v983
    %v985 = vpop.f32.mrf.mxu0
    %986 = vmatprep.mubr.bf16.mxu0 0
    %987 = vmatmul.mubr.bf16.gmra.mxu0 %v683
    %v988 = vpop.f32.mrf.mxu0
    %v989 = vadd.f32 0.0, %v988
    %v990 = vpop.f32.mrf.mxu0
    %v991 = vpop.f32.mrf.mxu0
    %v992 = vadd.f32 0.0, %v991
    %v993 = vpop.f32.mrf.mxu0
    %994 = vmatprep.mubr.bf16.mxu0 0
    %995 = vmatmul.mubr.bf16.gmra.mxu0 %v684
    %v996 = vpop.f32.mrf.mxu0
    %v997 = vadd.f32 0.0, %v996
    %v998 = vpop.f32.mrf.mxu0
    %v999 = vpop.f32.mrf.mxu0
    %v1000 = vadd.f32 0.0, %v999
    %v1001 = vpop.f32.mrf.mxu0
    %1002 = vmatprep.mubr.bf16.mxu0 0
    %1003 = vmatmul.mubr.bf16.gmra.mxu0 %v685
    %v1004 = vpop.f32.mrf.mxu0
    %v1005 = vadd.f32 0.0, %v1004
    %v1006 = vpop.f32.mrf.mxu0
    %v1007 = vpop.f32.mrf.mxu0
    %v1008 = vadd.f32 0.0, %v1007
    %v1009 = vpop.f32.mrf.mxu0
    %1010 = vmatprep.mubr.bf16.mxu0 0
    %1011 = vmatmul.mubr.bf16.gmra.mxu0 %v686
    %v1012 = vpop.f32.mrf.mxu0
    %v1013 = vadd.f32 0.0, %v1012
    %v1014 = vpop.f32.mrf.mxu0
    %v1015 = vpop.f32.mrf.mxu0
    %v1016 = vadd.f32 0.0, %v1015
    %v1017 = vpop.f32.mrf.mxu0
    %1018 = vmatprep.mubr.bf16.mxu0 0
    %1019 = vmatmul.mubr.bf16.gmra.mxu0 %v687
    %v1020 = vpop.f32.mrf.mxu0
    %v1021 = vadd.f32 0.0, %v1020
    %v1022 = vpop.f32.mrf.mxu0
    %v1023 = vpop.f32.mrf.mxu0
    %v1024 = vadd.f32 0.0, %v1023
    %v1025 = vpop.f32.mrf.mxu0
    %1026 = vmatprep.mubr.bf16.mxu0 0
    %1027 = vmatmul.mubr.bf16.gmra.mxu0 %v688
    %v1028 = vpop.f32.mrf.mxu0
    %v1029 = vadd.f32 0.0, %v1028
    %v1030 = vpop.f32.mrf.mxu0
    %v1031 = vpop.f32.mrf.mxu0
    %v1032 = vadd.f32 0.0, %v1031
    %v1033 = vpop.f32.mrf.mxu0
    %1034 = vmatprep.mubr.bf16.mxu0 0
    %1035 = vmatmul.mubr.bf16.gmra.mxu0 %v689
    %v1036 = vpop.f32.mrf.mxu0
    %v1037 = vadd.f32 0.0, %v1036
    %v1038 = vpop.f32.mrf.mxu0
    %v1039 = vpop.f32.mrf.mxu0
    %v1040 = vadd.f32 0.0, %v1039
    %v1041 = vpop.f32.mrf.mxu0
    %1042 = vdwg.mxu0
    %v1043 = vpack.c.bf16 %v792, %v789
    %v1044 = vpack.c.bf16 %v800, %v797
    %v1045 = vpack.c.bf16 %v808, %v805
    %v1046 = vpack.c.bf16 %v816, %v813
    %v1047 = vpack.c.bf16 %v824, %v821
    %v1048 = vpack.c.bf16 %v832, %v829
    %v1049 = vpack.c.bf16 %v840, %v837
    %v1050 = vpack.c.bf16 %v848, %v845
    %v1051 = vpack.c.bf16 %v856, %v853
    %v1052 = vpack.c.bf16 %v864, %v861
    %v1053 = vpack.c.bf16 %v872, %v869
    %v1054 = vpack.c.bf16 %v880, %v877
    %v1055 = vpack.c.bf16 %v888, %v885
    %v1056 = vpack.c.bf16 %v896, %v893
    %v1057 = vpack.c.bf16 %v904, %v901
    %v1058 = vpack.c.bf16 %v912, %v909
    %v1059 = vpack.c.bf16 %v920, %v917
    %v1060 = vpack.c.bf16 %v928, %v925
    %v1061 = vpack.c.bf16 %v936, %v933
    %v1062 = vpack.c.bf16 %v944, %v941
    %v1063 = vpack.c.bf16 %v952, %v949
    %v1064 = vpack.c.bf16 %v960, %v957
    %v1065 = vpack.c.bf16 %v968, %v965
    %v1066 = vpack.c.bf16 %v976, %v973
    %v1067 = vpack.c.bf16 %v984, %v981
    %v1068 = vpack.c.bf16 %v992, %v989
    %v1069 = vpack.c.bf16 %v1000, %v997
    %v1070 = vpack.c.bf16 %v1008, %v1005
    %v1071 = vpack.c.bf16 %v1016, %v1013
    %v1072 = vpack.c.bf16 %v1024, %v1021
    %v1073 = vpack.c.bf16 %v1032, %v1029
    %v1074 = vpack.c.bf16 %v1040, %v1037
    %1075 = vst [vmem:[#allocation3] sm:$0xf] 0
    %1076 = vst [vmem:[#allocation3 + $0x4] sm:$0xf] 0
    %1077 = vst [vmem:[#allocation3 + $0x8] sm:$0xf] 0
    %1078 = vst [vmem:[#allocation3 + $0xc] sm:$0xf] 0
    %1079 = vst [vmem:[#allocation3 + $0x10] sm:$0xf] 0
    %1080 = vst [vmem:[#allocation3 + $0x14] sm:$0xf] 0
    %1081 = vst [vmem:[#allocation3 + $0x18] sm:$0xf] 0
    %1082 = vst [vmem:[#allocation3 + $0x1c] sm:$0xf] 0
    %vm1083 = vcmask 60416
    %1084 = vst.msk [vmem:[#allocation3] sm:$0xf] %vm1083, %v690
    %1085 = vst.msk [vmem:[#allocation3 + $0x4] sm:$0xf] %vm1083, %v691
    %1086 = vst.msk [vmem:[#allocation3 + $0x8] sm:$0xf] %vm1083, %v692
    %1087 = vst.msk [vmem:[#allocation3 + $0xc] sm:$0xf] %vm1083, %v693
    %1088 = vst.msk [vmem:[#allocation3 + $0x10] sm:$0xf] %vm1083, %v694
    %1089 = vst.msk [vmem:[#allocation3 + $0x14] sm:$0xf] %vm1083, %v695
    %1090 = vst.msk [vmem:[#allocation3 + $0x18] sm:$0xf] %vm1083, %v696
    %1091 = vst.msk [vmem:[#allocation3 + $0x1c] sm:$0xf] %vm1083, %v697
    %1092 = vrot.lane.b32.xlu0 %v698, 8
    %v1093 = vpop.permute.xlu0 %1092
    %1094 = vrot.lane.b32.xlu0 %v699, 8
    %v1095 = vpop.permute.xlu0 %1094
    %1096 = vrot.lane.b32.xlu0 %v700, 8
    %v1097 = vpop.permute.xlu0 %1096
    %1098 = vrot.lane.b32.xlu0 %v701, 8
    %v1099 = vpop.permute.xlu0 %1098
    %1100 = vrot.lane.b32.xlu0 %v702, 8
    %v1101 = vpop.permute.xlu0 %1100
    %1102 = vrot.lane.b32.xlu0 %v703, 8
    %v1103 = vpop.permute.xlu0 %1102
    %1104 = vrot.lane.b32.xlu0 %v704, 8
    %v1105 = vpop.permute.xlu0 %1104
    %1106 = vrot.lane.b32.xlu0 %v705, 8
    %v1107 = vpop.permute.xlu0 %1106
    %vm1116 = vcmask 126016
    %1117 = vst.msk [vmem:[#allocation3] sm:$0xf] %vm1116, %v1093
    %1118 = vst.msk [vmem:[#allocation3 + $0x4] sm:$0xf] %vm1116, %v1095
    %1119 = vst.msk [vmem:[#allocation3 + $0x8] sm:$0xf] %vm1116, %v1097
    %1120 = vst.msk [vmem:[#allocation3 + $0xc] sm:$0xf] %vm1116, %v1099
    %1121 = vst.msk [vmem:[#allocation3 + $0x10] sm:$0xf] %vm1116, %v1101
    %1122 = vst.msk [vmem:[#allocation3 + $0x14] sm:$0xf] %vm1116, %v1103
    %1123 = vst.msk [vmem:[#allocation3 + $0x18] sm:$0xf] %vm1116, %v1105
    %1124 = vst.msk [vmem:[#allocation3 + $0x1c] sm:$0xf] %vm1116, %v1107
    %v1129 = vunpack.c.l.b16 %v1043
    %v1130 = vunpack.c.h.b16 %v1043
    %v1131 = vunpack.c.l.b16 %v1044
    %v1132 = vunpack.c.h.b16 %v1044
    %v1133 = vunpack.c.l.b16 %v1045
    %v1134 = vunpack.c.h.b16 %v1045
    %v1135 = vunpack.c.l.b16 %v1046
    %v1136 = vunpack.c.h.b16 %v1046
    %v1137 = vpack.c.b16 %v1129, %v1129
    %v1138 = vpack.c.b16 %v1130, %v1130
    %v1139 = vpack.c.b16 %v1131, %v1131
    %v1140 = vpack.c.b16 %v1132, %v1132
    %v1141 = vpack.c.b16 %v1133, %v1133
    %v1142 = vpack.c.b16 %v1134, %v1134
    %v1143 = vpack.c.b16 %v1135, %v1135
    %v1144 = vpack.c.b16 %v1136, %v1136
    %1145 = vrot.lane.b32.xlu0 %v1137, 16
    %v1146 = vpop.permute.xlu0 %1145
    %1147 = vrot.lane.b32.xlu0 %v1138, 16
    %v1148 = vpop.permute.xlu0 %1147
    %1149 = vrot.lane.b32.xlu0 %v1139, 16
    %v1150 = vpop.permute.xlu0 %1149
    %1151 = vrot.lane.b32.xlu0 %v1140, 16
    %v1152 = vpop.permute.xlu0 %1151
    %1153 = vrot.lane.b32.xlu0 %v1141, 16
    %v1154 = vpop.permute.xlu0 %1153
    %1155 = vrot.lane.b32.xlu0 %v1142, 16
    %v1156 = vpop.permute.xlu0 %1155
    %1157 = vrot.lane.b32.xlu0 %v1143, 16
    %v1158 = vpop.permute.xlu0 %1157
    %1159 = vrot.lane.b32.xlu0 %v1144, 16
    %v1160 = vpop.permute.xlu0 %1159
    %vm1169 = vcmask 191616
    %1170 = vst.msk [vmem:[#allocation3] sm:$0xf] %vm1169, %v1146
    %1171 = vst.msk [vmem:[#allocation3 + $0x4] sm:$0xf] %vm1169, %v1148
    %1172 = vst.msk [vmem:[#allocation3 + $0x8] sm:$0xf] %vm1169, %v1150
    %1173 = vst.msk [vmem:[#allocation3 + $0xc] sm:$0xf] %vm1169, %v1152
    %1174 = vst.msk [vmem:[#allocation3 + $0x10] sm:$0xf] %vm1169, %v1154
    %1175 = vst.msk [vmem:[#allocation3 + $0x14] sm:$0xf] %vm1169, %v1156
    %1176 = vst.msk [vmem:[#allocation3 + $0x18] sm:$0xf] %vm1169, %v1158
    %1177 = vst.msk [vmem:[#allocation3 + $0x1c] sm:$0xf] %vm1169, %v1160
    %v1182 = vunpack.c.l.b16 %v1047
    %v1183 = vunpack.c.h.b16 %v1047
    %v1184 = vunpack.c.l.b16 %v1048
    %v1185 = vunpack.c.h.b16 %v1048
    %v1186 = vunpack.c.l.b16 %v1049
    %v1187 = vunpack.c.h.b16 %v1049
    %v1188 = vunpack.c.l.b16 %v1050
    %v1189 = vunpack.c.h.b16 %v1050
    %v1190 = vpack.c.b16 %v1182, %v1182
    %v1191 = vpack.c.b16 %v1183, %v1183
    %v1192 = vpack.c.b16 %v1184, %v1184
    %v1193 = vpack.c.b16 %v1185, %v1185
    %v1194 = vpack.c.b16 %v1186, %v1186
    %v1195 = vpack.c.b16 %v1187, %v1187
    %v1196 = vpack.c.b16 %v1188, %v1188
    %v1197 = vpack.c.b16 %v1189, %v1189
    %1198 = vrot.lane.b32.xlu0 %v1190, 24
    %v1199 = vpop.permute.xlu0 %1198
    %1200 = vrot.lane.b32.xlu0 %v1191, 24
    %v1201 = vpop.permute.xlu0 %1200
    %1202 = vrot.lane.b32.xlu0 %v1192, 24
    %v1203 = vpop.permute.xlu0 %1202
    %1204 = vrot.lane.b32.xlu0 %v1193, 24
    %v1205 = vpop.permute.xlu0 %1204
    %1206 = vrot.lane.b32.xlu0 %v1194, 24
    %v1207 = vpop.permute.xlu0 %1206
    %1208 = vrot.lane.b32.xlu0 %v1195, 24
    %v1209 = vpop.permute.xlu0 %1208
    %1210 = vrot.lane.b32.xlu0 %v1196, 24
    %v1211 = vpop.permute.xlu0 %1210
    %1212 = vrot.lane.b32.xlu0 %v1197, 24
    %v1213 = vpop.permute.xlu0 %1212
    %vm1222 = vcmask 257216
    %1223 = vst.msk [vmem:[#allocation3] sm:$0xf] %vm1222, %v1199
    %1224 = vst.msk [vmem:[#allocation3 + $0x4] sm:$0xf] %vm1222, %v1201
    %1225 = vst.msk [vmem:[#allocation3 + $0x8] sm:$0xf] %vm1222, %v1203
    %1226 = vst.msk [vmem:[#allocation3 + $0xc] sm:$0xf] %vm1222, %v1205
    %1227 = vst.msk [vmem:[#allocation3 + $0x10] sm:$0xf] %vm1222, %v1207
    %1228 = vst.msk [vmem:[#allocation3 + $0x14] sm:$0xf] %vm1222, %v1209
    %1229 = vst.msk [vmem:[#allocation3 + $0x18] sm:$0xf] %vm1222, %v1211
    %1230 = vst.msk [vmem:[#allocation3 + $0x1c] sm:$0xf] %vm1222, %v1213
    %v1235 = vunpack.c.l.b16 %v1051
    %v1236 = vunpack.c.h.b16 %v1051
    %v1237 = vunpack.c.l.b16 %v1052
    %v1238 = vunpack.c.h.b16 %v1052
    %v1239 = vunpack.c.l.b16 %v1053
    %v1240 = vunpack.c.h.b16 %v1053
    %v1241 = vunpack.c.l.b16 %v1054
    %v1242 = vunpack.c.h.b16 %v1054
    %v1243 = vpack.c.b16 %v1235, %v1235
    %v1244 = vpack.c.b16 %v1236, %v1236
    %v1245 = vpack.c.b16 %v1237, %v1237
    %v1246 = vpack.c.b16 %v1238, %v1238
    %v1247 = vpack.c.b16 %v1239, %v1239
    %v1248 = vpack.c.b16 %v1240, %v1240
    %v1249 = vpack.c.b16 %v1241, %v1241
    %v1250 = vpack.c.b16 %v1242, %v1242
    %1251 = vrot.lane.b32.xlu0 %v1243, 32
    %v1252 = vpop.permute.xlu0 %1251
    %1253 = vrot.lane.b32.xlu0 %v1244, 32
    %v1254 = vpop.permute.xlu0 %1253
    %1255 = vrot.lane.b32.xlu0 %v1245, 32
    %v1256 = vpop.permute.xlu0 %1255
    %1257 = vrot.lane.b32.xlu0 %v1246, 32
    %v1258 = vpop.permute.xlu0 %1257
    %1259 = vrot.lane.b32.xlu0 %v1247, 32
    %v1260 = vpop.permute.xlu0 %1259
    %1261 = vrot.lane.b32.xlu0 %v1248, 32
    %v1262 = vpop.permute.xlu0 %1261
    %1263 = vrot.lane.b32.xlu0 %v1249, 32
    %v1264 = vpop.permute.xlu0 %1263
    %1265 = vrot.lane.b32.xlu0 %v1250, 32
    %v1266 = vpop.permute.xlu0 %1265
    %vm1275 = vcmask 322816
    %1276 = vst.msk [vmem:[#allocation3] sm:$0xf] %vm1275, %v1252
    %1277 = vst.msk [vmem:[#allocation3 + $0x4] sm:$0xf] %vm1275, %v1254
    %1278 = vst.msk [vmem:[#allocation3 + $0x8] sm:$0xf] %vm1275, %v1256
    %1279 = vst.msk [vmem:[#allocation3 + $0xc] sm:$0xf] %vm1275, %v1258
    %1280 = vst.msk [vmem:[#allocation3 + $0x10] sm:$0xf] %vm1275, %v1260
    %1281 = vst.msk [vmem:[#allocation3 + $0x14] sm:$0xf] %vm1275, %v1262
    %1282 = vst.msk [vmem:[#allocation3 + $0x18] sm:$0xf] %vm1275, %v1264
    %1283 = vst.msk [vmem:[#allocation3 + $0x1c] sm:$0xf] %vm1275, %v1266
    %v1288 = vunpack.c.l.b16 %v1055
    %v1289 = vunpack.c.h.b16 %v1055
    %v1290 = vunpack.c.l.b16 %v1056
    %v1291 = vunpack.c.h.b16 %v1056
    %v1292 = vunpack.c.l.b16 %v1057
    %v1293 = vunpack.c.h.b16 %v1057
    %v1294 = vunpack.c.l.b16 %v1058
    %v1295 = vunpack.c.h.b16 %v1058
    %v1296 = vpack.c.b16 %v1288, %v1288
    %v1297 = vpack.c.b16 %v1289, %v1289
    %v1298 = vpack.c.b16 %v1290, %v1290
    %v1299 = vpack.c.b16 %v1291, %v1291
    %v1300 = vpack.c.b16 %v1292, %v1292
    %v1301 = vpack.c.b16 %v1293, %v1293
    %v1302 = vpack.c.b16 %v1294, %v1294
    %v1303 = vpack.c.b16 %v1295, %v1295
    %1304 = vrot.lane.b32.xlu0 %v1296, 40
    %v1305 = vpop.permute.xlu0 %1304
    %1306 = vrot.lane.b32.xlu0 %v1297, 40
    %v1307 = vpop.permute.xlu0 %1306
    %1308 = vrot.lane.b32.xlu0 %v1298, 40
    %v1309 = vpop.permute.xlu0 %1308
    %1310 = vrot.lane.b32.xlu0 %v1299, 40
    %v1311 = vpop.permute.xlu0 %1310
    %1312 = vrot.lane.b32.xlu0 %v1300, 40
    %v1313 = vpop.permute.xlu0 %1312
    %1314 = vrot.lane.b32.xlu0 %v1301, 40
    %v1315 = vpop.permute.xlu0 %1314
    %1316 = vrot.lane.b32.xlu0 %v1302, 40
    %v1317 = vpop.permute.xlu0 %1316
    %1318 = vrot.lane.b32.xlu0 %v1303, 40
    %v1319 = vpop.permute.xlu0 %1318
    %vm1328 = vcmask 388416
    %1329 = vst.msk [vmem:[#allocation3] sm:$0xf] %vm1328, %v1305
    %1330 = vst.msk [vmem:[#allocation3 + $0x4] sm:$0xf] %vm1328, %v1307
    %1331 = vst.msk [vmem:[#allocation3 + $0x8] sm:$0xf] %vm1328, %v1309
    %1332 = vst.msk [vmem:[#allocation3 + $0xc] sm:$0xf] %vm1328, %v1311
    %1333 = vst.msk [vmem:[#allocation3 + $0x10] sm:$0xf] %vm1328, %v1313
    %1334 = vst.msk [vmem:[#allocation3 + $0x14] sm:$0xf] %vm1328, %v1315
    %1335 = vst.msk [vmem:[#allocation3 + $0x18] sm:$0xf] %vm1328, %v1317
    %1336 = vst.msk [vmem:[#allocation3 + $0x1c] sm:$0xf] %vm1328, %v1319
    %v1341 = vunpack.c.l.b16 %v1059
    %v1342 = vunpack.c.h.b16 %v1059
    %v1343 = vunpack.c.l.b16 %v1060
    %v1344 = vunpack.c.h.b16 %v1060
    %v1345 = vunpack.c.l.b16 %v1061
    %v1346 = vunpack.c.h.b16 %v1061
    %v1347 = vunpack.c.l.b16 %v1062
    %v1348 = vunpack.c.h.b16 %v1062
    %v1349 = vpack.c.b16 %v1341, %v1341
    %v1350 = vpack.c.b16 %v1342, %v1342
    %v1351 = vpack.c.b16 %v1343, %v1343
    %v1352 = vpack.c.b16 %v1344, %v1344
    %v1353 = vpack.c.b16 %v1345, %v1345
    %v1354 = vpack.c.b16 %v1346, %v1346
    %v1355 = vpack.c.b16 %v1347, %v1347
    %v1356 = vpack.c.b16 %v1348, %v1348
    %1357 = vrot.lane.b32.xlu0 %v1349, 48
    %v1358 = vpop.permute.xlu0 %1357
    %1359 = vrot.lane.b32.xlu0 %v1350, 48
    %v1360 = vpop.permute.xlu0 %1359
    %1361 = vrot.lane.b32.xlu0 %v1351, 48
    %v1362 = vpop.permute.xlu0 %1361
    %1363 = vrot.lane.b32.xlu0 %v1352, 48
    %v1364 = vpop.permute.xlu0 %1363
    %1365 = vrot.lane.b32.xlu0 %v1353, 48
    %v1366 = vpop.permute.xlu0 %1365
    %1367 = vrot.lane.b32.xlu0 %v1354, 48
    %v1368 = vpop.permute.xlu0 %1367
    %1369 = vrot.lane.b32.xlu0 %v1355, 48
    %v1370 = vpop.permute.xlu0 %1369
    %1371 = vrot.lane.b32.xlu0 %v1356, 48
    %v1372 = vpop.permute.xlu0 %1371
    %vm1381 = vcmask 454016
    %1382 = vst.msk [vmem:[#allocation3] sm:$0xf] %vm1381, %v1358
    %1383 = vst.msk [vmem:[#allocation3 + $0x4] sm:$0xf] %vm1381, %v1360
    %1384 = vst.msk [vmem:[#allocation3 + $0x8] sm:$0xf] %vm1381, %v1362
    %1385 = vst.msk [vmem:[#allocation3 + $0xc] sm:$0xf] %vm1381, %v1364
    %1386 = vst.msk [vmem:[#allocation3 + $0x10] sm:$0xf] %vm1381, %v1366
    %1387 = vst.msk [vmem:[#allocation3 + $0x14] sm:$0xf] %vm1381, %v1368
    %1388 = vst.msk [vmem:[#allocation3 + $0x18] sm:$0xf] %vm1381, %v1370
    %1389 = vst.msk [vmem:[#allocation3 + $0x1c] sm:$0xf] %vm1381, %v1372
    %v1394 = vunpack.c.l.b16 %v1063
    %v1395 = vunpack.c.h.b16 %v1063
    %v1396 = vunpack.c.l.b16 %v1064
    %v1397 = vunpack.c.h.b16 %v1064
    %v1398 = vunpack.c.l.b16 %v1065
    %v1399 = vunpack.c.h.b16 %v1065
    %v1400 = vunpack.c.l.b16 %v1066
    %v1401 = vunpack.c.h.b16 %v1066
    %v1402 = vpack.c.b16 %v1394, %v1394
    %v1403 = vpack.c.b16 %v1395, %v1395
    %v1404 = vpack.c.b16 %v1396, %v1396
    %v1405 = vpack.c.b16 %v1397, %v1397
    %v1406 = vpack.c.b16 %v1398, %v1398
    %v1407 = vpack.c.b16 %v1399, %v1399
    %v1408 = vpack.c.b16 %v1400, %v1400
    %v1409 = vpack.c.b16 %v1401, %v1401
    %1410 = vrot.lane.b32.xlu0 %v1402, 56
    %v1411 = vpop.permute.xlu0 %1410
    %1412 = vrot.lane.b32.xlu0 %v1403, 56
    %v1413 = vpop.permute.xlu0 %1412
    %1414 = vrot.lane.b32.xlu0 %v1404, 56
    %v1415 = vpop.permute.xlu0 %1414
    %1416 = vrot.lane.b32.xlu0 %v1405, 56
    %v1417 = vpop.permute.xlu0 %1416
    %1418 = vrot.lane.b32.xlu0 %v1406, 56
    %v1419 = vpop.permute.xlu0 %1418
    %1420 = vrot.lane.b32.xlu0 %v1407, 56
    %v1421 = vpop.permute.xlu0 %1420
    %1422 = vrot.lane.b32.xlu0 %v1408, 56
    %v1423 = vpop.permute.xlu0 %1422
    %1424 = vrot.lane.b32.xlu0 %v1409, 56
    %v1425 = vpop.permute.xlu0 %1424
    %vm1434 = vcmask 519616
    %1435 = vst.msk [vmem:[#allocation3] sm:$0xf] %vm1434, %v1411
    %1436 = vst.msk [vmem:[#allocation3 + $0x4] sm:$0xf] %vm1434, %v1413
    %1437 = vst.msk [vmem:[#allocation3 + $0x8] sm:$0xf] %vm1434, %v1415
    %1438 = vst.msk [vmem:[#allocation3 + $0xc] sm:$0xf] %vm1434, %v1417
    %1439 = vst.msk [vmem:[#allocation3 + $0x10] sm:$0xf] %vm1434, %v1419
    %1440 = vst.msk [vmem:[#allocation3 + $0x14] sm:$0xf] %vm1434, %v1421
    %1441 = vst.msk [vmem:[#allocation3 + $0x18] sm:$0xf] %vm1434, %v1423
    %1442 = vst.msk [vmem:[#allocation3 + $0x1c] sm:$0xf] %vm1434, %v1425
    %v1447 = vunpack.c.l.b16 %v1067
    %v1448 = vunpack.c.h.b16 %v1067
    %v1449 = vunpack.c.l.b16 %v1068
    %v1450 = vunpack.c.h.b16 %v1068
    %v1451 = vunpack.c.l.b16 %v1069
    %v1452 = vunpack.c.h.b16 %v1069
    %v1453 = vunpack.c.l.b16 %v1070
    %v1454 = vunpack.c.h.b16 %v1070
    %v1455 = vpack.c.b16 %v1447, %v1447
    %v1456 = vpack.c.b16 %v1448, %v1448
    %v1457 = vpack.c.b16 %v1449, %v1449
    %v1458 = vpack.c.b16 %v1450, %v1450
    %v1459 = vpack.c.b16 %v1451, %v1451
    %v1460 = vpack.c.b16 %v1452, %v1452
    %v1461 = vpack.c.b16 %v1453, %v1453
    %v1462 = vpack.c.b16 %v1454, %v1454
    %1463 = vrot.lane.b32.xlu0 %v1455, 64
    %v1464 = vpop.permute.xlu0 %1463
    %1465 = vrot.lane.b32.xlu0 %v1456, 64
    %v1466 = vpop.permute.xlu0 %1465
    %1467 = vrot.lane.b32.xlu0 %v1457, 64
    %v1468 = vpop.permute.xlu0 %1467
    %1469 = vrot.lane.b32.xlu0 %v1458, 64
    %v1470 = vpop.permute.xlu0 %1469
    %1471 = vrot.lane.b32.xlu0 %v1459, 64
    %v1472 = vpop.permute.xlu0 %1471
    %1473 = vrot.lane.b32.xlu0 %v1460, 64
    %v1474 = vpop.permute.xlu0 %1473
    %1475 = vrot.lane.b32.xlu0 %v1461, 64
    %v1476 = vpop.permute.xlu0 %1475
    %1477 = vrot.lane.b32.xlu0 %v1462, 64
    %v1478 = vpop.permute.xlu0 %1477
    %vm1487 = vcmask 585216
    %1488 = vst.msk [vmem:[#allocation3] sm:$0xf] %vm1487, %v1464
    %1489 = vst.msk [vmem:[#allocation3 + $0x4] sm:$0xf] %vm1487, %v1466
    %1490 = vst.msk [vmem:[#allocation3 + $0x8] sm:$0xf] %vm1487, %v1468
    %1491 = vst.msk [vmem:[#allocation3 + $0xc] sm:$0xf] %vm1487, %v1470
    %1492 = vst.msk [vmem:[#allocation3 + $0x10] sm:$0xf] %vm1487, %v1472
    %1493 = vst.msk [vmem:[#allocation3 + $0x14] sm:$0xf] %vm1487, %v1474
    %1494 = vst.msk [vmem:[#allocation3 + $0x18] sm:$0xf] %vm1487, %v1476
    %1495 = vst.msk [vmem:[#allocation3 + $0x1c] sm:$0xf] %vm1487, %v1478
    %v1500 = vunpack.c.l.b16 %v1071
    %v1501 = vunpack.c.h.b16 %v1071
    %v1502 = vunpack.c.l.b16 %v1072
    %v1503 = vunpack.c.h.b16 %v1072
    %v1504 = vunpack.c.l.b16 %v1073
    %v1505 = vunpack.c.h.b16 %v1073
    %v1506 = vunpack.c.l.b16 %v1074
    %v1507 = vunpack.c.h.b16 %v1074
    %v1508 = vpack.c.b16 %v1500, %v1500
    %v1509 = vpack.c.b16 %v1501, %v1501
    %v1510 = vpack.c.b16 %v1502, %v1502
    %v1511 = vpack.c.b16 %v1503, %v1503
    %v1512 = vpack.c.b16 %v1504, %v1504
    %v1513 = vpack.c.b16 %v1505, %v1505
    %v1514 = vpack.c.b16 %v1506, %v1506
    %v1515 = vpack.c.b16 %v1507, %v1507
    %1516 = vrot.lane.b32.xlu0 %v1508, 72
    %v1517 = vpop.permute.xlu0 %1516
    %1518 = vrot.lane.b32.xlu0 %v1509, 72
    %v1519 = vpop.permute.xlu0 %1518
    %1520 = vrot.lane.b32.xlu0 %v1510, 72
    %v1521 = vpop.permute.xlu0 %1520
    %1522 = vrot.lane.b32.xlu0 %v1511, 72
    %v1523 = vpop.permute.xlu0 %1522
    %1524 = vrot.lane.b32.xlu0 %v1512, 72
    %v1525 = vpop.permute.xlu0 %1524
    %1526 = vrot.lane.b32.xlu0 %v1513, 72
    %v1527 = vpop.permute.xlu0 %1526
    %1528 = vrot.lane.b32.xlu0 %v1514, 72
    %v1529 = vpop.permute.xlu0 %1528
    %1530 = vrot.lane.b32.xlu0 %v1515, 72
    %v1531 = vpop.permute.xlu0 %1530
    %vm1540 = vcmask 650816
    %1541 = vst.msk [vmem:[#allocation3] sm:$0xf] %vm1540, %v1517
    %1542 = vst.msk [vmem:[#allocation3 + $0x4] sm:$0xf] %vm1540, %v1519
    %1543 = vst.msk [vmem:[#allocation3 + $0x8] sm:$0xf] %vm1540, %v1521
    %1544 = vst.msk [vmem:[#allocation3 + $0xc] sm:$0xf] %vm1540, %v1523
    %1545 = vst.msk [vmem:[#allocation3 + $0x10] sm:$0xf] %vm1540, %v1525
    %1546 = vst.msk [vmem:[#allocation3 + $0x14] sm:$0xf] %vm1540, %v1527
    %1547 = vst.msk [vmem:[#allocation3 + $0x18] sm:$0xf] %vm1540, %v1529
    %1548 = vst.msk [vmem:[#allocation3 + $0x1c] sm:$0xf] %vm1540, %v1531
    %v1549 = vld [vmem:[#allocation3] sm:$0xf]
    %v1550 = vld [vmem:[#allocation3 + $0x4] sm:$0xf]
    %v1551 = vld [vmem:[#allocation3 + $0x8] sm:$0xf]
    %v1552 = vld [vmem:[#allocation3 + $0xc] sm:$0xf]
    %v1553 = vld [vmem:[#allocation3 + $0x10] sm:$0xf]
    %v1554 = vld [vmem:[#allocation3 + $0x14] sm:$0xf]
    %v1555 = vld [vmem:[#allocation3 + $0x18] sm:$0xf]
    %v1556 = vld [vmem:[#allocation3 + $0x1c] sm:$0xf]
    %v1557 = vld [vmem:[#allocation10] sm:$0xf]
    %v1558 = vld [vmem:[#allocation10 + $0x4] sm:$0xf]
    %v1559 = vld [vmem:[#allocation10 + $0x8] sm:$0xf]
    %v1560 = vld [vmem:[#allocation10 + $0xc] sm:$0xf]
    %v1561 = vld [vmem:[#allocation10 + $0x10] sm:$0xf]
    %v1562 = vld [vmem:[#allocation10 + $0x14] sm:$0xf]
    %v1563 = vld [vmem:[#allocation10 + $0x18] sm:$0xf]
    %v1564 = vld [vmem:[#allocation10 + $0x1c] sm:$0xf]
    %v1565 = vld [vmem:[#allocation10 + $0x20] sm:$0xf]
    %v1566 = vld [vmem:[#allocation10 + $0x24] sm:$0xf]
    %v1567 = vld [vmem:[#allocation10 + $0x28] sm:$0xf]
    %v1568 = vld [vmem:[#allocation10 + $0x2c] sm:$0xf]
    %v1569 = vld [vmem:[#allocation10 + $0x30] sm:$0xf]
    %v1570 = vld [vmem:[#allocation10 + $0x34] sm:$0xf]
    %v1571 = vld [vmem:[#allocation10 + $0x38] sm:$0xf]
    %v1572 = vld [vmem:[#allocation10 + $0x3c] sm:$0xf]
    %v1573 = vld [vmem:[#allocation11] sm:$0x1]
    %v1575 = vlaneseq
    %v1576 = vshrl.u32 %v1575, 7
    %v1577 = vsub.s32 0, %v1576
    %v1578 = vrot.slane %v1573, %v1577
    %v1588 = vunpack.c.l.b16 %v1549
    %v1589 = vunpack.c.l.b16 %v1550
    %v1590 = vunpack.c.l.b16 %v1551
    %v1591 = vunpack.c.l.b16 %v1552
    %v1592 = vunpack.c.l.b16 %v1553
    %v1593 = vunpack.c.l.b16 %v1554
    %v1594 = vunpack.c.l.b16 %v1555
    %v1595 = vunpack.c.l.b16 %v1556
    %v1596 = vpack.c.b16 %v1589, %v1588
    %v1597 = vpack.c.b16 %v1591, %v1590
    %v1598 = vpack.c.b16 %v1593, %v1592
    %v1599 = vpack.c.b16 %v1595, %v1594
    %v1620 = vunpack.c.l.b16 %v1557
    %v1621 = vunpack.c.l.b16 %v1558
    %v1622 = vunpack.c.l.b16 %v1559
    %v1623 = vunpack.c.l.b16 %v1560
    %v1624 = vunpack.c.l.b16 %v1561
    %v1625 = vunpack.c.l.b16 %v1562
    %v1626 = vunpack.c.l.b16 %v1563
    %v1627 = vunpack.c.l.b16 %v1564
    %v1628 = vunpack.c.l.b16 %v1565
    %v1629 = vunpack.c.l.b16 %v1566
    %v1630 = vunpack.c.l.b16 %v1567
    %v1631 = vunpack.c.l.b16 %v1568
    %v1632 = vunpack.c.l.b16 %v1569
    %v1633 = vunpack.c.l.b16 %v1570
    %v1634 = vunpack.c.l.b16 %v1571
    %v1635 = vunpack.c.l.b16 %v1572
    %v1636 = vpack.c.b16 %v1621, %v1620
    %v1637 = vpack.c.b16 %v1623, %v1622
    %v1638 = vpack.c.b16 %v1625, %v1624
    %v1639 = vpack.c.b16 %v1627, %v1626
    %v1640 = vpack.c.b16 %v1629, %v1628
    %v1641 = vpack.c.b16 %v1631, %v1630
    %v1642 = vpack.c.b16 %v1633, %v1632
    %v1643 = vpack.c.b16 %v1635, %v1634
    %1652 = vmatprep.subr.bf16.mxu0 0
    %1653 = vmatpush1.bf16.msra.mxu0 %v1643
    %1654 = vmatprep.subr.bf16.mxu0 0
    %1655 = vmatpush1.bf16.msra.mxu0 %v1642
    %1656 = vmatprep.subr.bf16.mxu0 0
    %1657 = vmatpush1.bf16.msra.mxu0 %v1641
    %1658 = vmatprep.subr.bf16.mxu0 0
    %1659 = vmatpush1.bf16.msra.mxu0 %v1640
    %1660 = vmatprep.subr.bf16.mxu0 0
    %1661 = vmatpush1.bf16.msra.mxu0 %v1639
    %1662 = vmatprep.subr.bf16.mxu0 0
    %1663 = vmatpush1.bf16.msra.mxu0 %v1638
    %1664 = vmatprep.subr.bf16.mxu0 0
    %1665 = vmatpush1.bf16.msra.mxu0 %v1637
    %1666 = vmatprep.subr.bf16.mxu0 0
    %1667 = vmatpush1.bf16.msra.mxu0 %v1636
    %1668 = vmatprep.subr.bf16.mxu0 0
    %1669 = vmatpush2.bf16.msra.mxu0 0
    %1670 = vmatprep.subr.bf16.mxu0 0
    %1671 = vmatpush2.bf16.msra.mxu0 0
    %1672 = vmatprep.subr.bf16.mxu0 0
    %1673 = vmatpush2.bf16.msra.mxu0 0
    %1674 = vmatprep.subr.bf16.mxu0 0
    %1675 = vmatpush2.bf16.msra.mxu0 0
    %1676 = vmatprep.subr.bf16.mxu0 0
    %1677 = vmatpush2.bf16.msra.mxu0 0
    %1678 = vmatprep.subr.bf16.mxu0 0
    %1679 = vmatpush2.bf16.msra.mxu0 0
    %1680 = vmatprep.subr.bf16.mxu0 0
    %1681 = vmatpush2.bf16.msra.mxu0 0
    %1682 = vmatprep.subr.bf16.mxu0 0
    %1683 = vmatpush2.bf16.msra.mxu0 0
    %1684 = vmatprep.mubr.bf16.mxu0 0
    %1685 = vmatmul.mubr.bf16.gmra.mxu0 %v1596
    %v1686 = vpop.f32.mrf.mxu0
    %v1687 = vadd.f32 %v1578, %v1686
    %v1688 = vpop.f32.mrf.mxu0
    %v1689 = vpop.f32.mrf.mxu0
    %v1690 = vadd.f32 %v1578, %v1689
    %v1691 = vpop.f32.mrf.mxu0
    %1692 = vmatprep.mubr.bf16.mxu0 0
    %1693 = vmatmul.mubr.bf16.gmra.mxu0 %v1597
    %v1694 = vpop.f32.mrf.mxu0
    %v1695 = vadd.f32 %v1578, %v1694
    %v1696 = vpop.f32.mrf.mxu0
    %v1697 = vpop.f32.mrf.mxu0
    %v1698 = vadd.f32 %v1578, %v1697
    %v1699 = vpop.f32.mrf.mxu0
    %1700 = vmatprep.mubr.bf16.mxu0 0
    %1701 = vmatmul.mubr.bf16.gmra.mxu0 %v1598
    %v1702 = vpop.f32.mrf.mxu0
    %v1703 = vadd.f32 %v1578, %v1702
    %v1704 = vpop.f32.mrf.mxu0
    %v1705 = vpop.f32.mrf.mxu0
    %v1706 = vadd.f32 %v1578, %v1705
    %v1707 = vpop.f32.mrf.mxu0
    %1708 = vmatprep.mubr.bf16.mxu0 0
    %1709 = vmatmul.mubr.bf16.gmra.mxu0 %v1599
    %v1710 = vpop.f32.mrf.mxu0
    %v1711 = vadd.f32 %v1578, %v1710
    %v1712 = vpop.f32.mrf.mxu0
    %v1713 = vpop.f32.mrf.mxu0
    %v1714 = vadd.f32 %v1578, %v1713
    %v1715 = vpop.f32.mrf.mxu0
    %1716 = vdwg.mxu0
    %v1717 = vmax.f32 %v1687, 0.0
    %v1718 = vmax.f32 %v1690, 0.0
    %v1719 = vmax.f32 %v1695, 0.0
    %v1720 = vmax.f32 %v1698, 0.0
    %v1721 = vmax.f32 %v1703, 0.0
    %v1722 = vmax.f32 %v1706, 0.0
    %v1723 = vmax.f32 %v1711, 0.0
    %v1724 = vmax.f32 %v1714, 0.0
    %v1725 = vpack.c.bf16 %v1718, %v1717
    %v1726 = vpack.c.bf16 %v1720, %v1719
    %v1727 = vpack.c.bf16 %v1722, %v1721
    %v1728 = vpack.c.bf16 %v1724, %v1723
    %1729 = vmatprep.subr.bf16.mxu0 0
    %1730 = vmatpush1.bf16.msra.mxu0 %v1728
    %1731 = vmatprep.subr.bf16.mxu0 0
    %1732 = vmatpush1.bf16.msra.mxu0 %v1727
    %1733 = vmatprep.subr.bf16.mxu0 0
    %1734 = vmatpush1.bf16.msra.mxu0 %v1726
    %1735 = vmatprep.subr.bf16.mxu0 0
    %1736 = vmatpush1.bf16.msra.mxu0 %v1725
    %1737 = vmatprep.subr.bf16.mxu0 0
    %1738 = vmatpush1.bf16.msra.mxu0 %v1728
    %1739 = vmatprep.subr.bf16.mxu0 0
    %1740 = vmatpush1.bf16.msra.mxu0 %v1727
    %1741 = vmatprep.subr.bf16.mxu0 0
    %1742 = vmatpush1.bf16.msra.mxu0 %v1726
    %1743 = vmatprep.subr.bf16.mxu0 0
    %1744 = vmatpush1.bf16.msra.mxu0 %v1725
    %1745 = vmatprep.subr.bf16.mxu0 0
    %1746 = vmatpush2.bf16.msra.mxu0 0
    %1747 = vmatprep.subr.bf16.mxu0 0
    %1748 = vmatpush2.bf16.msra.mxu0 0
    %1749 = vmatprep.subr.bf16.mxu0 0
    %1750 = vmatpush2.bf16.msra.mxu0 0
    %1751 = vmatprep.subr.bf16.mxu0 0
    %1752 = vmatpush2.bf16.msra.mxu0 0
    %1753 = vmatprep.subr.bf16.mxu0 0
    %1754 = vmatpush2.bf16.msra.mxu0 0
    %1755 = vmatprep.subr.bf16.mxu0 0
    %1756 = vmatpush2.bf16.msra.mxu0 0
    %1757 = vmatprep.subr.bf16.mxu0 0
    %1758 = vmatpush2.bf16.msra.mxu0 0
    %1759 = vmatprep.subr.bf16.mxu0 0
    %1760 = vmatpush2.bf16.msra.mxu0 0
    %1761 = vmatprep.mubr.bf16.mxu0 0
    %1762 = vmatmul.mubr.bf16.gmra.mxu0 %v311
    %v1763 = vpop.f32.mrf.mxu0
    %v1764 = vadd.f32 0.0, %v1763
    %v1765 = vpop.f32.mrf.mxu0
    %v1766 = vpop.f32.mrf.mxu0
    %v1767 = vadd.f32 0.0, %v1766
    %v1768 = vpop.f32.mrf.mxu0
    %1769 = vmatprep.mubr.bf16.mxu0 0
    %1770 = vmatmul.mubr.bf16.gmra.mxu0 %v312
    %v1771 = vpop.f32.mrf.mxu0
    %v1772 = vadd.f32 0.0, %v1771
    %v1773 = vpop.f32.mrf.mxu0
    %v1774 = vpop.f32.mrf.mxu0
    %v1775 = vadd.f32 0.0, %v1774
    %v1776 = vpop.f32.mrf.mxu0
    %1777 = vmatprep.mubr.bf16.mxu0 0
    %1778 = vmatmul.mubr.bf16.gmra.mxu0 %v313
    %v1779 = vpop.f32.mrf.mxu0
    %v1780 = vadd.f32 0.0, %v1779
    %v1781 = vpop.f32.mrf.mxu0
    %v1782 = vpop.f32.mrf.mxu0
    %v1783 = vadd.f32 0.0, %v1782
    %v1784 = vpop.f32.mrf.mxu0
    %1785 = vmatprep.mubr.bf16.mxu0 0
    %1786 = vmatmul.mubr.bf16.gmra.mxu0 %v314
    %v1787 = vpop.f32.mrf.mxu0
    %v1788 = vadd.f32 0.0, %v1787
    %v1789 = vpop.f32.mrf.mxu0
    %v1790 = vpop.f32.mrf.mxu0
    %v1791 = vadd.f32 0.0, %v1790
    %v1792 = vpop.f32.mrf.mxu0
    %1793 = vmatprep.mubr.bf16.mxu0 0
    %1794 = vmatmul.mubr.bf16.gmra.mxu0 %v315
    %v1795 = vpop.f32.mrf.mxu0
    %v1796 = vadd.f32 0.0, %v1795
    %v1797 = vpop.f32.mrf.mxu0
    %v1798 = vpop.f32.mrf.mxu0
    %v1799 = vadd.f32 0.0, %v1798
    %v1800 = vpop.f32.mrf.mxu0
    %1801 = vmatprep.mubr.bf16.mxu0 0
    %1802 = vmatmul.mubr.bf16.gmra.mxu0 %v316
    %v1803 = vpop.f32.mrf.mxu0
    %v1804 = vadd.f32 0.0, %v1803
    %v1805 = vpop.f32.mrf.mxu0
    %v1806 = vpop.f32.mrf.mxu0
    %v1807 = vadd.f32 0.0, %v1806
    %v1808 = vpop.f32.mrf.mxu0
    %1809 = vmatprep.mubr.bf16.mxu0 0
    %1810 = vmatmul.mubr.bf16.gmra.mxu0 %v317
    %v1811 = vpop.f32.mrf.mxu0
    %v1812 = vadd.f32 0.0, %v1811
    %v1813 = vpop.f32.mrf.mxu0
    %v1814 = vpop.f32.mrf.mxu0
    %v1815 = vadd.f32 0.0, %v1814
    %v1816 = vpop.f32.mrf.mxu0
    %1817 = vmatprep.mubr.bf16.mxu0 0
    %1818 = vmatmul.mubr.bf16.gmra.mxu0 %v318
    %v1819 = vpop.f32.mrf.mxu0
    %v1820 = vadd.f32 0.0, %v1819
    %v1821 = vpop.f32.mrf.mxu0
    %v1822 = vpop.f32.mrf.mxu0
    %v1823 = vadd.f32 0.0, %v1822
    %v1824 = vpop.f32.mrf.mxu0
    %1825 = vmatprep.mubr.bf16.mxu0 0
    %1826 = vmatmul.mubr.bf16.gmra.mxu0 %v440
    %v1827 = vpop.f32.mrf.mxu0
    %v1828 = vadd.f32 0.0, %v1827
    %v1829 = vpop.f32.mrf.mxu0
    %v1830 = vpop.f32.mrf.mxu0
    %v1831 = vadd.f32 0.0, %v1830
    %v1832 = vpop.f32.mrf.mxu0
    %1833 = vmatprep.mubr.bf16.mxu0 0
    %1834 = vmatmul.mubr.bf16.gmra.mxu0 %v441
    %v1835 = vpop.f32.mrf.mxu0
    %v1836 = vadd.f32 0.0, %v1835
    %v1837 = vpop.f32.mrf.mxu0
    %v1838 = vpop.f32.mrf.mxu0
    %v1839 = vadd.f32 0.0, %v1838
    %v1840 = vpop.f32.mrf.mxu0
    %1841 = vmatprep.mubr.bf16.mxu0 0
    %1842 = vmatmul.mubr.bf16.gmra.mxu0 %v442
    %v1843 = vpop.f32.mrf.mxu0
    %v1844 = vadd.f32 0.0, %v1843
    %v1845 = vpop.f32.mrf.mxu0
    %v1846 = vpop.f32.mrf.mxu0
    %v1847 = vadd.f32 0.0, %v1846
    %v1848 = vpop.f32.mrf.mxu0
    %1849 = vmatprep.mubr.bf16.mxu0 0
    %1850 = vmatmul.mubr.bf16.gmra.mxu0 %v443
    %v1851 = vpop.f32.mrf.mxu0
    %v1852 = vadd.f32 0.0, %v1851
    %v1853 = vpop.f32.mrf.mxu0
    %v1854 = vpop.f32.mrf.mxu0
    %v1855 = vadd.f32 0.0, %v1854
    %v1856 = vpop.f32.mrf.mxu0
    %1857 = vmatprep.mubr.bf16.mxu0 0
    %1858 = vmatmul.mubr.bf16.gmra.mxu0 %v444
    %v1859 = vpop.f32.mrf.mxu0
    %v1860 = vadd.f32 0.0, %v1859
    %v1861 = vpop.f32.mrf.mxu0
    %v1862 = vpop.f32.mrf.mxu0
    %v1863 = vadd.f32 0.0, %v1862
    %v1864 = vpop.f32.mrf.mxu0
    %1865 = vmatprep.mubr.bf16.mxu0 0
    %1866 = vmatmul.mubr.bf16.gmra.mxu0 %v445
    %v1867 = vpop.f32.mrf.mxu0
    %v1868 = vadd.f32 0.0, %v1867
    %v1869 = vpop.f32.mrf.mxu0
    %v1870 = vpop.f32.mrf.mxu0
    %v1871 = vadd.f32 0.0, %v1870
    %v1872 = vpop.f32.mrf.mxu0
    %1873 = vmatprep.mubr.bf16.mxu0 0
    %1874 = vmatmul.mubr.bf16.gmra.mxu0 %v446
    %v1875 = vpop.f32.mrf.mxu0
    %v1876 = vadd.f32 0.0, %v1875
    %v1877 = vpop.f32.mrf.mxu0
    %v1878 = vpop.f32.mrf.mxu0
    %v1879 = vadd.f32 0.0, %v1878
    %v1880 = vpop.f32.mrf.mxu0
    %1881 = vmatprep.mubr.bf16.mxu0 0
    %1882 = vmatmul.mubr.bf16.gmra.mxu0 %v447
    %v1883 = vpop.f32.mrf.mxu0
    %v1884 = vadd.f32 0.0, %v1883
    %v1885 = vpop.f32.mrf.mxu0
    %v1886 = vpop.f32.mrf.mxu0
    %v1887 = vadd.f32 0.0, %v1886
    %v1888 = vpop.f32.mrf.mxu0
    %1889 = vmatprep.mubr.bf16.mxu0 0
    %1890 = vmatmul.mubr.bf16.gmra.mxu0 %v561
    %v1891 = vpop.f32.mrf.mxu0
    %v1892 = vadd.f32 0.0, %v1891
    %v1893 = vpop.f32.mrf.mxu0
    %v1894 = vpop.f32.mrf.mxu0
    %v1895 = vadd.f32 0.0, %v1894
    %v1896 = vpop.f32.mrf.mxu0
    %1897 = vmatprep.mubr.bf16.mxu0 0
    %1898 = vmatmul.mubr.bf16.gmra.mxu0 %v562
    %v1899 = vpop.f32.mrf.mxu0
    %v1900 = vadd.f32 0.0, %v1899
    %v1901 = vpop.f32.mrf.mxu0
    %v1902 = vpop.f32.mrf.mxu0
    %v1903 = vadd.f32 0.0, %v1902
    %v1904 = vpop.f32.mrf.mxu0
    %1905 = vmatprep.mubr.bf16.mxu0 0
    %1906 = vmatmul.mubr.bf16.gmra.mxu0 %v563
    %v1907 = vpop.f32.mrf.mxu0
    %v1908 = vadd.f32 0.0, %v1907
    %v1909 = vpop.f32.mrf.mxu0
    %v1910 = vpop.f32.mrf.mxu0
    %v1911 = vadd.f32 0.0, %v1910
    %v1912 = vpop.f32.mrf.mxu0
    %1913 = vmatprep.mubr.bf16.mxu0 0
    %1914 = vmatmul.mubr.bf16.gmra.mxu0 %v564
    %v1915 = vpop.f32.mrf.mxu0
    %v1916 = vadd.f32 0.0, %v1915
    %v1917 = vpop.f32.mrf.mxu0
    %v1918 = vpop.f32.mrf.mxu0
    %v1919 = vadd.f32 0.0, %v1918
    %v1920 = vpop.f32.mrf.mxu0
    %1921 = vmatprep.mubr.bf16.mxu0 0
    %1922 = vmatmul.mubr.bf16.gmra.mxu0 %v565
    %v1923 = vpop.f32.mrf.mxu0
    %v1924 = vadd.f32 0.0, %v1923
    %v1925 = vpop.f32.mrf.mxu0
    %v1926 = vpop.f32.mrf.mxu0
    %v1927 = vadd.f32 0.0, %v1926
    %v1928 = vpop.f32.mrf.mxu0
    %1929 = vmatprep.mubr.bf16.mxu0 0
    %1930 = vmatmul.mubr.bf16.gmra.mxu0 %v566
    %v1931 = vpop.f32.mrf.mxu0
    %v1932 = vadd.f32 0.0, %v1931
    %v1933 = vpop.f32.mrf.mxu0
    %v1934 = vpop.f32.mrf.mxu0
    %v1935 = vadd.f32 0.0, %v1934
    %v1936 = vpop.f32.mrf.mxu0
    %1937 = vmatprep.mubr.bf16.mxu0 0
    %1938 = vmatmul.mubr.bf16.gmra.mxu0 %v567
    %v1939 = vpop.f32.mrf.mxu0
    %v1940 = vadd.f32 0.0, %v1939
    %v1941 = vpop.f32.mrf.mxu0
    %v1942 = vpop.f32.mrf.mxu0
    %v1943 = vadd.f32 0.0, %v1942
    %v1944 = vpop.f32.mrf.mxu0
    %1945 = vmatprep.mubr.bf16.mxu0 0
    %1946 = vmatmul.mubr.bf16.gmra.mxu0 %v568
    %v1947 = vpop.f32.mrf.mxu0
    %v1948 = vadd.f32 0.0, %v1947
    %v1949 = vpop.f32.mrf.mxu0
    %v1950 = vpop.f32.mrf.mxu0
    %v1951 = vadd.f32 0.0, %v1950
    %v1952 = vpop.f32.mrf.mxu0
    %1953 = vmatprep.mubr.bf16.mxu0 0
    %1954 = vmatmul.mubr.bf16.gmra.mxu0 %v682
    %v1955 = vpop.f32.mrf.mxu0
    %v1956 = vadd.f32 0.0, %v1955
    %v1957 = vpop.f32.mrf.mxu0
    %v1958 = vpop.f32.mrf.mxu0
    %v1959 = vadd.f32 0.0, %v1958
    %v1960 = vpop.f32.mrf.mxu0
    %1961 = vmatprep.mubr.bf16.mxu0 0
    %1962 = vmatmul.mubr.bf16.gmra.mxu0 %v683
    %v1963 = vpop.f32.mrf.mxu0
    %v1964 = vadd.f32 0.0, %v1963
    %v1965 = vpop.f32.mrf.mxu0
    %v1966 = vpop.f32.mrf.mxu0
    %v1967 = vadd.f32 0.0, %v1966
    %v1968 = vpop.f32.mrf.mxu0
    %1969 = vmatprep.mubr.bf16.mxu0 0
    %1970 = vmatmul.mubr.bf16.gmra.mxu0 %v684
    %v1971 = vpop.f32.mrf.mxu0
    %v1972 = vadd.f32 0.0, %v1971
    %v1973 = vpop.f32.mrf.mxu0
    %v1974 = vpop.f32.mrf.mxu0
    %v1975 = vadd.f32 0.0, %v1974
    %v1976 = vpop.f32.mrf.mxu0
    %1977 = vmatprep.mubr.bf16.mxu0 0
    %1978 = vmatmul.mubr.bf16.gmra.mxu0 %v685
    %v1979 = vpop.f32.mrf.mxu0
    %v1980 = vadd.f32 0.0, %v1979
    %v1981 = vpop.f32.mrf.mxu0
    %v1982 = vpop.f32.mrf.mxu0
    %v1983 = vadd.f32 0.0, %v1982
    %v1984 = vpop.f32.mrf.mxu0
    %1985 = vmatprep.mubr.bf16.mxu0 0
    %1986 = vmatmul.mubr.bf16.gmra.mxu0 %v686
    %v1987 = vpop.f32.mrf.mxu0
    %v1988 = vadd.f32 0.0, %v1987
    %v1989 = vpop.f32.mrf.mxu0
    %v1990 = vpop.f32.mrf.mxu0
    %v1991 = vadd.f32 0.0, %v1990
    %v1992 = vpop.f32.mrf.mxu0
    %1993 = vmatprep.mubr.bf16.mxu0 0
    %1994 = vmatmul.mubr.bf16.gmra.mxu0 %v687
    %v1995 = vpop.f32.mrf.mxu0
    %v1996 = vadd.f32 0.0, %v1995
    %v1997 = vpop.f32.mrf.mxu0
    %v1998 = vpop.f32.mrf.mxu0
    %v1999 = vadd.f32 0.0, %v1998
    %v2000 = vpop.f32.mrf.mxu0
    %2001 = vmatprep.mubr.bf16.mxu0 0
    %2002 = vmatmul.mubr.bf16.gmra.mxu0 %v688
    %v2003 = vpop.f32.mrf.mxu0
    %v2004 = vadd.f32 0.0, %v2003
    %v2005 = vpop.f32.mrf.mxu0
    %v2006 = vpop.f32.mrf.mxu0
    %v2007 = vadd.f32 0.0, %v2006
    %v2008 = vpop.f32.mrf.mxu0
    %2009 = vmatprep.mubr.bf16.mxu0 0
    %2010 = vmatmul.mubr.bf16.gmra.mxu0 %v689
    %v2011 = vpop.f32.mrf.mxu0
    %v2012 = vadd.f32 0.0, %v2011
    %v2013 = vpop.f32.mrf.mxu0
    %v2014 = vpop.f32.mrf.mxu0
    %v2015 = vadd.f32 0.0, %v2014
    %v2016 = vpop.f32.mrf.mxu0
    %2017 = vdwg.mxu0
    %v2018 = vpack.c.bf16 %v1767, %v1764
    %v2019 = vpack.c.bf16 %v1775, %v1772
    %v2020 = vpack.c.bf16 %v1783, %v1780
    %v2021 = vpack.c.bf16 %v1791, %v1788
    %v2022 = vpack.c.bf16 %v1799, %v1796
    %v2023 = vpack.c.bf16 %v1807, %v1804
    %v2024 = vpack.c.bf16 %v1815, %v1812
    %v2025 = vpack.c.bf16 %v1823, %v1820
    %v2026 = vpack.c.bf16 %v1831, %v1828
    %v2027 = vpack.c.bf16 %v1839, %v1836
    %v2028 = vpack.c.bf16 %v1847, %v1844
    %v2029 = vpack.c.bf16 %v1855, %v1852
    %v2030 = vpack.c.bf16 %v1863, %v1860
    %v2031 = vpack.c.bf16 %v1871, %v1868
    %v2032 = vpack.c.bf16 %v1879, %v1876
    %v2033 = vpack.c.bf16 %v1887, %v1884
    %v2034 = vpack.c.bf16 %v1895, %v1892
    %v2035 = vpack.c.bf16 %v1903, %v1900
    %v2036 = vpack.c.bf16 %v1911, %v1908
    %v2037 = vpack.c.bf16 %v1919, %v1916
    %v2038 = vpack.c.bf16 %v1927, %v1924
    %v2039 = vpack.c.bf16 %v1935, %v1932
    %v2040 = vpack.c.bf16 %v1943, %v1940
    %v2041 = vpack.c.bf16 %v1951, %v1948
    %v2042 = vpack.c.bf16 %v1959, %v1956
    %v2043 = vpack.c.bf16 %v1967, %v1964
    %v2044 = vpack.c.bf16 %v1975, %v1972
    %v2045 = vpack.c.bf16 %v1983, %v1980
    %v2046 = vpack.c.bf16 %v1991, %v1988
    %v2047 = vpack.c.bf16 %v1999, %v1996
    %v2048 = vpack.c.bf16 %v2007, %v2004
    %v2049 = vpack.c.bf16 %v2015, %v2012
    %s2050 = smul.u32 4, 160
    %s2051 = smul.u32 %s2050, 4
    %s2052 = sshll.u32 %s2051, 4
    %2053 = dma.done [#allocation4], %s2052
    %v2054 = vld [vmem:[#allocation2] sm:$0xff]
    %v2055 = vld [vmem:[#allocation2 + $0x8] sm:$0xff]
    %v2056 = vld [vmem:[#allocation2 + $0x10] sm:$0xff]
    %v2057 = vld [vmem:[#allocation2 + $0x18] sm:$0xff]
    %v2058 = vld [vmem:[#allocation2 + $0x20] sm:$0xff]
    %v2059 = vld [vmem:[#allocation2 + $0x28] sm:$0xff]
    %v2060 = vld [vmem:[#allocation2 + $0x30] sm:$0xff]
    %v2061 = vld [vmem:[#allocation2 + $0x38] sm:$0xff]
    %v2062 = vld [vmem:[#allocation2 + $0x40] sm:$0xff]
    %v2063 = vld [vmem:[#allocation2 + $0x48] sm:$0xff]
    %v2064 = vld [vmem:[#allocation2 + $0x50] sm:$0xff]
    %v2065 = vld [vmem:[#allocation2 + $0x58] sm:$0xff]
    %v2066 = vld [vmem:[#allocation2 + $0x60] sm:$0xff]
    %v2067 = vld [vmem:[#allocation2 + $0x68] sm:$0xff]
    %v2068 = vld [vmem:[#allocation2 + $0x70] sm:$0xff]
    %v2069 = vld [vmem:[#allocation2 + $0x78] sm:$0xff]
    %v2070 = vld [vmem:[#allocation2 + $0x80] sm:$0xff]
    %v2071 = vld [vmem:[#allocation2 + $0x88] sm:$0xff]
    %v2072 = vld [vmem:[#allocation2 + $0x90] sm:$0xff]
    %v2073 = vld [vmem:[#allocation2 + $0x98] sm:$0xff]
    %v2074 = vld [vmem:[#allocation2 + $0xa0] sm:$0xff]
    %v2075 = vld [vmem:[#allocation2 + $0xa8] sm:$0xff]
    %v2076 = vld [vmem:[#allocation2 + $0xb0] sm:$0xff]
    %v2077 = vld [vmem:[#allocation2 + $0xb8] sm:$0xff]
    %v2078 = vld [vmem:[#allocation2 + $0xc0] sm:$0xff]
    %v2079 = vld [vmem:[#allocation2 + $0xc8] sm:$0xff]
    %v2080 = vld [vmem:[#allocation2 + $0xd0] sm:$0xff]
    %v2081 = vld [vmem:[#allocation2 + $0xd8] sm:$0xff]
    %v2082 = vld [vmem:[#allocation2 + $0xe0] sm:$0xff]
    %v2083 = vld [vmem:[#allocation2 + $0xe8] sm:$0xff]
    %v2084 = vld [vmem:[#allocation2 + $0xf0] sm:$0xff]
    %v2085 = vld [vmem:[#allocation2 + $0xf8] sm:$0xff]
    %v2086 = vld [vmem:[#allocation2 + $0x100] sm:$0xff]
    %v2087 = vld [vmem:[#allocation2 + $0x108] sm:$0xff]
    %v2088 = vld [vmem:[#allocation2 + $0x110] sm:$0xff]
    %v2089 = vld [vmem:[#allocation2 + $0x118] sm:$0xff]
    %v2090 = vld [vmem:[#allocation2 + $0x120] sm:$0xff]
    %v2091 = vld [vmem:[#allocation2 + $0x128] sm:$0xff]
    %v2092 = vld [vmem:[#allocation2 + $0x130] sm:$0xff]
    %v2093 = vld [vmem:[#allocation2 + $0x138] sm:$0xff]
    %v2094 = vld [vmem:[#allocation2 + $0x140] sm:$0xff]
    %v2095 = vld [vmem:[#allocation2 + $0x148] sm:$0xff]
    %v2096 = vld [vmem:[#allocation2 + $0x150] sm:$0xff]
    %v2097 = vld [vmem:[#allocation2 + $0x158] sm:$0xff]
    %v2098 = vld [vmem:[#allocation2 + $0x160] sm:$0xff]
    %v2099 = vld [vmem:[#allocation2 + $0x168] sm:$0xff]
    %v2100 = vld [vmem:[#allocation2 + $0x170] sm:$0xff]
    %v2101 = vld [vmem:[#allocation2 + $0x178] sm:$0xff]
    %v2102 = vld [vmem:[#allocation2 + $0x180] sm:$0xff]
    %v2103 = vld [vmem:[#allocation2 + $0x188] sm:$0xff]
    %v2104 = vld [vmem:[#allocation2 + $0x190] sm:$0xff]
    %v2105 = vld [vmem:[#allocation2 + $0x198] sm:$0xff]
    %v2106 = vld [vmem:[#allocation2 + $0x1a0] sm:$0xff]
    %v2107 = vld [vmem:[#allocation2 + $0x1a8] sm:$0xff]
    %v2108 = vld [vmem:[#allocation2 + $0x1b0] sm:$0xff]
    %v2109 = vld [vmem:[#allocation2 + $0x1b8] sm:$0xff]
    %v2110 = vld [vmem:[#allocation2 + $0x1c0] sm:$0xff]
    %v2111 = vld [vmem:[#allocation2 + $0x1c8] sm:$0xff]
    %v2112 = vld [vmem:[#allocation2 + $0x1d0] sm:$0xff]
    %v2113 = vld [vmem:[#allocation2 + $0x1d8] sm:$0xff]
    %v2114 = vld [vmem:[#allocation2 + $0x1e0] sm:$0xff]
    %v2115 = vld [vmem:[#allocation2 + $0x1e8] sm:$0xff]
    %v2116 = vld [vmem:[#allocation2 + $0x1f0] sm:$0xff]
    %v2117 = vld [vmem:[#allocation2 + $0x1f8] sm:$0xff]
    %v2118 = vld [vmem:[#allocation2 + $0x200] sm:$0xff]
    %v2119 = vld [vmem:[#allocation2 + $0x208] sm:$0xff]
    %v2120 = vld [vmem:[#allocation2 + $0x210] sm:$0xff]
    %v2121 = vld [vmem:[#allocation2 + $0x218] sm:$0xff]
    %v2122 = vld [vmem:[#allocation2 + $0x220] sm:$0xff]
    %v2123 = vld [vmem:[#allocation2 + $0x228] sm:$0xff]
    %v2124 = vld [vmem:[#allocation2 + $0x230] sm:$0xff]
    %v2125 = vld [vmem:[#allocation2 + $0x238] sm:$0xff]
    %v2126 = vld [vmem:[#allocation2 + $0x240] sm:$0xff]
    %v2127 = vld [vmem:[#allocation2 + $0x248] sm:$0xff]
    %v2128 = vld [vmem:[#allocation2 + $0x250] sm:$0xff]
    %v2129 = vld [vmem:[#allocation2 + $0x258] sm:$0xff]
    %v2130 = vld [vmem:[#allocation2 + $0x260] sm:$0xff]
    %v2131 = vld [vmem:[#allocation2 + $0x268] sm:$0xff]
    %v2132 = vld [vmem:[#allocation2 + $0x270] sm:$0xff]
    %v2133 = vld [vmem:[#allocation2 + $0x278] sm:$0xff]
    %v2134 = vld [vmem:[#allocation2 + $0x280] sm:$0xff]
    %v2135 = vld [vmem:[#allocation2 + $0x288] sm:$0xff]
    %v2136 = vld [vmem:[#allocation2 + $0x290] sm:$0xff]
    %v2137 = vld [vmem:[#allocation2 + $0x298] sm:$0xff]
    %v2138 = vld [vmem:[#allocation2 + $0x2a0] sm:$0xff]
    %v2139 = vld [vmem:[#allocation2 + $0x2a8] sm:$0xff]
    %v2140 = vld [vmem:[#allocation2 + $0x2b0] sm:$0xff]
    %v2141 = vld [vmem:[#allocation2 + $0x2b8] sm:$0xff]
    %v2142 = vld [vmem:[#allocation2 + $0x2c0] sm:$0xff]
    %v2143 = vld [vmem:[#allocation2 + $0x2c8] sm:$0xff]
    %v2144 = vld [vmem:[#allocation2 + $0x2d0] sm:$0xff]
    %v2145 = vld [vmem:[#allocation2 + $0x2d8] sm:$0xff]
    %v2146 = vld [vmem:[#allocation2 + $0x2e0] sm:$0xff]
    %v2147 = vld [vmem:[#allocation2 + $0x2e8] sm:$0xff]
    %v2148 = vld [vmem:[#allocation2 + $0x2f0] sm:$0xff]
    %v2149 = vld [vmem:[#allocation2 + $0x2f8] sm:$0xff]
    %v2150 = vld [vmem:[#allocation2 + $0x300] sm:$0xff]
    %v2151 = vld [vmem:[#allocation2 + $0x308] sm:$0xff]
    %v2152 = vld [vmem:[#allocation2 + $0x310] sm:$0xff]
    %v2153 = vld [vmem:[#allocation2 + $0x318] sm:$0xff]
    %v2154 = vld [vmem:[#allocation2 + $0x320] sm:$0xff]
    %v2155 = vld [vmem:[#allocation2 + $0x328] sm:$0xff]
    %v2156 = vld [vmem:[#allocation2 + $0x330] sm:$0xff]
    %v2157 = vld [vmem:[#allocation2 + $0x338] sm:$0xff]
    %v2158 = vld [vmem:[#allocation2 + $0x340] sm:$0xff]
    %v2159 = vld [vmem:[#allocation2 + $0x348] sm:$0xff]
    %v2160 = vld [vmem:[#allocation2 + $0x350] sm:$0xff]
    %v2161 = vld [vmem:[#allocation2 + $0x358] sm:$0xff]
    %v2162 = vld [vmem:[#allocation2 + $0x360] sm:$0xff]
    %v2163 = vld [vmem:[#allocation2 + $0x368] sm:$0xff]
    %v2164 = vld [vmem:[#allocation2 + $0x370] sm:$0xff]
    %v2165 = vld [vmem:[#allocation2 + $0x378] sm:$0xff]
    %v2166 = vld [vmem:[#allocation2 + $0x380] sm:$0xff]
    %v2167 = vld [vmem:[#allocation2 + $0x388] sm:$0xff]
    %v2168 = vld [vmem:[#allocation2 + $0x390] sm:$0xff]
    %v2169 = vld [vmem:[#allocation2 + $0x398] sm:$0xff]
    %v2170 = vld [vmem:[#allocation2 + $0x3a0] sm:$0xff]
    %v2171 = vld [vmem:[#allocation2 + $0x3a8] sm:$0xff]
    %v2172 = vld [vmem:[#allocation2 + $0x3b0] sm:$0xff]
    %v2173 = vld [vmem:[#allocation2 + $0x3b8] sm:$0xff]
    %v2174 = vld [vmem:[#allocation2 + $0x3c0] sm:$0xff]
    %v2175 = vld [vmem:[#allocation2 + $0x3c8] sm:$0xff]
    %v2176 = vld [vmem:[#allocation2 + $0x3d0] sm:$0xff]
    %v2177 = vld [vmem:[#allocation2 + $0x3d8] sm:$0xff]
    %v2178 = vld [vmem:[#allocation2 + $0x3e0] sm:$0xff]
    %v2179 = vld [vmem:[#allocation2 + $0x3e8] sm:$0xff]
    %v2180 = vld [vmem:[#allocation2 + $0x3f0] sm:$0xff]
    %v2181 = vld [vmem:[#allocation2 + $0x3f8] sm:$0xff]
    %v2182 = vld [vmem:[#allocation2 + $0x400] sm:$0xff]
    %v2183 = vld [vmem:[#allocation2 + $0x408] sm:$0xff]
    %v2184 = vld [vmem:[#allocation2 + $0x410] sm:$0xff]
    %v2185 = vld [vmem:[#allocation2 + $0x418] sm:$0xff]
    %v2186 = vld [vmem:[#allocation2 + $0x420] sm:$0xff]
    %v2187 = vld [vmem:[#allocation2 + $0x428] sm:$0xff]
    %v2188 = vld [vmem:[#allocation2 + $0x430] sm:$0xff]
    %v2189 = vld [vmem:[#allocation2 + $0x438] sm:$0xff]
    %v2190 = vld [vmem:[#allocation2 + $0x440] sm:$0xff]
    %v2191 = vld [vmem:[#allocation2 + $0x448] sm:$0xff]
    %v2192 = vld [vmem:[#allocation2 + $0x450] sm:$0xff]
    %v2193 = vld [vmem:[#allocation2 + $0x458] sm:$0xff]
    %v2194 = vld [vmem:[#allocation2 + $0x460] sm:$0xff]
    %v2195 = vld [vmem:[#allocation2 + $0x468] sm:$0xff]
    %v2196 = vld [vmem:[#allocation2 + $0x470] sm:$0xff]
    %v2197 = vld [vmem:[#allocation2 + $0x478] sm:$0xff]
    %v2198 = vld [vmem:[#allocation2 + $0x480] sm:$0xff]
    %v2199 = vld [vmem:[#allocation2 + $0x488] sm:$0xff]
    %v2200 = vld [vmem:[#allocation2 + $0x490] sm:$0xff]
    %v2201 = vld [vmem:[#allocation2 + $0x498] sm:$0xff]
    %v2202 = vld [vmem:[#allocation2 + $0x4a0] sm:$0xff]
    %v2203 = vld [vmem:[#allocation2 + $0x4a8] sm:$0xff]
    %v2204 = vld [vmem:[#allocation2 + $0x4b0] sm:$0xff]
    %v2205 = vld [vmem:[#allocation2 + $0x4b8] sm:$0xff]
    %v2206 = vld [vmem:[#allocation2 + $0x4c0] sm:$0xff]
    %v2207 = vld [vmem:[#allocation2 + $0x4c8] sm:$0xff]
    %v2208 = vld [vmem:[#allocation2 + $0x4d0] sm:$0xff]
    %v2209 = vld [vmem:[#allocation2 + $0x4d8] sm:$0xff]
    %v2210 = vld [vmem:[#allocation2 + $0x4e0] sm:$0xff]
    %v2211 = vld [vmem:[#allocation2 + $0x4e8] sm:$0xff]
    %v2212 = vld [vmem:[#allocation2 + $0x4f0] sm:$0xff]
    %v2213 = vld [vmem:[#allocation2 + $0x4f8] sm:$0xff]
    %v2214 = vld [vmem:[#allocation2 + $0x500] sm:$0xff]
    %v2215 = vld [vmem:[#allocation2 + $0x508] sm:$0xff]
    %v2216 = vld [vmem:[#allocation2 + $0x510] sm:$0xff]
    %v2217 = vld [vmem:[#allocation2 + $0x518] sm:$0xff]
    %v2218 = vld [vmem:[#allocation2 + $0x520] sm:$0xff]
    %v2219 = vld [vmem:[#allocation2 + $0x528] sm:$0xff]
    %v2220 = vld [vmem:[#allocation2 + $0x530] sm:$0xff]
    %v2221 = vld [vmem:[#allocation2 + $0x538] sm:$0xff]
    %v2222 = vld [vmem:[#allocation2 + $0x540] sm:$0xff]
    %v2223 = vld [vmem:[#allocation2 + $0x548] sm:$0xff]
    %v2224 = vld [vmem:[#allocation2 + $0x550] sm:$0xff]
    %v2225 = vld [vmem:[#allocation2 + $0x558] sm:$0xff]
    %v2226 = vld [vmem:[#allocation2 + $0x560] sm:$0xff]
    %v2227 = vld [vmem:[#allocation2 + $0x568] sm:$0xff]
    %v2228 = vld [vmem:[#allocation2 + $0x570] sm:$0xff]
    %v2229 = vld [vmem:[#allocation2 + $0x578] sm:$0xff]
    %v2230 = vld [vmem:[#allocation2 + $0x580] sm:$0xff]
    %v2231 = vld [vmem:[#allocation2 + $0x588] sm:$0xff]
    %v2232 = vld [vmem:[#allocation2 + $0x590] sm:$0xff]
    %v2233 = vld [vmem:[#allocation2 + $0x598] sm:$0xff]
    %v2234 = vld [vmem:[#allocation2 + $0x5a0] sm:$0xff]
    %v2235 = vld [vmem:[#allocation2 + $0x5a8] sm:$0xff]
    %v2236 = vld [vmem:[#allocation2 + $0x5b0] sm:$0xff]
    %v2237 = vld [vmem:[#allocation2 + $0x5b8] sm:$0xff]
    %v2238 = vld [vmem:[#allocation2 + $0x5c0] sm:$0xff]
    %v2239 = vld [vmem:[#allocation2 + $0x5c8] sm:$0xff]
    %v2240 = vld [vmem:[#allocation2 + $0x5d0] sm:$0xff]
    %v2241 = vld [vmem:[#allocation2 + $0x5d8] sm:$0xff]
    %v2242 = vld [vmem:[#allocation2 + $0x5e0] sm:$0xff]
    %v2243 = vld [vmem:[#allocation2 + $0x5e8] sm:$0xff]
    %v2244 = vld [vmem:[#allocation2 + $0x5f0] sm:$0xff]
    %v2245 = vld [vmem:[#allocation2 + $0x5f8] sm:$0xff]
    %v2246 = vld [vmem:[#allocation2 + $0x600] sm:$0xff]
    %v2247 = vld [vmem:[#allocation2 + $0x608] sm:$0xff]
    %v2248 = vld [vmem:[#allocation2 + $0x610] sm:$0xff]
    %v2249 = vld [vmem:[#allocation2 + $0x618] sm:$0xff]
    %v2250 = vld [vmem:[#allocation2 + $0x620] sm:$0xff]
    %v2251 = vld [vmem:[#allocation2 + $0x628] sm:$0xff]
    %v2252 = vld [vmem:[#allocation2 + $0x630] sm:$0xff]
    %v2253 = vld [vmem:[#allocation2 + $0x638] sm:$0xff]
    %v2254 = vld [vmem:[#allocation2 + $0x640] sm:$0xff]
    %v2255 = vld [vmem:[#allocation2 + $0x648] sm:$0xff]
    %v2256 = vld [vmem:[#allocation2 + $0x650] sm:$0xff]
    %v2257 = vld [vmem:[#allocation2 + $0x658] sm:$0xff]
    %v2258 = vld [vmem:[#allocation2 + $0x660] sm:$0xff]
    %v2259 = vld [vmem:[#allocation2 + $0x668] sm:$0xff]
    %v2260 = vld [vmem:[#allocation2 + $0x670] sm:$0xff]
    %v2261 = vld [vmem:[#allocation2 + $0x678] sm:$0xff]
    %v2262 = vld [vmem:[#allocation2 + $0x680] sm:$0xff]
    %v2263 = vld [vmem:[#allocation2 + $0x688] sm:$0xff]
    %v2264 = vld [vmem:[#allocation2 + $0x690] sm:$0xff]
    %v2265 = vld [vmem:[#allocation2 + $0x698] sm:$0xff]
    %v2266 = vld [vmem:[#allocation2 + $0x6a0] sm:$0xff]
    %v2267 = vld [vmem:[#allocation2 + $0x6a8] sm:$0xff]
    %v2268 = vld [vmem:[#allocation2 + $0x6b0] sm:$0xff]
    %v2269 = vld [vmem:[#allocation2 + $0x6b8] sm:$0xff]
    %v2270 = vld [vmem:[#allocation2 + $0x6c0] sm:$0xff]
    %v2271 = vld [vmem:[#allocation2 + $0x6c8] sm:$0xff]
    %v2272 = vld [vmem:[#allocation2 + $0x6d0] sm:$0xff]
    %v2273 = vld [vmem:[#allocation2 + $0x6d8] sm:$0xff]
    %v2274 = vld [vmem:[#allocation2 + $0x6e0] sm:$0xff]
    %v2275 = vld [vmem:[#allocation2 + $0x6e8] sm:$0xff]
    %v2276 = vld [vmem:[#allocation2 + $0x6f0] sm:$0xff]
    %v2277 = vld [vmem:[#allocation2 + $0x6f8] sm:$0xff]
    %v2278 = vld [vmem:[#allocation2 + $0x700] sm:$0xff]
    %v2279 = vld [vmem:[#allocation2 + $0x708] sm:$0xff]
    %v2280 = vld [vmem:[#allocation2 + $0x710] sm:$0xff]
    %v2281 = vld [vmem:[#allocation2 + $0x718] sm:$0xff]
    %v2282 = vld [vmem:[#allocation2 + $0x720] sm:$0xff]
    %v2283 = vld [vmem:[#allocation2 + $0x728] sm:$0xff]
    %v2284 = vld [vmem:[#allocation2 + $0x730] sm:$0xff]
    %v2285 = vld [vmem:[#allocation2 + $0x738] sm:$0xff]
    %v2286 = vld [vmem:[#allocation2 + $0x740] sm:$0xff]
    %v2287 = vld [vmem:[#allocation2 + $0x748] sm:$0xff]
    %v2288 = vld [vmem:[#allocation2 + $0x750] sm:$0xff]
    %v2289 = vld [vmem:[#allocation2 + $0x758] sm:$0xff]
    %v2290 = vld [vmem:[#allocation2 + $0x760] sm:$0xff]
    %v2291 = vld [vmem:[#allocation2 + $0x768] sm:$0xff]
    %v2292 = vld [vmem:[#allocation2 + $0x770] sm:$0xff]
    %v2293 = vld [vmem:[#allocation2 + $0x778] sm:$0xff]
    %v2294 = vld [vmem:[#allocation2 + $0x780] sm:$0xff]
    %v2295 = vld [vmem:[#allocation2 + $0x788] sm:$0xff]
    %v2296 = vld [vmem:[#allocation2 + $0x790] sm:$0xff]
    %v2297 = vld [vmem:[#allocation2 + $0x798] sm:$0xff]
    %v2298 = vld [vmem:[#allocation2 + $0x7a0] sm:$0xff]
    %v2299 = vld [vmem:[#allocation2 + $0x7a8] sm:$0xff]
    %v2300 = vld [vmem:[#allocation2 + $0x7b0] sm:$0xff]
    %v2301 = vld [vmem:[#allocation2 + $0x7b8] sm:$0xff]
    %v2302 = vld [vmem:[#allocation2 + $0x7c0] sm:$0xff]
    %v2303 = vld [vmem:[#allocation2 + $0x7c8] sm:$0xff]
    %v2304 = vld [vmem:[#allocation2 + $0x7d0] sm:$0xff]
    %v2305 = vld [vmem:[#allocation2 + $0x7d8] sm:$0xff]
    %v2306 = vld [vmem:[#allocation2 + $0x7e0] sm:$0xff]
    %v2307 = vld [vmem:[#allocation2 + $0x7e8] sm:$0xff]
    %v2308 = vld [vmem:[#allocation2 + $0x7f0] sm:$0xff]
    %v2309 = vld [vmem:[#allocation2 + $0x7f8] sm:$0xff]
    %v2310 = vld [vmem:[#allocation2 + $0x800] sm:$0xff]
    %v2311 = vld [vmem:[#allocation2 + $0x808] sm:$0xff]
    %v2312 = vld [vmem:[#allocation2 + $0x810] sm:$0xff]
    %v2313 = vld [vmem:[#allocation2 + $0x818] sm:$0xff]
    %v2314 = vld [vmem:[#allocation2 + $0x820] sm:$0xff]
    %v2315 = vld [vmem:[#allocation2 + $0x828] sm:$0xff]
    %v2316 = vld [vmem:[#allocation2 + $0x830] sm:$0xff]
    %v2317 = vld [vmem:[#allocation2 + $0x838] sm:$0xff]
    %v2318 = vld [vmem:[#allocation2 + $0x840] sm:$0xff]
    %v2319 = vld [vmem:[#allocation2 + $0x848] sm:$0xff]
    %v2320 = vld [vmem:[#allocation2 + $0x850] sm:$0xff]
    %v2321 = vld [vmem:[#allocation2 + $0x858] sm:$0xff]
    %v2322 = vld [vmem:[#allocation2 + $0x860] sm:$0xff]
    %v2323 = vld [vmem:[#allocation2 + $0x868] sm:$0xff]
    %v2324 = vld [vmem:[#allocation2 + $0x870] sm:$0xff]
    %v2325 = vld [vmem:[#allocation2 + $0x878] sm:$0xff]
    %v2326 = vld [vmem:[#allocation2 + $0x880] sm:$0xff]
    %v2327 = vld [vmem:[#allocation2 + $0x888] sm:$0xff]
    %v2328 = vld [vmem:[#allocation2 + $0x890] sm:$0xff]
    %v2329 = vld [vmem:[#allocation2 + $0x898] sm:$0xff]
    %v2330 = vld [vmem:[#allocation2 + $0x8a0] sm:$0xff]
    %v2331 = vld [vmem:[#allocation2 + $0x8a8] sm:$0xff]
    %v2332 = vld [vmem:[#allocation2 + $0x8b0] sm:$0xff]
    %v2333 = vld [vmem:[#allocation2 + $0x8b8] sm:$0xff]
    %v2334 = vld [vmem:[#allocation2 + $0x8c0] sm:$0xff]
    %v2335 = vld [vmem:[#allocation2 + $0x8c8] sm:$0xff]
    %v2336 = vld [vmem:[#allocation2 + $0x8d0] sm:$0xff]
    %v2337 = vld [vmem:[#allocation2 + $0x8d8] sm:$0xff]
    %v2338 = vld [vmem:[#allocation2 + $0x8e0] sm:$0xff]
    %v2339 = vld [vmem:[#allocation2 + $0x8e8] sm:$0xff]
    %v2340 = vld [vmem:[#allocation2 + $0x8f0] sm:$0xff]
    %v2341 = vld [vmem:[#allocation2 + $0x8f8] sm:$0xff]
    %v2342 = vld [vmem:[#allocation2 + $0x900] sm:$0xff]
    %v2343 = vld [vmem:[#allocation2 + $0x908] sm:$0xff]
    %v2344 = vld [vmem:[#allocation2 + $0x910] sm:$0xff]
    %v2345 = vld [vmem:[#allocation2 + $0x918] sm:$0xff]
    %v2346 = vld [vmem:[#allocation2 + $0x920] sm:$0xff]
    %v2347 = vld [vmem:[#allocation2 + $0x928] sm:$0xff]
    %v2348 = vld [vmem:[#allocation2 + $0x930] sm:$0xff]
    %v2349 = vld [vmem:[#allocation2 + $0x938] sm:$0xff]
    %v2350 = vld [vmem:[#allocation2 + $0x940] sm:$0xff]
    %v2351 = vld [vmem:[#allocation2 + $0x948] sm:$0xff]
    %v2352 = vld [vmem:[#allocation2 + $0x950] sm:$0xff]
    %v2353 = vld [vmem:[#allocation2 + $0x958] sm:$0xff]
    %v2354 = vld [vmem:[#allocation2 + $0x960] sm:$0xff]
    %v2355 = vld [vmem:[#allocation2 + $0x968] sm:$0xff]
    %v2356 = vld [vmem:[#allocation2 + $0x970] sm:$0xff]
    %v2357 = vld [vmem:[#allocation2 + $0x978] sm:$0xff]
    %v2358 = vld [vmem:[#allocation2 + $0x980] sm:$0xff]
    %v2359 = vld [vmem:[#allocation2 + $0x988] sm:$0xff]
    %v2360 = vld [vmem:[#allocation2 + $0x990] sm:$0xff]
    %v2361 = vld [vmem:[#allocation2 + $0x998] sm:$0xff]
    %v2362 = vld [vmem:[#allocation2 + $0x9a0] sm:$0xff]
    %v2363 = vld [vmem:[#allocation2 + $0x9a8] sm:$0xff]
    %v2364 = vld [vmem:[#allocation2 + $0x9b0] sm:$0xff]
    %v2365 = vld [vmem:[#allocation2 + $0x9b8] sm:$0xff]
    %v2366 = vld [vmem:[#allocation2 + $0x9c0] sm:$0xff]
    %v2367 = vld [vmem:[#allocation2 + $0x9c8] sm:$0xff]
    %v2368 = vld [vmem:[#allocation2 + $0x9d0] sm:$0xff]
    %v2369 = vld [vmem:[#allocation2 + $0x9d8] sm:$0xff]
    %v2370 = vld [vmem:[#allocation2 + $0x9e0] sm:$0xff]
    %v2371 = vld [vmem:[#allocation2 + $0x9e8] sm:$0xff]
    %v2372 = vld [vmem:[#allocation2 + $0x9f0] sm:$0xff]
    %v2373 = vld [vmem:[#allocation2 + $0x9f8] sm:$0xff]
    %v2374 = vld [vmem:[#allocation13] sm:$0xf]
    %v2376 = vlaneseq
    %v2377 = vshrl.u32 %v2376, 7
    %v2378 = vsub.s32 0, %v2377
    %v2379 = vrot.slane %v2374, %v2378
    %v2380 = vlaneseq
    %v2381 = vshrl.u32 %v2380, 7
    %v2382 = vsub.s32 1, %v2381
    %v2383 = vrot.slane %v2374, %v2382
    %v2384 = vlaneseq
    %v2385 = vshrl.u32 %v2384, 7
    %v2386 = vsub.s32 2, %v2385
    %v2387 = vrot.slane %v2374, %v2386
    %v2388 = vlaneseq
    %v2389 = vshrl.u32 %v2388, 7
    %v2390 = vsub.s32 3, %v2389
    %v2391 = vrot.slane %v2374, %v2390
    %v2716 = vunpack.c.l.b16 %v2054
    %v2717 = vunpack.c.h.b16 %v2054
    %v2718 = vunpack.c.l.b16 %v2055
    %v2719 = vunpack.c.h.b16 %v2055
    %v2720 = vunpack.c.l.b16 %v2056
    %v2721 = vunpack.c.h.b16 %v2056
    %v2722 = vunpack.c.l.b16 %v2057
    %v2723 = vunpack.c.h.b16 %v2057
    %v2724 = vunpack.c.l.b16 %v2058
    %v2725 = vunpack.c.h.b16 %v2058
    %v2726 = vunpack.c.l.b16 %v2059
    %v2727 = vunpack.c.h.b16 %v2059
    %v2728 = vunpack.c.l.b16 %v2060
    %v2729 = vunpack.c.h.b16 %v2060
    %v2730 = vunpack.c.l.b16 %v2061
    %v2731 = vunpack.c.h.b16 %v2061
    %v2732 = vunpack.c.l.b16 %v2062
    %v2733 = vunpack.c.h.b16 %v2062
    %v2734 = vunpack.c.l.b16 %v2063
    %v2735 = vunpack.c.h.b16 %v2063
    %v2736 = vunpack.c.l.b16 %v2064
    %v2737 = vunpack.c.h.b16 %v2064
    %v2738 = vunpack.c.l.b16 %v2065
    %v2739 = vunpack.c.h.b16 %v2065
    %v2740 = vunpack.c.l.b16 %v2066
    %v2741 = vunpack.c.h.b16 %v2066
    %v2742 = vunpack.c.l.b16 %v2067
    %v2743 = vunpack.c.h.b16 %v2067
    %v2744 = vunpack.c.l.b16 %v2068
    %v2745 = vunpack.c.h.b16 %v2068
    %v2746 = vunpack.c.l.b16 %v2069
    %v2747 = vunpack.c.h.b16 %v2069
    %v2748 = vunpack.c.l.b16 %v2070
    %v2749 = vunpack.c.h.b16 %v2070
    %v2750 = vunpack.c.l.b16 %v2071
    %v2751 = vunpack.c.h.b16 %v2071
    %v2752 = vunpack.c.l.b16 %v2072
    %v2753 = vunpack.c.h.b16 %v2072
    %v2754 = vunpack.c.l.b16 %v2073
    %v2755 = vunpack.c.h.b16 %v2073
    %v2756 = vunpack.c.l.b16 %v2074
    %v2757 = vunpack.c.h.b16 %v2074
    %v2758 = vunpack.c.l.b16 %v2075
    %v2759 = vunpack.c.h.b16 %v2075
    %v2760 = vunpack.c.l.b16 %v2076
    %v2761 = vunpack.c.h.b16 %v2076
    %v2762 = vunpack.c.l.b16 %v2077
    %v2763 = vunpack.c.h.b16 %v2077
    %v2764 = vunpack.c.l.b16 %v2078
    %v2765 = vunpack.c.h.b16 %v2078
    %v2766 = vunpack.c.l.b16 %v2079
    %v2767 = vunpack.c.h.b16 %v2079
    %v2768 = vunpack.c.l.b16 %v2080
    %v2769 = vunpack.c.h.b16 %v2080
    %v2770 = vunpack.c.l.b16 %v2081
    %v2771 = vunpack.c.h.b16 %v2081
    %v2772 = vunpack.c.l.b16 %v2082
    %v2773 = vunpack.c.h.b16 %v2082
    %v2774 = vunpack.c.l.b16 %v2083
    %v2775 = vunpack.c.h.b16 %v2083
    %v2776 = vunpack.c.l.b16 %v2084
    %v2777 = vunpack.c.h.b16 %v2084
    %v2778 = vunpack.c.l.b16 %v2085
    %v2779 = vunpack.c.h.b16 %v2085
    %v2780 = vunpack.c.l.b16 %v2086
    %v2781 = vunpack.c.h.b16 %v2086
    %v2782 = vunpack.c.l.b16 %v2087
    %v2783 = vunpack.c.h.b16 %v2087
    %v2784 = vunpack.c.l.b16 %v2088
    %v2785 = vunpack.c.h.b16 %v2088
    %v2786 = vunpack.c.l.b16 %v2089
    %v2787 = vunpack.c.h.b16 %v2089
    %v2788 = vunpack.c.l.b16 %v2090
    %v2789 = vunpack.c.h.b16 %v2090
    %v2790 = vunpack.c.l.b16 %v2091
    %v2791 = vunpack.c.h.b16 %v2091
    %v2792 = vunpack.c.l.b16 %v2092
    %v2793 = vunpack.c.h.b16 %v2092
    %v2794 = vunpack.c.l.b16 %v2093
    %v2795 = vunpack.c.h.b16 %v2093
    %v2796 = vunpack.c.l.b16 %v2094
    %v2797 = vunpack.c.h.b16 %v2094
    %v2798 = vunpack.c.l.b16 %v2095
    %v2799 = vunpack.c.h.b16 %v2095
    %v2800 = vunpack.c.l.b16 %v2096
    %v2801 = vunpack.c.h.b16 %v2096
    %v2802 = vunpack.c.l.b16 %v2097
    %v2803 = vunpack.c.h.b16 %v2097
    %v2804 = vunpack.c.l.b16 %v2098
    %v2805 = vunpack.c.h.b16 %v2098
    %v2806 = vunpack.c.l.b16 %v2099
    %v2807 = vunpack.c.h.b16 %v2099
    %v2808 = vunpack.c.l.b16 %v2100
    %v2809 = vunpack.c.h.b16 %v2100
    %v2810 = vunpack.c.l.b16 %v2101
    %v2811 = vunpack.c.h.b16 %v2101
    %v2812 = vunpack.c.l.b16 %v2102
    %v2813 = vunpack.c.h.b16 %v2102
    %v2814 = vunpack.c.l.b16 %v2103
    %v2815 = vunpack.c.h.b16 %v2103
    %v2816 = vunpack.c.l.b16 %v2104
    %v2817 = vunpack.c.h.b16 %v2104
    %v2818 = vunpack.c.l.b16 %v2105
    %v2819 = vunpack.c.h.b16 %v2105
    %v2820 = vunpack.c.l.b16 %v2106
    %v2821 = vunpack.c.h.b16 %v2106
    %v2822 = vunpack.c.l.b16 %v2107
    %v2823 = vunpack.c.h.b16 %v2107
    %v2824 = vunpack.c.l.b16 %v2108
    %v2825 = vunpack.c.h.b16 %v2108
    %v2826 = vunpack.c.l.b16 %v2109
    %v2827 = vunpack.c.h.b16 %v2109
    %v2828 = vunpack.c.l.b16 %v2110
    %v2829 = vunpack.c.h.b16 %v2110
    %v2830 = vunpack.c.l.b16 %v2111
    %v2831 = vunpack.c.h.b16 %v2111
    %v2832 = vunpack.c.l.b16 %v2112
    %v2833 = vunpack.c.h.b16 %v2112
    %v2834 = vunpack.c.l.b16 %v2113
    %v2835 = vunpack.c.h.b16 %v2113
    %v2836 = vunpack.c.l.b16 %v2114
    %v2837 = vunpack.c.h.b16 %v2114
    %v2838 = vunpack.c.l.b16 %v2115
    %v2839 = vunpack.c.h.b16 %v2115
    %v2840 = vunpack.c.l.b16 %v2116
    %v2841 = vunpack.c.h.b16 %v2116
    %v2842 = vunpack.c.l.b16 %v2117
    %v2843 = vunpack.c.h.b16 %v2117
    %v2844 = vunpack.c.l.b16 %v2118
    %v2845 = vunpack.c.h.b16 %v2118
    %v2846 = vunpack.c.l.b16 %v2119
    %v2847 = vunpack.c.h.b16 %v2119
    %v2848 = vunpack.c.l.b16 %v2120
    %v2849 = vunpack.c.h.b16 %v2120
    %v2850 = vunpack.c.l.b16 %v2121
    %v2851 = vunpack.c.h.b16 %v2121
    %v2852 = vunpack.c.l.b16 %v2122
    %v2853 = vunpack.c.h.b16 %v2122
    %v2854 = vunpack.c.l.b16 %v2123
    %v2855 = vunpack.c.h.b16 %v2123
    %v2856 = vunpack.c.l.b16 %v2124
    %v2857 = vunpack.c.h.b16 %v2124
    %v2858 = vunpack.c.l.b16 %v2125
    %v2859 = vunpack.c.h.b16 %v2125
    %v2860 = vunpack.c.l.b16 %v2126
    %v2861 = vunpack.c.h.b16 %v2126
    %v2862 = vunpack.c.l.b16 %v2127
    %v2863 = vunpack.c.h.b16 %v2127
    %v2864 = vunpack.c.l.b16 %v2128
    %v2865 = vunpack.c.h.b16 %v2128
    %v2866 = vunpack.c.l.b16 %v2129
    %v2867 = vunpack.c.h.b16 %v2129
    %v2868 = vunpack.c.l.b16 %v2130
    %v2869 = vunpack.c.h.b16 %v2130
    %v2870 = vunpack.c.l.b16 %v2131
    %v2871 = vunpack.c.h.b16 %v2131
    %v2872 = vunpack.c.l.b16 %v2132
    %v2873 = vunpack.c.h.b16 %v2132
    %v2874 = vunpack.c.l.b16 %v2133
    %v2875 = vunpack.c.h.b16 %v2133
    %v2876 = vunpack.c.l.b16 %v2134
    %v2877 = vunpack.c.h.b16 %v2134
    %v2878 = vunpack.c.l.b16 %v2135
    %v2879 = vunpack.c.h.b16 %v2135
    %v2880 = vunpack.c.l.b16 %v2136
    %v2881 = vunpack.c.h.b16 %v2136
    %v2882 = vunpack.c.l.b16 %v2137
    %v2883 = vunpack.c.h.b16 %v2137
    %v2884 = vunpack.c.l.b16 %v2138
    %v2885 = vunpack.c.h.b16 %v2138
    %v2886 = vunpack.c.l.b16 %v2139
    %v2887 = vunpack.c.h.b16 %v2139
    %v2888 = vunpack.c.l.b16 %v2140
    %v2889 = vunpack.c.h.b16 %v2140
    %v2890 = vunpack.c.l.b16 %v2141
    %v2891 = vunpack.c.h.b16 %v2141
    %v2892 = vunpack.c.l.b16 %v2142
    %v2893 = vunpack.c.h.b16 %v2142
    %v2894 = vunpack.c.l.b16 %v2143
    %v2895 = vunpack.c.h.b16 %v2143
    %v2896 = vunpack.c.l.b16 %v2144
    %v2897 = vunpack.c.h.b16 %v2144
    %v2898 = vunpack.c.l.b16 %v2145
    %v2899 = vunpack.c.h.b16 %v2145
    %v2900 = vunpack.c.l.b16 %v2146
    %v2901 = vunpack.c.h.b16 %v2146
    %v2902 = vunpack.c.l.b16 %v2147
    %v2903 = vunpack.c.h.b16 %v2147
    %v2904 = vunpack.c.l.b16 %v2148
    %v2905 = vunpack.c.h.b16 %v2148
    %v2906 = vunpack.c.l.b16 %v2149
    %v2907 = vunpack.c.h.b16 %v2149
    %v2908 = vunpack.c.l.b16 %v2150
    %v2909 = vunpack.c.h.b16 %v2150
    %v2910 = vunpack.c.l.b16 %v2151
    %v2911 = vunpack.c.h.b16 %v2151
    %v2912 = vunpack.c.l.b16 %v2152
    %v2913 = vunpack.c.h.b16 %v2152
    %v2914 = vunpack.c.l.b16 %v2153
    %v2915 = vunpack.c.h.b16 %v2153
    %v2916 = vunpack.c.l.b16 %v2154
    %v2917 = vunpack.c.h.b16 %v2154
    %v2918 = vunpack.c.l.b16 %v2155
    %v2919 = vunpack.c.h.b16 %v2155
    %v2920 = vunpack.c.l.b16 %v2156
    %v2921 = vunpack.c.h.b16 %v2156
    %v2922 = vunpack.c.l.b16 %v2157
    %v2923 = vunpack.c.h.b16 %v2157
    %v2924 = vunpack.c.l.b16 %v2158
    %v2925 = vunpack.c.h.b16 %v2158
    %v2926 = vunpack.c.l.b16 %v2159
    %v2927 = vunpack.c.h.b16 %v2159
    %v2928 = vunpack.c.l.b16 %v2160
    %v2929 = vunpack.c.h.b16 %v2160
    %v2930 = vunpack.c.l.b16 %v2161
    %v2931 = vunpack.c.h.b16 %v2161
    %v2932 = vunpack.c.l.b16 %v2162
    %v2933 = vunpack.c.h.b16 %v2162
    %v2934 = vunpack.c.l.b16 %v2163
    %v2935 = vunpack.c.h.b16 %v2163
    %v2936 = vunpack.c.l.b16 %v2164
    %v2937 = vunpack.c.h.b16 %v2164
    %v2938 = vunpack.c.l.b16 %v2165
    %v2939 = vunpack.c.h.b16 %v2165
    %v2940 = vunpack.c.l.b16 %v2166
    %v2941 = vunpack.c.h.b16 %v2166
    %v2942 = vunpack.c.l.b16 %v2167
    %v2943 = vunpack.c.h.b16 %v2167
    %v2944 = vunpack.c.l.b16 %v2168
    %v2945 = vunpack.c.h.b16 %v2168
    %v2946 = vunpack.c.l.b16 %v2169
    %v2947 = vunpack.c.h.b16 %v2169
    %v2948 = vunpack.c.l.b16 %v2170
    %v2949 = vunpack.c.h.b16 %v2170
    %v2950 = vunpack.c.l.b16 %v2171
    %v2951 = vunpack.c.h.b16 %v2171
    %v2952 = vunpack.c.l.b16 %v2172
    %v2953 = vunpack.c.h.b16 %v2172
    %v2954 = vunpack.c.l.b16 %v2173
    %v2955 = vunpack.c.h.b16 %v2173
    %v2956 = vunpack.c.l.b16 %v2174
    %v2957 = vunpack.c.h.b16 %v2174
    %v2958 = vunpack.c.l.b16 %v2175
    %v2959 = vunpack.c.h.b16 %v2175
    %v2960 = vunpack.c.l.b16 %v2176
    %v2961 = vunpack.c.h.b16 %v2176
    %v2962 = vunpack.c.l.b16 %v2177
    %v2963 = vunpack.c.h.b16 %v2177
    %v2964 = vunpack.c.l.b16 %v2178
    %v2965 = vunpack.c.h.b16 %v2178
    %v2966 = vunpack.c.l.b16 %v2179
    %v2967 = vunpack.c.h.b16 %v2179
    %v2968 = vunpack.c.l.b16 %v2180
    %v2969 = vunpack.c.h.b16 %v2180
    %v2970 = vunpack.c.l.b16 %v2181
    %v2971 = vunpack.c.h.b16 %v2181
    %v2972 = vunpack.c.l.b16 %v2182
    %v2973 = vunpack.c.h.b16 %v2182
    %v2974 = vunpack.c.l.b16 %v2183
    %v2975 = vunpack.c.h.b16 %v2183
    %v2976 = vunpack.c.l.b16 %v2184
    %v2977 = vunpack.c.h.b16 %v2184
    %v2978 = vunpack.c.l.b16 %v2185
    %v2979 = vunpack.c.h.b16 %v2185
    %v2980 = vunpack.c.l.b16 %v2186
    %v2981 = vunpack.c.h.b16 %v2186
    %v2982 = vunpack.c.l.b16 %v2187
    %v2983 = vunpack.c.h.b16 %v2187
    %v2984 = vunpack.c.l.b16 %v2188
    %v2985 = vunpack.c.h.b16 %v2188
    %v2986 = vunpack.c.l.b16 %v2189
    %v2987 = vunpack.c.h.b16 %v2189
    %v2988 = vunpack.c.l.b16 %v2190
    %v2989 = vunpack.c.h.b16 %v2190
    %v2990 = vunpack.c.l.b16 %v2191
    %v2991 = vunpack.c.h.b16 %v2191
    %v2992 = vunpack.c.l.b16 %v2192
    %v2993 = vunpack.c.h.b16 %v2192
    %v2994 = vunpack.c.l.b16 %v2193
    %v2995 = vunpack.c.h.b16 %v2193
    %v2996 = vunpack.c.l.b16 %v2194
    %v2997 = vunpack.c.h.b16 %v2194
    %v2998 = vunpack.c.l.b16 %v2195
    %v2999 = vunpack.c.h.b16 %v2195
    %v3000 = vunpack.c.l.b16 %v2196
    %v3001 = vunpack.c.h.b16 %v2196
    %v3002 = vunpack.c.l.b16 %v2197
    %v3003 = vunpack.c.h.b16 %v2197
    %v3004 = vunpack.c.l.b16 %v2198
    %v3005 = vunpack.c.h.b16 %v2198
    %v3006 = vunpack.c.l.b16 %v2199
    %v3007 = vunpack.c.h.b16 %v2199
    %v3008 = vunpack.c.l.b16 %v2200
    %v3009 = vunpack.c.h.b16 %v2200
    %v3010 = vunpack.c.l.b16 %v2201
    %v3011 = vunpack.c.h.b16 %v2201
    %v3012 = vunpack.c.l.b16 %v2202
    %v3013 = vunpack.c.h.b16 %v2202
    %v3014 = vunpack.c.l.b16 %v2203
    %v3015 = vunpack.c.h.b16 %v2203
    %v3016 = vunpack.c.l.b16 %v2204
    %v3017 = vunpack.c.h.b16 %v2204
    %v3018 = vunpack.c.l.b16 %v2205
    %v3019 = vunpack.c.h.b16 %v2205
    %v3020 = vunpack.c.l.b16 %v2206
    %v3021 = vunpack.c.h.b16 %v2206
    %v3022 = vunpack.c.l.b16 %v2207
    %v3023 = vunpack.c.h.b16 %v2207
    %v3024 = vunpack.c.l.b16 %v2208
    %v3025 = vunpack.c.h.b16 %v2208
    %v3026 = vunpack.c.l.b16 %v2209
    %v3027 = vunpack.c.h.b16 %v2209
    %v3028 = vunpack.c.l.b16 %v2210
    %v3029 = vunpack.c.h.b16 %v2210
    %v3030 = vunpack.c.l.b16 %v2211
    %v3031 = vunpack.c.h.b16 %v2211
    %v3032 = vunpack.c.l.b16 %v2212
    %v3033 = vunpack.c.h.b16 %v2212
    %v3034 = vunpack.c.l.b16 %v2213
    %v3035 = vunpack.c.h.b16 %v2213
    %v3036 = vunpack.c.l.b16 %v2214
    %v3037 = vunpack.c.h.b16 %v2214
    %v3038 = vunpack.c.l.b16 %v2215
    %v3039 = vunpack.c.h.b16 %v2215
    %v3040 = vunpack.c.l.b16 %v2216
    %v3041 = vunpack.c.h.b16 %v2216
    %v3042 = vunpack.c.l.b16 %v2217
    %v3043 = vunpack.c.h.b16 %v2217
    %v3044 = vunpack.c.l.b16 %v2218
    %v3045 = vunpack.c.h.b16 %v2218
    %v3046 = vunpack.c.l.b16 %v2219
    %v3047 = vunpack.c.h.b16 %v2219
    %v3048 = vunpack.c.l.b16 %v2220
    %v3049 = vunpack.c.h.b16 %v2220
    %v3050 = vunpack.c.l.b16 %v2221
    %v3051 = vunpack.c.h.b16 %v2221
    %v3052 = vunpack.c.l.b16 %v2222
    %v3053 = vunpack.c.h.b16 %v2222
    %v3054 = vunpack.c.l.b16 %v2223
    %v3055 = vunpack.c.h.b16 %v2223
    %v3056 = vunpack.c.l.b16 %v2224
    %v3057 = vunpack.c.h.b16 %v2224
    %v3058 = vunpack.c.l.b16 %v2225
    %v3059 = vunpack.c.h.b16 %v2225
    %v3060 = vunpack.c.l.b16 %v2226
    %v3061 = vunpack.c.h.b16 %v2226
    %v3062 = vunpack.c.l.b16 %v2227
    %v3063 = vunpack.c.h.b16 %v2227
    %v3064 = vunpack.c.l.b16 %v2228
    %v3065 = vunpack.c.h.b16 %v2228
    %v3066 = vunpack.c.l.b16 %v2229
    %v3067 = vunpack.c.h.b16 %v2229
    %v3068 = vunpack.c.l.b16 %v2230
    %v3069 = vunpack.c.h.b16 %v2230
    %v3070 = vunpack.c.l.b16 %v2231
    %v3071 = vunpack.c.h.b16 %v2231
    %v3072 = vunpack.c.l.b16 %v2232
    %v3073 = vunpack.c.h.b16 %v2232
    %v3074 = vunpack.c.l.b16 %v2233
    %v3075 = vunpack.c.h.b16 %v2233
    %v3076 = vunpack.c.l.b16 %v2234
    %v3077 = vunpack.c.h.b16 %v2234
    %v3078 = vunpack.c.l.b16 %v2235
    %v3079 = vunpack.c.h.b16 %v2235
    %v3080 = vunpack.c.l.b16 %v2236
    %v3081 = vunpack.c.h.b16 %v2236
    %v3082 = vunpack.c.l.b16 %v2237
    %v3083 = vunpack.c.h.b16 %v2237
    %v3084 = vunpack.c.l.b16 %v2238
    %v3085 = vunpack.c.h.b16 %v2238
    %v3086 = vunpack.c.l.b16 %v2239
    %v3087 = vunpack.c.h.b16 %v2239
    %v3088 = vunpack.c.l.b16 %v2240
    %v3089 = vunpack.c.h.b16 %v2240
    %v3090 = vunpack.c.l.b16 %v2241
    %v3091 = vunpack.c.h.b16 %v2241
    %v3092 = vunpack.c.l.b16 %v2242
    %v3093 = vunpack.c.h.b16 %v2242
    %v3094 = vunpack.c.l.b16 %v2243
    %v3095 = vunpack.c.h.b16 %v2243
    %v3096 = vunpack.c.l.b16 %v2244
    %v3097 = vunpack.c.h.b16 %v2244
    %v3098 = vunpack.c.l.b16 %v2245
    %v3099 = vunpack.c.h.b16 %v2245
    %v3100 = vunpack.c.l.b16 %v2246
    %v3101 = vunpack.c.h.b16 %v2246
    %v3102 = vunpack.c.l.b16 %v2247
    %v3103 = vunpack.c.h.b16 %v2247
    %v3104 = vunpack.c.l.b16 %v2248
    %v3105 = vunpack.c.h.b16 %v2248
    %v3106 = vunpack.c.l.b16 %v2249
    %v3107 = vunpack.c.h.b16 %v2249
    %v3108 = vunpack.c.l.b16 %v2250
    %v3109 = vunpack.c.h.b16 %v2250
    %v3110 = vunpack.c.l.b16 %v2251
    %v3111 = vunpack.c.h.b16 %v2251
    %v3112 = vunpack.c.l.b16 %v2252
    %v3113 = vunpack.c.h.b16 %v2252
    %v3114 = vunpack.c.l.b16 %v2253
    %v3115 = vunpack.c.h.b16 %v2253
    %v3116 = vunpack.c.l.b16 %v2254
    %v3117 = vunpack.c.h.b16 %v2254
    %v3118 = vunpack.c.l.b16 %v2255
    %v3119 = vunpack.c.h.b16 %v2255
    %v3120 = vunpack.c.l.b16 %v2256
    %v3121 = vunpack.c.h.b16 %v2256
    %v3122 = vunpack.c.l.b16 %v2257
    %v3123 = vunpack.c.h.b16 %v2257
    %v3124 = vunpack.c.l.b16 %v2258
    %v3125 = vunpack.c.h.b16 %v2258
    %v3126 = vunpack.c.l.b16 %v2259
    %v3127 = vunpack.c.h.b16 %v2259
    %v3128 = vunpack.c.l.b16 %v2260
    %v3129 = vunpack.c.h.b16 %v2260
    %v3130 = vunpack.c.l.b16 %v2261
    %v3131 = vunpack.c.h.b16 %v2261
    %v3132 = vunpack.c.l.b16 %v2262
    %v3133 = vunpack.c.h.b16 %v2262
    %v3134 = vunpack.c.l.b16 %v2263
    %v3135 = vunpack.c.h.b16 %v2263
    %v3136 = vunpack.c.l.b16 %v2264
    %v3137 = vunpack.c.h.b16 %v2264
    %v3138 = vunpack.c.l.b16 %v2265
    %v3139 = vunpack.c.h.b16 %v2265
    %v3140 = vunpack.c.l.b16 %v2266
    %v3141 = vunpack.c.h.b16 %v2266
    %v3142 = vunpack.c.l.b16 %v2267
    %v3143 = vunpack.c.h.b16 %v2267
    %v3144 = vunpack.c.l.b16 %v2268
    %v3145 = vunpack.c.h.b16 %v2268
    %v3146 = vunpack.c.l.b16 %v2269
    %v3147 = vunpack.c.h.b16 %v2269
    %v3148 = vunpack.c.l.b16 %v2270
    %v3149 = vunpack.c.h.b16 %v2270
    %v3150 = vunpack.c.l.b16 %v2271
    %v3151 = vunpack.c.h.b16 %v2271
    %v3152 = vunpack.c.l.b16 %v2272
    %v3153 = vunpack.c.h.b16 %v2272
    %v3154 = vunpack.c.l.b16 %v2273
    %v3155 = vunpack.c.h.b16 %v2273
    %v3156 = vunpack.c.l.b16 %v2274
    %v3157 = vunpack.c.h.b16 %v2274
    %v3158 = vunpack.c.l.b16 %v2275
    %v3159 = vunpack.c.h.b16 %v2275
    %v3160 = vunpack.c.l.b16 %v2276
    %v3161 = vunpack.c.h.b16 %v2276
    %v3162 = vunpack.c.l.b16 %v2277
    %v3163 = vunpack.c.h.b16 %v2277
    %v3164 = vunpack.c.l.b16 %v2278
    %v3165 = vunpack.c.h.b16 %v2278
    %v3166 = vunpack.c.l.b16 %v2279
    %v3167 = vunpack.c.h.b16 %v2279
    %v3168 = vunpack.c.l.b16 %v2280
    %v3169 = vunpack.c.h.b16 %v2280
    %v3170 = vunpack.c.l.b16 %v2281
    %v3171 = vunpack.c.h.b16 %v2281
    %v3172 = vunpack.c.l.b16 %v2282
    %v3173 = vunpack.c.h.b16 %v2282
    %v3174 = vunpack.c.l.b16 %v2283
    %v3175 = vunpack.c.h.b16 %v2283
    %v3176 = vunpack.c.l.b16 %v2284
    %v3177 = vunpack.c.h.b16 %v2284
    %v3178 = vunpack.c.l.b16 %v2285
    %v3179 = vunpack.c.h.b16 %v2285
    %v3180 = vunpack.c.l.b16 %v2286
    %v3181 = vunpack.c.h.b16 %v2286
    %v3182 = vunpack.c.l.b16 %v2287
    %v3183 = vunpack.c.h.b16 %v2287
    %v3184 = vunpack.c.l.b16 %v2288
    %v3185 = vunpack.c.h.b16 %v2288
    %v3186 = vunpack.c.l.b16 %v2289
    %v3187 = vunpack.c.h.b16 %v2289
    %v3188 = vunpack.c.l.b16 %v2290
    %v3189 = vunpack.c.h.b16 %v2290
    %v3190 = vunpack.c.l.b16 %v2291
    %v3191 = vunpack.c.h.b16 %v2291
    %v3192 = vunpack.c.l.b16 %v2292
    %v3193 = vunpack.c.h.b16 %v2292
    %v3194 = vunpack.c.l.b16 %v2293
    %v3195 = vunpack.c.h.b16 %v2293
    %v3196 = vunpack.c.l.b16 %v2294
    %v3197 = vunpack.c.h.b16 %v2294
    %v3198 = vunpack.c.l.b16 %v2295
    %v3199 = vunpack.c.h.b16 %v2295
    %v3200 = vunpack.c.l.b16 %v2296
    %v3201 = vunpack.c.h.b16 %v2296
    %v3202 = vunpack.c.l.b16 %v2297
    %v3203 = vunpack.c.h.b16 %v2297
    %v3204 = vunpack.c.l.b16 %v2298
    %v3205 = vunpack.c.h.b16 %v2298
    %v3206 = vunpack.c.l.b16 %v2299
    %v3207 = vunpack.c.h.b16 %v2299
    %v3208 = vunpack.c.l.b16 %v2300
    %v3209 = vunpack.c.h.b16 %v2300
    %v3210 = vunpack.c.l.b16 %v2301
    %v3211 = vunpack.c.h.b16 %v2301
    %v3212 = vunpack.c.l.b16 %v2302
    %v3213 = vunpack.c.h.b16 %v2302
    %v3214 = vunpack.c.l.b16 %v2303
    %v3215 = vunpack.c.h.b16 %v2303
    %v3216 = vunpack.c.l.b16 %v2304
    %v3217 = vunpack.c.h.b16 %v2304
    %v3218 = vunpack.c.l.b16 %v2305
    %v3219 = vunpack.c.h.b16 %v2305
    %v3220 = vunpack.c.l.b16 %v2306
    %v3221 = vunpack.c.h.b16 %v2306
    %v3222 = vunpack.c.l.b16 %v2307
    %v3223 = vunpack.c.h.b16 %v2307
    %v3224 = vunpack.c.l.b16 %v2308
    %v3225 = vunpack.c.h.b16 %v2308
    %v3226 = vunpack.c.l.b16 %v2309
    %v3227 = vunpack.c.h.b16 %v2309
    %v3228 = vunpack.c.l.b16 %v2310
    %v3229 = vunpack.c.h.b16 %v2310
    %v3230 = vunpack.c.l.b16 %v2311
    %v3231 = vunpack.c.h.b16 %v2311
    %v3232 = vunpack.c.l.b16 %v2312
    %v3233 = vunpack.c.h.b16 %v2312
    %v3234 = vunpack.c.l.b16 %v2313
    %v3235 = vunpack.c.h.b16 %v2313
    %v3236 = vunpack.c.l.b16 %v2314
    %v3237 = vunpack.c.h.b16 %v2314
    %v3238 = vunpack.c.l.b16 %v2315
    %v3239 = vunpack.c.h.b16 %v2315
    %v3240 = vunpack.c.l.b16 %v2316
    %v3241 = vunpack.c.h.b16 %v2316
    %v3242 = vunpack.c.l.b16 %v2317
    %v3243 = vunpack.c.h.b16 %v2317
    %v3244 = vunpack.c.l.b16 %v2318
    %v3245 = vunpack.c.h.b16 %v2318
    %v3246 = vunpack.c.l.b16 %v2319
    %v3247 = vunpack.c.h.b16 %v2319
    %v3248 = vunpack.c.l.b16 %v2320
    %v3249 = vunpack.c.h.b16 %v2320
    %v3250 = vunpack.c.l.b16 %v2321
    %v3251 = vunpack.c.h.b16 %v2321
    %v3252 = vunpack.c.l.b16 %v2322
    %v3253 = vunpack.c.h.b16 %v2322
    %v3254 = vunpack.c.l.b16 %v2323
    %v3255 = vunpack.c.h.b16 %v2323
    %v3256 = vunpack.c.l.b16 %v2324
    %v3257 = vunpack.c.h.b16 %v2324
    %v3258 = vunpack.c.l.b16 %v2325
    %v3259 = vunpack.c.h.b16 %v2325
    %v3260 = vunpack.c.l.b16 %v2326
    %v3261 = vunpack.c.h.b16 %v2326
    %v3262 = vunpack.c.l.b16 %v2327
    %v3263 = vunpack.c.h.b16 %v2327
    %v3264 = vunpack.c.l.b16 %v2328
    %v3265 = vunpack.c.h.b16 %v2328
    %v3266 = vunpack.c.l.b16 %v2329
    %v3267 = vunpack.c.h.b16 %v2329
    %v3268 = vunpack.c.l.b16 %v2330
    %v3269 = vunpack.c.h.b16 %v2330
    %v3270 = vunpack.c.l.b16 %v2331
    %v3271 = vunpack.c.h.b16 %v2331
    %v3272 = vunpack.c.l.b16 %v2332
    %v3273 = vunpack.c.h.b16 %v2332
    %v3274 = vunpack.c.l.b16 %v2333
    %v3275 = vunpack.c.h.b16 %v2333
    %v3276 = vunpack.c.l.b16 %v2334
    %v3277 = vunpack.c.h.b16 %v2334
    %v3278 = vunpack.c.l.b16 %v2335
    %v3279 = vunpack.c.h.b16 %v2335
    %v3280 = vunpack.c.l.b16 %v2336
    %v3281 = vunpack.c.h.b16 %v2336
    %v3282 = vunpack.c.l.b16 %v2337
    %v3283 = vunpack.c.h.b16 %v2337
    %v3284 = vunpack.c.l.b16 %v2338
    %v3285 = vunpack.c.h.b16 %v2338
    %v3286 = vunpack.c.l.b16 %v2339
    %v3287 = vunpack.c.h.b16 %v2339
    %v3288 = vunpack.c.l.b16 %v2340
    %v3289 = vunpack.c.h.b16 %v2340
    %v3290 = vunpack.c.l.b16 %v2341
    %v3291 = vunpack.c.h.b16 %v2341
    %v3292 = vunpack.c.l.b16 %v2342
    %v3293 = vunpack.c.h.b16 %v2342
    %v3294 = vunpack.c.l.b16 %v2343
    %v3295 = vunpack.c.h.b16 %v2343
    %v3296 = vunpack.c.l.b16 %v2344
    %v3297 = vunpack.c.h.b16 %v2344
    %v3298 = vunpack.c.l.b16 %v2345
    %v3299 = vunpack.c.h.b16 %v2345
    %v3300 = vunpack.c.l.b16 %v2346
    %v3301 = vunpack.c.h.b16 %v2346
    %v3302 = vunpack.c.l.b16 %v2347
    %v3303 = vunpack.c.h.b16 %v2347
    %v3304 = vunpack.c.l.b16 %v2348
    %v3305 = vunpack.c.h.b16 %v2348
    %v3306 = vunpack.c.l.b16 %v2349
    %v3307 = vunpack.c.h.b16 %v2349
    %v3308 = vunpack.c.l.b16 %v2350
    %v3309 = vunpack.c.h.b16 %v2350
    %v3310 = vunpack.c.l.b16 %v2351
    %v3311 = vunpack.c.h.b16 %v2351
    %v3312 = vunpack.c.l.b16 %v2352
    %v3313 = vunpack.c.h.b16 %v2352
    %v3314 = vunpack.c.l.b16 %v2353
    %v3315 = vunpack.c.h.b16 %v2353
    %v3316 = vunpack.c.l.b16 %v2354
    %v3317 = vunpack.c.h.b16 %v2354
    %v3318 = vunpack.c.l.b16 %v2355
    %v3319 = vunpack.c.h.b16 %v2355
    %v3320 = vunpack.c.l.b16 %v2356
    %v3321 = vunpack.c.h.b16 %v2356
    %v3322 = vunpack.c.l.b16 %v2357
    %v3323 = vunpack.c.h.b16 %v2357
    %v3324 = vunpack.c.l.b16 %v2358
    %v3325 = vunpack.c.h.b16 %v2358
    %v3326 = vunpack.c.l.b16 %v2359
    %v3327 = vunpack.c.h.b16 %v2359
    %v3328 = vunpack.c.l.b16 %v2360
    %v3329 = vunpack.c.h.b16 %v2360
    %v3330 = vunpack.c.l.b16 %v2361
    %v3331 = vunpack.c.h.b16 %v2361
    %v3332 = vunpack.c.l.b16 %v2362
    %v3333 = vunpack.c.h.b16 %v2362
    %v3334 = vunpack.c.l.b16 %v2363
    %v3335 = vunpack.c.h.b16 %v2363
    %v3336 = vunpack.c.l.b16 %v2364
    %v3337 = vunpack.c.h.b16 %v2364
    %v3338 = vunpack.c.l.b16 %v2365
    %v3339 = vunpack.c.h.b16 %v2365
    %v3340 = vunpack.c.l.b16 %v2366
    %v3341 = vunpack.c.h.b16 %v2366
    %v3342 = vunpack.c.l.b16 %v2367
    %v3343 = vunpack.c.h.b16 %v2367
    %v3344 = vunpack.c.l.b16 %v2368
    %v3345 = vunpack.c.h.b16 %v2368
    %v3346 = vunpack.c.l.b16 %v2369
    %v3347 = vunpack.c.h.b16 %v2369
    %v3348 = vunpack.c.l.b16 %v2370
    %v3349 = vunpack.c.h.b16 %v2370
    %v3350 = vunpack.c.l.b16 %v2371
    %v3351 = vunpack.c.h.b16 %v2371
    %v3352 = vunpack.c.l.b16 %v2372
    %v3353 = vunpack.c.h.b16 %v2372
    %v3354 = vunpack.c.l.b16 %v2373
    %v3355 = vunpack.c.h.b16 %v2373
    %v3356 = vpack.c.b16 %v2720, %v2716
    %v3357 = vpack.c.b16 %v2721, %v2717
    %v3358 = vpack.c.b16 %v2722, %v2718
    %v3359 = vpack.c.b16 %v2723, %v2719
    %v3360 = vpack.c.b16 %v2728, %v2724
    %v3361 = vpack.c.b16 %v2729, %v2725
    %v3362 = vpack.c.b16 %v2730, %v2726
    %v3363 = vpack.c.b16 %v2731, %v2727
    %v3364 = vpack.c.b16 %v2736, %v2732
    %v3365 = vpack.c.b16 %v2737, %v2733
    %v3366 = vpack.c.b16 %v2738, %v2734
    %v3367 = vpack.c.b16 %v2739, %v2735
    %v3368 = vpack.c.b16 %v2744, %v2740
    %v3369 = vpack.c.b16 %v2745, %v2741
    %v3370 = vpack.c.b16 %v2746, %v2742
    %v3371 = vpack.c.b16 %v2747, %v2743
    %v3372 = vpack.c.b16 %v2752, %v2748
    %v3373 = vpack.c.b16 %v2753, %v2749
    %v3374 = vpack.c.b16 %v2754, %v2750
    %v3375 = vpack.c.b16 %v2755, %v2751
    %v3376 = vpack.c.b16 %v2760, %v2756
    %v3377 = vpack.c.b16 %v2761, %v2757
    %v3378 = vpack.c.b16 %v2762, %v2758
    %v3379 = vpack.c.b16 %v2763, %v2759
    %v3380 = vpack.c.b16 %v2768, %v2764
    %v3381 = vpack.c.b16 %v2769, %v2765
    %v3382 = vpack.c.b16 %v2770, %v2766
    %v3383 = vpack.c.b16 %v2771, %v2767
    %v3384 = vpack.c.b16 %v2776, %v2772
    %v3385 = vpack.c.b16 %v2777, %v2773
    %v3386 = vpack.c.b16 %v2778, %v2774
    %v3387 = vpack.c.b16 %v2779, %v2775
    %v3388 = vpack.c.b16 %v2784, %v2780
    %v3389 = vpack.c.b16 %v2785, %v2781
    %v3390 = vpack.c.b16 %v2786, %v2782
    %v3391 = vpack.c.b16 %v2787, %v2783
    %v3392 = vpack.c.b16 %v2792, %v2788
    %v3393 = vpack.c.b16 %v2793, %v2789
    %v3394 = vpack.c.b16 %v2794, %v2790
    %v3395 = vpack.c.b16 %v2795, %v2791
    %v3396 = vpack.c.b16 %v2800, %v2796
    %v3397 = vpack.c.b16 %v2801, %v2797
    %v3398 = vpack.c.b16 %v2802, %v2798
    %v3399 = vpack.c.b16 %v2803, %v2799
    %v3400 = vpack.c.b16 %v2808, %v2804
    %v3401 = vpack.c.b16 %v2809, %v2805
    %v3402 = vpack.c.b16 %v2810, %v2806
    %v3403 = vpack.c.b16 %v2811, %v2807
    %v3404 = vpack.c.b16 %v2816, %v2812
    %v3405 = vpack.c.b16 %v2817, %v2813
    %v3406 = vpack.c.b16 %v2818, %v2814
    %v3407 = vpack.c.b16 %v2819, %v2815
    %v3408 = vpack.c.b16 %v2824, %v2820
    %v3409 = vpack.c.b16 %v2825, %v2821
    %v3410 = vpack.c.b16 %v2826, %v2822
    %v3411 = vpack.c.b16 %v2827, %v2823
    %v3412 = vpack.c.b16 %v2832, %v2828
    %v3413 = vpack.c.b16 %v2833, %v2829
    %v3414 = vpack.c.b16 %v2834, %v2830
    %v3415 = vpack.c.b16 %v2835, %v2831
    %v3416 = vpack.c.b16 %v2840, %v2836
    %v3417 = vpack.c.b16 %v2841, %v2837
    %v3418 = vpack.c.b16 %v2842, %v2838
    %v3419 = vpack.c.b16 %v2843, %v2839
    %v3420 = vpack.c.b16 %v2848, %v2844
    %v3421 = vpack.c.b16 %v2849, %v2845
    %v3422 = vpack.c.b16 %v2850, %v2846
    %v3423 = vpack.c.b16 %v2851, %v2847
    %v3424 = vpack.c.b16 %v2856, %v2852
    %v3425 = vpack.c.b16 %v2857, %v2853
    %v3426 = vpack.c.b16 %v2858, %v2854
    %v3427 = vpack.c.b16 %v2859, %v2855
    %v3428 = vpack.c.b16 %v2864, %v2860
    %v3429 = vpack.c.b16 %v2865, %v2861
    %v3430 = vpack.c.b16 %v2866, %v2862
    %v3431 = vpack.c.b16 %v2867, %v2863
    %v3432 = vpack.c.b16 %v2872, %v2868
    %v3433 = vpack.c.b16 %v2873, %v2869
    %v3434 = vpack.c.b16 %v2874, %v2870
    %v3435 = vpack.c.b16 %v2875, %v2871
    %v3436 = vpack.c.b16 %v2880, %v2876
    %v3437 = vpack.c.b16 %v2881, %v2877
    %v3438 = vpack.c.b16 %v2882, %v2878
    %v3439 = vpack.c.b16 %v2883, %v2879
    %v3440 = vpack.c.b16 %v2888, %v2884
    %v3441 = vpack.c.b16 %v2889, %v2885
    %v3442 = vpack.c.b16 %v2890, %v2886
    %v3443 = vpack.c.b16 %v2891, %v2887
    %v3444 = vpack.c.b16 %v2896, %v2892
    %v3445 = vpack.c.b16 %v2897, %v2893
    %v3446 = vpack.c.b16 %v2898, %v2894
    %v3447 = vpack.c.b16 %v2899, %v2895
    %v3448 = vpack.c.b16 %v2904, %v2900
    %v3449 = vpack.c.b16 %v2905, %v2901
    %v3450 = vpack.c.b16 %v2906, %v2902
    %v3451 = vpack.c.b16 %v2907, %v2903
    %v3452 = vpack.c.b16 %v2912, %v2908
    %v3453 = vpack.c.b16 %v2913, %v2909
    %v3454 = vpack.c.b16 %v2914, %v2910
    %v3455 = vpack.c.b16 %v2915, %v2911
    %v3456 = vpack.c.b16 %v2920, %v2916
    %v3457 = vpack.c.b16 %v2921, %v2917
    %v3458 = vpack.c.b16 %v2922, %v2918
    %v3459 = vpack.c.b16 %v2923, %v2919
    %v3460 = vpack.c.b16 %v2928, %v2924
    %v3461 = vpack.c.b16 %v2929, %v2925
    %v3462 = vpack.c.b16 %v2930, %v2926
    %v3463 = vpack.c.b16 %v2931, %v2927
    %v3464 = vpack.c.b16 %v2936, %v2932
    %v3465 = vpack.c.b16 %v2937, %v2933
    %v3466 = vpack.c.b16 %v2938, %v2934
    %v3467 = vpack.c.b16 %v2939, %v2935
    %v3468 = vpack.c.b16 %v2944, %v2940
    %v3469 = vpack.c.b16 %v2945, %v2941
    %v3470 = vpack.c.b16 %v2946, %v2942
    %v3471 = vpack.c.b16 %v2947, %v2943
    %v3472 = vpack.c.b16 %v2952, %v2948
    %v3473 = vpack.c.b16 %v2953, %v2949
    %v3474 = vpack.c.b16 %v2954, %v2950
    %v3475 = vpack.c.b16 %v2955, %v2951
    %v3476 = vpack.c.b16 %v2960, %v2956
    %v3477 = vpack.c.b16 %v2961, %v2957
    %v3478 = vpack.c.b16 %v2962, %v2958
    %v3479 = vpack.c.b16 %v2963, %v2959
    %v3480 = vpack.c.b16 %v2968, %v2964
    %v3481 = vpack.c.b16 %v2969, %v2965
    %v3482 = vpack.c.b16 %v2970, %v2966
    %v3483 = vpack.c.b16 %v2971, %v2967
    %v3484 = vpack.c.b16 %v2976, %v2972
    %v3485 = vpack.c.b16 %v2977, %v2973
    %v3486 = vpack.c.b16 %v2978, %v2974
    %v3487 = vpack.c.b16 %v2979, %v2975
    %v3488 = vpack.c.b16 %v2984, %v2980
    %v3489 = vpack.c.b16 %v2985, %v2981
    %v3490 = vpack.c.b16 %v2986, %v2982
    %v3491 = vpack.c.b16 %v2987, %v2983
    %v3492 = vpack.c.b16 %v2992, %v2988
    %v3493 = vpack.c.b16 %v2993, %v2989
    %v3494 = vpack.c.b16 %v2994, %v2990
    %v3495 = vpack.c.b16 %v2995, %v2991
    %v3496 = vpack.c.b16 %v3000, %v2996
    %v3497 = vpack.c.b16 %v3001, %v2997
    %v3498 = vpack.c.b16 %v3002, %v2998
    %v3499 = vpack.c.b16 %v3003, %v2999
    %v3500 = vpack.c.b16 %v3008, %v3004
    %v3501 = vpack.c.b16 %v3009, %v3005
    %v3502 = vpack.c.b16 %v3010, %v3006
    %v3503 = vpack.c.b16 %v3011, %v3007
    %v3504 = vpack.c.b16 %v3016, %v3012
    %v3505 = vpack.c.b16 %v3017, %v3013
    %v3506 = vpack.c.b16 %v3018, %v3014
    %v3507 = vpack.c.b16 %v3019, %v3015
    %v3508 = vpack.c.b16 %v3024, %v3020
    %v3509 = vpack.c.b16 %v3025, %v3021
    %v3510 = vpack.c.b16 %v3026, %v3022
    %v3511 = vpack.c.b16 %v3027, %v3023
    %v3512 = vpack.c.b16 %v3032, %v3028
    %v3513 = vpack.c.b16 %v3033, %v3029
    %v3514 = vpack.c.b16 %v3034, %v3030
    %v3515 = vpack.c.b16 %v3035, %v3031
    %v3516 = vpack.c.b16 %v3040, %v3036
    %v3517 = vpack.c.b16 %v3041, %v3037
    %v3518 = vpack.c.b16 %v3042, %v3038
    %v3519 = vpack.c.b16 %v3043, %v3039
    %v3520 = vpack.c.b16 %v3048, %v3044
    %v3521 = vpack.c.b16 %v3049, %v3045
    %v3522 = vpack.c.b16 %v3050, %v3046
    %v3523 = vpack.c.b16 %v3051, %v3047
    %v3524 = vpack.c.b16 %v3056, %v3052
    %v3525 = vpack.c.b16 %v3057, %v3053
    %v3526 = vpack.c.b16 %v3058, %v3054
    %v3527 = vpack.c.b16 %v3059, %v3055
    %v3528 = vpack.c.b16 %v3064, %v3060
    %v3529 = vpack.c.b16 %v3065, %v3061
    %v3530 = vpack.c.b16 %v3066, %v3062
    %v3531 = vpack.c.b16 %v3067, %v3063
    %v3532 = vpack.c.b16 %v3072, %v3068
    %v3533 = vpack.c.b16 %v3073, %v3069
    %v3534 = vpack.c.b16 %v3074, %v3070
    %v3535 = vpack.c.b16 %v3075, %v3071
    %v3536 = vpack.c.b16 %v3080, %v3076
    %v3537 = vpack.c.b16 %v3081, %v3077
    %v3538 = vpack.c.b16 %v3082, %v3078
    %v3539 = vpack.c.b16 %v3083, %v3079
    %v3540 = vpack.c.b16 %v3088, %v3084
    %v3541 = vpack.c.b16 %v3089, %v3085
    %v3542 = vpack.c.b16 %v3090, %v3086
    %v3543 = vpack.c.b16 %v3091, %v3087
    %v3544 = vpack.c.b16 %v3096, %v3092
    %v3545 = vpack.c.b16 %v3097, %v3093
    %v3546 = vpack.c.b16 %v3098, %v3094
    %v3547 = vpack.c.b16 %v3099, %v3095
    %v3548 = vpack.c.b16 %v3104, %v3100
    %v3549 = vpack.c.b16 %v3105, %v3101
    %v3550 = vpack.c.b16 %v3106, %v3102
    %v3551 = vpack.c.b16 %v3107, %v3103
    %v3552 = vpack.c.b16 %v3112, %v3108
    %v3553 = vpack.c.b16 %v3113, %v3109
    %v3554 = vpack.c.b16 %v3114, %v3110
    %v3555 = vpack.c.b16 %v3115, %v3111
    %v3556 = vpack.c.b16 %v3120, %v3116
    %v3557 = vpack.c.b16 %v3121, %v3117
    %v3558 = vpack.c.b16 %v3122, %v3118
    %v3559 = vpack.c.b16 %v3123, %v3119
    %v3560 = vpack.c.b16 %v3128, %v3124
    %v3561 = vpack.c.b16 %v3129, %v3125
    %v3562 = vpack.c.b16 %v3130, %v3126
    %v3563 = vpack.c.b16 %v3131, %v3127
    %v3564 = vpack.c.b16 %v3136, %v3132
    %v3565 = vpack.c.b16 %v3137, %v3133
    %v3566 = vpack.c.b16 %v3138, %v3134
    %v3567 = vpack.c.b16 %v3139, %v3135
    %v3568 = vpack.c.b16 %v3144, %v3140
    %v3569 = vpack.c.b16 %v3145, %v3141
    %v3570 = vpack.c.b16 %v3146, %v3142
    %v3571 = vpack.c.b16 %v3147, %v3143
    %v3572 = vpack.c.b16 %v3152, %v3148
    %v3573 = vpack.c.b16 %v3153, %v3149
    %v3574 = vpack.c.b16 %v3154, %v3150
    %v3575 = vpack.c.b16 %v3155, %v3151
    %v3576 = vpack.c.b16 %v3160, %v3156
    %v3577 = vpack.c.b16 %v3161, %v3157
    %v3578 = vpack.c.b16 %v3162, %v3158
    %v3579 = vpack.c.b16 %v3163, %v3159
    %v3580 = vpack.c.b16 %v3168, %v3164
    %v3581 = vpack.c.b16 %v3169, %v3165
    %v3582 = vpack.c.b16 %v3170, %v3166
    %v3583 = vpack.c.b16 %v3171, %v3167
    %v3584 = vpack.c.b16 %v3176, %v3172
    %v3585 = vpack.c.b16 %v3177, %v3173
    %v3586 = vpack.c.b16 %v3178, %v3174
    %v3587 = vpack.c.b16 %v3179, %v3175
    %v3588 = vpack.c.b16 %v3184, %v3180
    %v3589 = vpack.c.b16 %v3185, %v3181
    %v3590 = vpack.c.b16 %v3186, %v3182
    %v3591 = vpack.c.b16 %v3187, %v3183
    %v3592 = vpack.c.b16 %v3192, %v3188
    %v3593 = vpack.c.b16 %v3193, %v3189
    %v3594 = vpack.c.b16 %v3194, %v3190
    %v3595 = vpack.c.b16 %v3195, %v3191
    %v3596 = vpack.c.b16 %v3200, %v3196
    %v3597 = vpack.c.b16 %v3201, %v3197
    %v3598 = vpack.c.b16 %v3202, %v3198
    %v3599 = vpack.c.b16 %v3203, %v3199
    %v3600 = vpack.c.b16 %v3208, %v3204
    %v3601 = vpack.c.b16 %v3209, %v3205
    %v3602 = vpack.c.b16 %v3210, %v3206
    %v3603 = vpack.c.b16 %v3211, %v3207
    %v3604 = vpack.c.b16 %v3216, %v3212
    %v3605 = vpack.c.b16 %v3217, %v3213
    %v3606 = vpack.c.b16 %v3218, %v3214
    %v3607 = vpack.c.b16 %v3219, %v3215
    %v3608 = vpack.c.b16 %v3224, %v3220
    %v3609 = vpack.c.b16 %v3225, %v3221
    %v3610 = vpack.c.b16 %v3226, %v3222
    %v3611 = vpack.c.b16 %v3227, %v3223
    %v3612 = vpack.c.b16 %v3232, %v3228
    %v3613 = vpack.c.b16 %v3233, %v3229
    %v3614 = vpack.c.b16 %v3234, %v3230
    %v3615 = vpack.c.b16 %v3235, %v3231
    %v3616 = vpack.c.b16 %v3240, %v3236
    %v3617 = vpack.c.b16 %v3241, %v3237
    %v3618 = vpack.c.b16 %v3242, %v3238
    %v3619 = vpack.c.b16 %v3243, %v3239
    %v3620 = vpack.c.b16 %v3248, %v3244
    %v3621 = vpack.c.b16 %v3249, %v3245
    %v3622 = vpack.c.b16 %v3250, %v3246
    %v3623 = vpack.c.b16 %v3251, %v3247
    %v3624 = vpack.c.b16 %v3256, %v3252
    %v3625 = vpack.c.b16 %v3257, %v3253
    %v3626 = vpack.c.b16 %v3258, %v3254
    %v3627 = vpack.c.b16 %v3259, %v3255
    %v3628 = vpack.c.b16 %v3264, %v3260
    %v3629 = vpack.c.b16 %v3265, %v3261
    %v3630 = vpack.c.b16 %v3266, %v3262
    %v3631 = vpack.c.b16 %v3267, %v3263
    %v3632 = vpack.c.b16 %v3272, %v3268
    %v3633 = vpack.c.b16 %v3273, %v3269
    %v3634 = vpack.c.b16 %v3274, %v3270
    %v3635 = vpack.c.b16 %v3275, %v3271
    %v3636 = vpack.c.b16 %v3280, %v3276
    %v3637 = vpack.c.b16 %v3281, %v3277
    %v3638 = vpack.c.b16 %v3282, %v3278
    %v3639 = vpack.c.b16 %v3283, %v3279
    %v3640 = vpack.c.b16 %v3288, %v3284
    %v3641 = vpack.c.b16 %v3289, %v3285
    %v3642 = vpack.c.b16 %v3290, %v3286
    %v3643 = vpack.c.b16 %v3291, %v3287
    %v3644 = vpack.c.b16 %v3296, %v3292
    %v3645 = vpack.c.b16 %v3297, %v3293
    %v3646 = vpack.c.b16 %v3298, %v3294
    %v3647 = vpack.c.b16 %v3299, %v3295
    %v3648 = vpack.c.b16 %v3304, %v3300
    %v3649 = vpack.c.b16 %v3305, %v3301
    %v3650 = vpack.c.b16 %v3306, %v3302
    %v3651 = vpack.c.b16 %v3307, %v3303
    %v3652 = vpack.c.b16 %v3312, %v3308
    %v3653 = vpack.c.b16 %v3313, %v3309
    %v3654 = vpack.c.b16 %v3314, %v3310
    %v3655 = vpack.c.b16 %v3315, %v3311
    %v3656 = vpack.c.b16 %v3320, %v3316
    %v3657 = vpack.c.b16 %v3321, %v3317
    %v3658 = vpack.c.b16 %v3322, %v3318
    %v3659 = vpack.c.b16 %v3323, %v3319
    %v3660 = vpack.c.b16 %v3328, %v3324
    %v3661 = vpack.c.b16 %v3329, %v3325
    %v3662 = vpack.c.b16 %v3330, %v3326
    %v3663 = vpack.c.b16 %v3331, %v3327
    %v3664 = vpack.c.b16 %v3336, %v3332
    %v3665 = vpack.c.b16 %v3337, %v3333
    %v3666 = vpack.c.b16 %v3338, %v3334
    %v3667 = vpack.c.b16 %v3339, %v3335
    %v3668 = vpack.c.b16 %v3344, %v3340
    %v3669 = vpack.c.b16 %v3345, %v3341
    %v3670 = vpack.c.b16 %v3346, %v3342
    %v3671 = vpack.c.b16 %v3347, %v3343
    %v3672 = vpack.c.b16 %v3352, %v3348
    %v3673 = vpack.c.b16 %v3353, %v3349
    %v3674 = vpack.c.b16 %v3354, %v3350
    %v3675 = vpack.c.b16 %v3355, %v3351
    %3996 = vmatprep.subr.bf16.mxu0 %v3385
    %3997 = vmatpush1.bf16.msra.mxu0 %v3384
    %3998 = vmatprep.subr.bf16.mxu0 %v3381
    %3999 = vmatpush1.bf16.msra.mxu0 %v3380
    %4000 = vmatprep.subr.bf16.mxu0 %v3377
    %4001 = vmatpush1.bf16.msra.mxu0 %v3376
    %4002 = vmatprep.subr.bf16.mxu0 %v3373
    %4003 = vmatpush1.bf16.msra.mxu0 %v3372
    %4004 = vmatprep.subr.bf16.mxu0 %v3369
    %4005 = vmatpush1.bf16.msra.mxu0 %v3368
    %4006 = vmatprep.subr.bf16.mxu0 %v3365
    %4007 = vmatpush1.bf16.msra.mxu0 %v3364
    %4008 = vmatprep.subr.bf16.mxu0 %v3361
    %4009 = vmatpush1.bf16.msra.mxu0 %v3360
    %4010 = vmatprep.subr.bf16.mxu0 %v3357
    %4011 = vmatpush1.bf16.msra.mxu0 %v3356
    %4012 = vmatprep.subr.bf16.mxu0 %v3417
    %4013 = vmatpush2.bf16.msra.mxu0 %v3416
    %4014 = vmatprep.subr.bf16.mxu0 %v3413
    %4015 = vmatpush2.bf16.msra.mxu0 %v3412
    %4016 = vmatprep.subr.bf16.mxu0 %v3409
    %4017 = vmatpush2.bf16.msra.mxu0 %v3408
    %4018 = vmatprep.subr.bf16.mxu0 %v3405
    %4019 = vmatpush2.bf16.msra.mxu0 %v3404
    %4020 = vmatprep.subr.bf16.mxu0 %v3401
    %4021 = vmatpush2.bf16.msra.mxu0 %v3400
    %4022 = vmatprep.subr.bf16.mxu0 %v3397
    %4023 = vmatpush2.bf16.msra.mxu0 %v3396
    %4024 = vmatprep.subr.bf16.mxu0 %v3393
    %4025 = vmatpush2.bf16.msra.mxu0 %v3392
    %4026 = vmatprep.subr.bf16.mxu0 %v3389
    %4027 = vmatpush2.bf16.msra.mxu0 %v3388
    %4028 = vmatprep.mubr.bf16.mxu0 %v1725
    %4029 = vmatmul.mubr.bf16.gmra.mxu0 %v1725
    %v4030 = vpop.f32.mrf.mxu0
    %v4031 = vadd.f32 %v2379, %v4030
    %v4032 = vpop.f32.mrf.mxu0
    %v4033 = vadd.f32 %v2383, %v4032
    %v4034 = vpop.f32.mrf.mxu0
    %v4035 = vadd.f32 %v2379, %v4034
    %v4036 = vpop.f32.mrf.mxu0
    %v4037 = vadd.f32 %v2383, %v4036
    %4038 = vmatprep.mubr.bf16.mxu0 %v1726
    %4039 = vmatmul.mubr.bf16.gmra.mxu0 %v1726
    %v4040 = vpop.f32.mrf.mxu0
    %v4041 = vadd.f32 %v2379, %v4040
    %v4042 = vpop.f32.mrf.mxu0
    %v4043 = vadd.f32 %v2383, %v4042
    %v4044 = vpop.f32.mrf.mxu0
    %v4045 = vadd.f32 %v2379, %v4044
    %v4046 = vpop.f32.mrf.mxu0
    %v4047 = vadd.f32 %v2383, %v4046
    %4048 = vmatprep.mubr.bf16.mxu0 %v1727
    %4049 = vmatmul.mubr.bf16.gmra.mxu0 %v1727
    %v4050 = vpop.f32.mrf.mxu0
    %v4051 = vadd.f32 %v2379, %v4050
    %v4052 = vpop.f32.mrf.mxu0
    %v4053 = vadd.f32 %v2383, %v4052
    %v4054 = vpop.f32.mrf.mxu0
    %v4055 = vadd.f32 %v2379, %v4054
    %v4056 = vpop.f32.mrf.mxu0
    %v4057 = vadd.f32 %v2383, %v4056
    %4058 = vmatprep.mubr.bf16.mxu0 %v1728
    %4059 = vmatmul.mubr.bf16.gmra.mxu0 %v1728
    %v4060 = vpop.f32.mrf.mxu0
    %v4061 = vadd.f32 %v2379, %v4060
    %v4062 = vpop.f32.mrf.mxu0
    %v4063 = vadd.f32 %v2383, %v4062
    %v4064 = vpop.f32.mrf.mxu0
    %v4065 = vadd.f32 %v2379, %v4064
    %v4066 = vpop.f32.mrf.mxu0
    %v4067 = vadd.f32 %v2383, %v4066
    %4068 = vdwg.mxu0
    %4069 = vmatprep.subr.bf16.mxu0 %v3449
    %4070 = vmatpush1.bf16.msra.mxu0 %v3448
    %4071 = vmatprep.subr.bf16.mxu0 %v3445
    %4072 = vmatpush1.bf16.msra.mxu0 %v3444
    %4073 = vmatprep.subr.bf16.mxu0 %v3441
    %4074 = vmatpush1.bf16.msra.mxu0 %v3440
    %4075 = vmatprep.subr.bf16.mxu0 %v3437
    %4076 = vmatpush1.bf16.msra.mxu0 %v3436
    %4077 = vmatprep.subr.bf16.mxu0 %v3433
    %4078 = vmatpush1.bf16.msra.mxu0 %v3432
    %4079 = vmatprep.subr.bf16.mxu0 %v3429
    %4080 = vmatpush1.bf16.msra.mxu0 %v3428
    %4081 = vmatprep.subr.bf16.mxu0 %v3425
    %4082 = vmatpush1.bf16.msra.mxu0 %v3424
    %4083 = vmatprep.subr.bf16.mxu0 %v3421
    %4084 = vmatpush1.bf16.msra.mxu0 %v3420
    %4085 = vmatprep.subr.bf16.mxu0 %v3481
    %4086 = vmatpush2.bf16.msra.mxu0 %v3480
    %4087 = vmatprep.subr.bf16.mxu0 %v3477
    %4088 = vmatpush2.bf16.msra.mxu0 %v3476
    %4089 = vmatprep.subr.bf16.mxu0 %v3473
    %4090 = vmatpush2.bf16.msra.mxu0 %v3472
    %4091 = vmatprep.subr.bf16.mxu0 %v3469
    %4092 = vmatpush2.bf16.msra.mxu0 %v3468
    %4093 = vmatprep.subr.bf16.mxu0 %v3465
    %4094 = vmatpush2.bf16.msra.mxu0 %v3464
    %4095 = vmatprep.subr.bf16.mxu0 %v3461
    %4096 = vmatpush2.bf16.msra.mxu0 %v3460
    %4097 = vmatprep.subr.bf16.mxu0 %v3457
    %4098 = vmatpush2.bf16.msra.mxu0 %v3456
    %4099 = vmatprep.subr.bf16.mxu0 %v3453
    %4100 = vmatpush2.bf16.msra.mxu0 %v3452
    %4101 = vmatprep.mubr.bf16.mxu0 %v2022
    %4102 = vmatmul.mubr.bf16.gmra.mxu0 %v2018
    %v4103 = vpop.f32.mrf.mxu0
    %v4104 = vadd.f32 %v4031, %v4103
    %v4105 = vpop.f32.mrf.mxu0
    %v4106 = vadd.f32 %v4033, %v4105
    %v4107 = vpop.f32.mrf.mxu0
    %v4108 = vadd.f32 %v4035, %v4107
    %v4109 = vpop.f32.mrf.mxu0
    %v4110 = vadd.f32 %v4037, %v4109
    %4111 = vmatprep.mubr.bf16.mxu0 %v2023
    %4112 = vmatmul.mubr.bf16.gmra.mxu0 %v2019
    %v4113 = vpop.f32.mrf.mxu0
    %v4114 = vadd.f32 %v4041, %v4113
    %v4115 = vpop.f32.mrf.mxu0
    %v4116 = vadd.f32 %v4043, %v4115
    %v4117 = vpop.f32.mrf.mxu0
    %v4118 = vadd.f32 %v4045, %v4117
    %v4119 = vpop.f32.mrf.mxu0
    %v4120 = vadd.f32 %v4047, %v4119
    %4121 = vmatprep.mubr.bf16.mxu0 %v2024
    %4122 = vmatmul.mubr.bf16.gmra.mxu0 %v2020
    %v4123 = vpop.f32.mrf.mxu0
    %v4124 = vadd.f32 %v4051, %v4123
    %v4125 = vpop.f32.mrf.mxu0
    %v4126 = vadd.f32 %v4053, %v4125
    %v4127 = vpop.f32.mrf.mxu0
    %v4128 = vadd.f32 %v4055, %v4127
    %v4129 = vpop.f32.mrf.mxu0
    %v4130 = vadd.f32 %v4057, %v4129
    %4131 = vmatprep.mubr.bf16.mxu0 %v2025
    %4132 = vmatmul.mubr.bf16.gmra.mxu0 %v2021
    %v4133 = vpop.f32.mrf.mxu0
    %v4134 = vadd.f32 %v4061, %v4133
    %v4135 = vpop.f32.mrf.mxu0
    %v4136 = vadd.f32 %v4063, %v4135
    %v4137 = vpop.f32.mrf.mxu0
    %v4138 = vadd.f32 %v4065, %v4137
    %v4139 = vpop.f32.mrf.mxu0
    %v4140 = vadd.f32 %v4067, %v4139
    %4141 = vdwg.mxu0
    %4142 = vmatprep.subr.bf16.mxu0 %v3513
    %4143 = vmatpush1.bf16.msra.mxu0 %v3512
    %4144 = vmatprep.subr.bf16.mxu0 %v3509
    %4145 = vmatpush1.bf16.msra.mxu0 %v3508
    %4146 = vmatprep.subr.bf16.mxu0 %v3505
    %4147 = vmatpush1.bf16.msra.mxu0 %v3504
    %4148 = vmatprep.subr.bf16.mxu0 %v3501
    %4149 = vmatpush1.bf16.msra.mxu0 %v3500
    %4150 = vmatprep.subr.bf16.mxu0 %v3497
    %4151 = vmatpush1.bf16.msra.mxu0 %v3496
    %4152 = vmatprep.subr.bf16.mxu0 %v3493
    %4153 = vmatpush1.bf16.msra.mxu0 %v3492
    %4154 = vmatprep.subr.bf16.mxu0 %v3489
    %4155 = vmatpush1.bf16.msra.mxu0 %v3488
    %4156 = vmatprep.subr.bf16.mxu0 %v3485
    %4157 = vmatpush1.bf16.msra.mxu0 %v3484
    %4158 = vmatprep.subr.bf16.mxu0 %v3545
    %4159 = vmatpush2.bf16.msra.mxu0 %v3544
    %4160 = vmatprep.subr.bf16.mxu0 %v3541
    %4161 = vmatpush2.bf16.msra.mxu0 %v3540
    %4162 = vmatprep.subr.bf16.mxu0 %v3537
    %4163 = vmatpush2.bf16.msra.mxu0 %v3536
    %4164 = vmatprep.subr.bf16.mxu0 %v3533
    %4165 = vmatpush2.bf16.msra.mxu0 %v3532
    %4166 = vmatprep.subr.bf16.mxu0 %v3529
    %4167 = vmatpush2.bf16.msra.mxu0 %v3528
    %4168 = vmatprep.subr.bf16.mxu0 %v3525
    %4169 = vmatpush2.bf16.msra.mxu0 %v3524
    %4170 = vmatprep.subr.bf16.mxu0 %v3521
    %4171 = vmatpush2.bf16.msra.mxu0 %v3520
    %4172 = vmatprep.subr.bf16.mxu0 %v3517
    %4173 = vmatpush2.bf16.msra.mxu0 %v3516
    %4174 = vmatprep.mubr.bf16.mxu0 %v2030
    %4175 = vmatmul.mubr.bf16.gmra.mxu0 %v2026
    %v4176 = vpop.f32.mrf.mxu0
    %v4177 = vadd.f32 %v4104, %v4176
    %v4178 = vpop.f32.mrf.mxu0
    %v4179 = vadd.f32 %v4106, %v4178
    %v4180 = vpop.f32.mrf.mxu0
    %v4181 = vadd.f32 %v4108, %v4180
    %v4182 = vpop.f32.mrf.mxu0
    %v4183 = vadd.f32 %v4110, %v4182
    %4184 = vmatprep.mubr.bf16.mxu0 %v2031
    %4185 = vmatmul.mubr.bf16.gmra.mxu0 %v2027
    %v4186 = vpop.f32.mrf.mxu0
    %v4187 = vadd.f32 %v4114, %v4186
    %v4188 = vpop.f32.mrf.mxu0
    %v4189 = vadd.f32 %v4116, %v4188
    %v4190 = vpop.f32.mrf.mxu0
    %v4191 = vadd.f32 %v4118, %v4190
    %v4192 = vpop.f32.mrf.mxu0
    %v4193 = vadd.f32 %v4120, %v4192
    %4194 = vmatprep.mubr.bf16.mxu0 %v2032
    %4195 = vmatmul.mubr.bf16.gmra.mxu0 %v2028
    %v4196 = vpop.f32.mrf.mxu0
    %v4197 = vadd.f32 %v4124, %v4196
    %v4198 = vpop.f32.mrf.mxu0
    %v4199 = vadd.f32 %v4126, %v4198
    %v4200 = vpop.f32.mrf.mxu0
    %v4201 = vadd.f32 %v4128, %v4200
    %v4202 = vpop.f32.mrf.mxu0
    %v4203 = vadd.f32 %v4130, %v4202
    %4204 = vmatprep.mubr.bf16.mxu0 %v2033
    %4205 = vmatmul.mubr.bf16.gmra.mxu0 %v2029
    %v4206 = vpop.f32.mrf.mxu0
    %v4207 = vadd.f32 %v4134, %v4206
    %v4208 = vpop.f32.mrf.mxu0
    %v4209 = vadd.f32 %v4136, %v4208
    %v4210 = vpop.f32.mrf.mxu0
    %v4211 = vadd.f32 %v4138, %v4210
    %v4212 = vpop.f32.mrf.mxu0
    %v4213 = vadd.f32 %v4140, %v4212
    %4214 = vdwg.mxu0
    %4215 = vmatprep.subr.bf16.mxu0 %v3577
    %4216 = vmatpush1.bf16.msra.mxu0 %v3576
    %4217 = vmatprep.subr.bf16.mxu0 %v3573
    %4218 = vmatpush1.bf16.msra.mxu0 %v3572
    %4219 = vmatprep.subr.bf16.mxu0 %v3569
    %4220 = vmatpush1.bf16.msra.mxu0 %v3568
    %4221 = vmatprep.subr.bf16.mxu0 %v3565
    %4222 = vmatpush1.bf16.msra.mxu0 %v3564
    %4223 = vmatprep.subr.bf16.mxu0 %v3561
    %4224 = vmatpush1.bf16.msra.mxu0 %v3560
    %4225 = vmatprep.subr.bf16.mxu0 %v3557
    %4226 = vmatpush1.bf16.msra.mxu0 %v3556
    %4227 = vmatprep.subr.bf16.mxu0 %v3553
    %4228 = vmatpush1.bf16.msra.mxu0 %v3552
    %4229 = vmatprep.subr.bf16.mxu0 %v3549
    %4230 = vmatpush1.bf16.msra.mxu0 %v3548
    %4231 = vmatprep.subr.bf16.mxu0 %v3609
    %4232 = vmatpush2.bf16.msra.mxu0 %v3608
    %4233 = vmatprep.subr.bf16.mxu0 %v3605
    %4234 = vmatpush2.bf16.msra.mxu0 %v3604
    %4235 = vmatprep.subr.bf16.mxu0 %v3601
    %4236 = vmatpush2.bf16.msra.mxu0 %v3600
    %4237 = vmatprep.subr.bf16.mxu0 %v3597
    %4238 = vmatpush2.bf16.msra.mxu0 %v3596
    %4239 = vmatprep.subr.bf16.mxu0 %v3593
    %4240 = vmatpush2.bf16.msra.mxu0 %v3592
    %4241 = vmatprep.subr.bf16.mxu0 %v3589
    %4242 = vmatpush2.bf16.msra.mxu0 %v3588
    %4243 = vmatprep.subr.bf16.mxu0 %v3585
    %4244 = vmatpush2.bf16.msra.mxu0 %v3584
    %4245 = vmatprep.subr.bf16.mxu0 %v3581
    %4246 = vmatpush2.bf16.msra.mxu0 %v3580
    %4247 = vmatprep.mubr.bf16.mxu0 %v2038
    %4248 = vmatmul.mubr.bf16.gmra.mxu0 %v2034
    %v4249 = vpop.f32.mrf.mxu0
    %v4250 = vadd.f32 %v4177, %v4249
    %v4251 = vpop.f32.mrf.mxu0
    %v4252 = vadd.f32 %v4179, %v4251
    %v4253 = vpop.f32.mrf.mxu0
    %v4254 = vadd.f32 %v4181, %v4253
    %v4255 = vpop.f32.mrf.mxu0
    %v4256 = vadd.f32 %v4183, %v4255
    %4257 = vmatprep.mubr.bf16.mxu0 %v2039
    %4258 = vmatmul.mubr.bf16.gmra.mxu0 %v2035
    %v4259 = vpop.f32.mrf.mxu0
    %v4260 = vadd.f32 %v4187, %v4259
    %v4261 = vpop.f32.mrf.mxu0
    %v4262 = vadd.f32 %v4189, %v4261
    %v4263 = vpop.f32.mrf.mxu0
    %v4264 = vadd.f32 %v4191, %v4263
    %v4265 = vpop.f32.mrf.mxu0
    %v4266 = vadd.f32 %v4193, %v4265
    %4267 = vmatprep.mubr.bf16.mxu0 %v2040
    %4268 = vmatmul.mubr.bf16.gmra.mxu0 %v2036
    %v4269 = vpop.f32.mrf.mxu0
    %v4270 = vadd.f32 %v4197, %v4269
    %v4271 = vpop.f32.mrf.mxu0
    %v4272 = vadd.f32 %v4199, %v4271
    %v4273 = vpop.f32.mrf.mxu0
    %v4274 = vadd.f32 %v4201, %v4273
    %v4275 = vpop.f32.mrf.mxu0
    %v4276 = vadd.f32 %v4203, %v4275
    %4277 = vmatprep.mubr.bf16.mxu0 %v2041
    %4278 = vmatmul.mubr.bf16.gmra.mxu0 %v2037
    %v4279 = vpop.f32.mrf.mxu0
    %v4280 = vadd.f32 %v4207, %v4279
    %v4281 = vpop.f32.mrf.mxu0
    %v4282 = vadd.f32 %v4209, %v4281
    %v4283 = vpop.f32.mrf.mxu0
    %v4284 = vadd.f32 %v4211, %v4283
    %v4285 = vpop.f32.mrf.mxu0
    %v4286 = vadd.f32 %v4213, %v4285
    %4287 = vdwg.mxu0
    %4288 = vmatprep.subr.bf16.mxu0 %v3641
    %4289 = vmatpush1.bf16.msra.mxu0 %v3640
    %4290 = vmatprep.subr.bf16.mxu0 %v3637
    %4291 = vmatpush1.bf16.msra.mxu0 %v3636
    %4292 = vmatprep.subr.bf16.mxu0 %v3633
    %4293 = vmatpush1.bf16.msra.mxu0 %v3632
    %4294 = vmatprep.subr.bf16.mxu0 %v3629
    %4295 = vmatpush1.bf16.msra.mxu0 %v3628
    %4296 = vmatprep.subr.bf16.mxu0 %v3625
    %4297 = vmatpush1.bf16.msra.mxu0 %v3624
    %4298 = vmatprep.subr.bf16.mxu0 %v3621
    %4299 = vmatpush1.bf16.msra.mxu0 %v3620
    %4300 = vmatprep.subr.bf16.mxu0 %v3617
    %4301 = vmatpush1.bf16.msra.mxu0 %v3616
    %4302 = vmatprep.subr.bf16.mxu0 %v3613
    %4303 = vmatpush1.bf16.msra.mxu0 %v3612
    %4304 = vmatprep.subr.bf16.mxu0 %v3673
    %4305 = vmatpush2.bf16.msra.mxu0 %v3672
    %4306 = vmatprep.subr.bf16.mxu0 %v3669
    %4307 = vmatpush2.bf16.msra.mxu0 %v3668
    %4308 = vmatprep.subr.bf16.mxu0 %v3665
    %4309 = vmatpush2.bf16.msra.mxu0 %v3664
    %4310 = vmatprep.subr.bf16.mxu0 %v3661
    %4311 = vmatpush2.bf16.msra.mxu0 %v3660
    %4312 = vmatprep.subr.bf16.mxu0 %v3657
    %4313 = vmatpush2.bf16.msra.mxu0 %v3656
    %4314 = vmatprep.subr.bf16.mxu0 %v3653
    %4315 = vmatpush2.bf16.msra.mxu0 %v3652
    %4316 = vmatprep.subr.bf16.mxu0 %v3649
    %4317 = vmatpush2.bf16.msra.mxu0 %v3648
    %4318 = vmatprep.subr.bf16.mxu0 %v3645
    %4319 = vmatpush2.bf16.msra.mxu0 %v3644
    %4320 = vmatprep.mubr.bf16.mxu0 %v2046
    %4321 = vmatmul.mubr.bf16.gmra.mxu0 %v2042
    %v4322 = vpop.f32.mrf.mxu0
    %v4323 = vadd.f32 %v4250, %v4322
    %v4324 = vpop.f32.mrf.mxu0
    %v4325 = vadd.f32 %v4252, %v4324
    %v4326 = vpop.f32.mrf.mxu0
    %v4327 = vadd.f32 %v4254, %v4326
    %v4328 = vpop.f32.mrf.mxu0
    %v4329 = vadd.f32 %v4256, %v4328
    %4330 = vmatprep.mubr.bf16.mxu0 %v2047
    %4331 = vmatmul.mubr.bf16.gmra.mxu0 %v2043
    %v4332 = vpop.f32.mrf.mxu0
    %v4333 = vadd.f32 %v4260, %v4332
    %v4334 = vpop.f32.mrf.mxu0
    %v4335 = vadd.f32 %v4262, %v4334
    %v4336 = vpop.f32.mrf.mxu0
    %v4337 = vadd.f32 %v4264, %v4336
    %v4338 = vpop.f32.mrf.mxu0
    %v4339 = vadd.f32 %v4266, %v4338
    %4340 = vmatprep.mubr.bf16.mxu0 %v2048
    %4341 = vmatmul.mubr.bf16.gmra.mxu0 %v2044
    %v4342 = vpop.f32.mrf.mxu0
    %v4343 = vadd.f32 %v4270, %v4342
    %v4344 = vpop.f32.mrf.mxu0
    %v4345 = vadd.f32 %v4272, %v4344
    %v4346 = vpop.f32.mrf.mxu0
    %v4347 = vadd.f32 %v4274, %v4346
    %v4348 = vpop.f32.mrf.mxu0
    %v4349 = vadd.f32 %v4276, %v4348
    %4350 = vmatprep.mubr.bf16.mxu0 %v2049
    %4351 = vmatmul.mubr.bf16.gmra.mxu0 %v2045
    %v4352 = vpop.f32.mrf.mxu0
    %v4353 = vadd.f32 %v4280, %v4352
    %v4354 = vpop.f32.mrf.mxu0
    %v4355 = vadd.f32 %v4282, %v4354
    %v4356 = vpop.f32.mrf.mxu0
    %v4357 = vadd.f32 %v4284, %v4356
    %v4358 = vpop.f32.mrf.mxu0
    %v4359 = vadd.f32 %v4286, %v4358
    %4360 = vdwg.mxu0
    %4361 = vmatprep.subr.bf16.mxu0 %v3387
    %4362 = vmatpush1.bf16.msra.mxu0 %v3386
    %4363 = vmatprep.subr.bf16.mxu0 %v3383
    %4364 = vmatpush1.bf16.msra.mxu0 %v3382
    %4365 = vmatprep.subr.bf16.mxu0 %v3379
    %4366 = vmatpush1.bf16.msra.mxu0 %v3378
    %4367 = vmatprep.subr.bf16.mxu0 %v3375
    %4368 = vmatpush1.bf16.msra.mxu0 %v3374
    %4369 = vmatprep.subr.bf16.mxu0 %v3371
    %4370 = vmatpush1.bf16.msra.mxu0 %v3370
    %4371 = vmatprep.subr.bf16.mxu0 %v3367
    %4372 = vmatpush1.bf16.msra.mxu0 %v3366
    %4373 = vmatprep.subr.bf16.mxu0 %v3363
    %4374 = vmatpush1.bf16.msra.mxu0 %v3362
    %4375 = vmatprep.subr.bf16.mxu0 %v3359
    %4376 = vmatpush1.bf16.msra.mxu0 %v3358
    %4377 = vmatprep.subr.bf16.mxu0 %v3419
    %4378 = vmatpush2.bf16.msra.mxu0 %v3418
    %4379 = vmatprep.subr.bf16.mxu0 %v3415
    %4380 = vmatpush2.bf16.msra.mxu0 %v3414
    %4381 = vmatprep.subr.bf16.mxu0 %v3411
    %4382 = vmatpush2.bf16.msra.mxu0 %v3410
    %4383 = vmatprep.subr.bf16.mxu0 %v3407
    %4384 = vmatpush2.bf16.msra.mxu0 %v3406
    %4385 = vmatprep.subr.bf16.mxu0 %v3403
    %4386 = vmatpush2.bf16.msra.mxu0 %v3402
    %4387 = vmatprep.subr.bf16.mxu0 %v3399
    %4388 = vmatpush2.bf16.msra.mxu0 %v3398
    %4389 = vmatprep.subr.bf16.mxu0 %v3395
    %4390 = vmatpush2.bf16.msra.mxu0 %v3394
    %4391 = vmatprep.subr.bf16.mxu0 %v3391
    %4392 = vmatpush2.bf16.msra.mxu0 %v3390
    %4393 = vmatprep.mubr.bf16.mxu0 %v1725
    %4394 = vmatmul.mubr.bf16.gmra.mxu0 %v1725
    %v4395 = vpop.f32.mrf.mxu0
    %v4396 = vadd.f32 %v2387, %v4395
    %v4397 = vpop.f32.mrf.mxu0
    %v4398 = vadd.f32 %v2391, %v4397
    %v4399 = vpop.f32.mrf.mxu0
    %v4400 = vadd.f32 %v2387, %v4399
    %v4401 = vpop.f32.mrf.mxu0
    %v4402 = vadd.f32 %v2391, %v4401
    %4403 = vmatprep.mubr.bf16.mxu0 %v1726
    %4404 = vmatmul.mubr.bf16.gmra.mxu0 %v1726
    %v4405 = vpop.f32.mrf.mxu0
    %v4406 = vadd.f32 %v2387, %v4405
    %v4407 = vpop.f32.mrf.mxu0
    %v4408 = vadd.f32 %v2391, %v4407
    %v4409 = vpop.f32.mrf.mxu0
    %v4410 = vadd.f32 %v2387, %v4409
    %v4411 = vpop.f32.mrf.mxu0
    %v4412 = vadd.f32 %v2391, %v4411
    %4413 = vmatprep.mubr.bf16.mxu0 %v1727
    %4414 = vmatmul.mubr.bf16.gmra.mxu0 %v1727
    %v4415 = vpop.f32.mrf.mxu0
    %v4416 = vadd.f32 %v2387, %v4415
    %v4417 = vpop.f32.mrf.mxu0
    %v4418 = vadd.f32 %v2391, %v4417
    %v4419 = vpop.f32.mrf.mxu0
    %v4420 = vadd.f32 %v2387, %v4419
    %v4421 = vpop.f32.mrf.mxu0
    %v4422 = vadd.f32 %v2391, %v4421
    %4423 = vmatprep.mubr.bf16.mxu0 %v1728
    %4424 = vmatmul.mubr.bf16.gmra.mxu0 %v1728
    %v4425 = vpop.f32.mrf.mxu0
    %v4426 = vadd.f32 %v2387, %v4425
    %v4427 = vpop.f32.mrf.mxu0
    %v4428 = vadd.f32 %v2391, %v4427
    %v4429 = vpop.f32.mrf.mxu0
    %v4430 = vadd.f32 %v2387, %v4429
    %v4431 = vpop.f32.mrf.mxu0
    %v4432 = vadd.f32 %v2391, %v4431
    %4433 = vdwg.mxu0
    %4434 = vmatprep.subr.bf16.mxu0 %v3451
    %4435 = vmatpush1.bf16.msra.mxu0 %v3450
    %4436 = vmatprep.subr.bf16.mxu0 %v3447
    %4437 = vmatpush1.bf16.msra.mxu0 %v3446
    %4438 = vmatprep.subr.bf16.mxu0 %v3443
    %4439 = vmatpush1.bf16.msra.mxu0 %v3442
    %4440 = vmatprep.subr.bf16.mxu0 %v3439
    %4441 = vmatpush1.bf16.msra.mxu0 %v3438
    %4442 = vmatprep.subr.bf16.mxu0 %v3435
    %4443 = vmatpush1.bf16.msra.mxu0 %v3434
    %4444 = vmatprep.subr.bf16.mxu0 %v3431
    %4445 = vmatpush1.bf16.msra.mxu0 %v3430
    %4446 = vmatprep.subr.bf16.mxu0 %v3427
    %4447 = vmatpush1.bf16.msra.mxu0 %v3426
    %4448 = vmatprep.subr.bf16.mxu0 %v3423
    %4449 = vmatpush1.bf16.msra.mxu0 %v3422
    %4450 = vmatprep.subr.bf16.mxu0 %v3483
    %4451 = vmatpush2.bf16.msra.mxu0 %v3482
    %4452 = vmatprep.subr.bf16.mxu0 %v3479
    %4453 = vmatpush2.bf16.msra.mxu0 %v3478
    %4454 = vmatprep.subr.bf16.mxu0 %v3475
    %4455 = vmatpush2.bf16.msra.mxu0 %v3474
    %4456 = vmatprep.subr.bf16.mxu0 %v3471
    %4457 = vmatpush2.bf16.msra.mxu0 %v3470
    %4458 = vmatprep.subr.bf16.mxu0 %v3467
    %4459 = vmatpush2.bf16.msra.mxu0 %v3466
    %4460 = vmatprep.subr.bf16.mxu0 %v3463
    %4461 = vmatpush2.bf16.msra.mxu0 %v3462
    %4462 = vmatprep.subr.bf16.mxu0 %v3459
    %4463 = vmatpush2.bf16.msra.mxu0 %v3458
    %4464 = vmatprep.subr.bf16.mxu0 %v3455
    %4465 = vmatpush2.bf16.msra.mxu0 %v3454
    %4466 = vmatprep.mubr.bf16.mxu0 %v2022
    %4467 = vmatmul.mubr.bf16.gmra.mxu0 %v2018
    %v4468 = vpop.f32.mrf.mxu0
    %v4469 = vadd.f32 %v4396, %v4468
    %v4470 = vpop.f32.mrf.mxu0
    %v4471 = vadd.f32 %v4398, %v4470
    %v4472 = vpop.f32.mrf.mxu0
    %v4473 = vadd.f32 %v4400, %v4472
    %v4474 = vpop.f32.mrf.mxu0
    %v4475 = vadd.f32 %v4402, %v4474
    %4476 = vmatprep.mubr.bf16.mxu0 %v2023
    %4477 = vmatmul.mubr.bf16.gmra.mxu0 %v2019
    %v4478 = vpop.f32.mrf.mxu0
    %v4479 = vadd.f32 %v4406, %v4478
    %v4480 = vpop.f32.mrf.mxu0
    %v4481 = vadd.f32 %v4408, %v4480
    %v4482 = vpop.f32.mrf.mxu0
    %v4483 = vadd.f32 %v4410, %v4482
    %v4484 = vpop.f32.mrf.mxu0
    %v4485 = vadd.f32 %v4412, %v4484
    %4486 = vmatprep.mubr.bf16.mxu0 %v2024
    %4487 = vmatmul.mubr.bf16.gmra.mxu0 %v2020
    %v4488 = vpop.f32.mrf.mxu0
    %v4489 = vadd.f32 %v4416, %v4488
    %v4490 = vpop.f32.mrf.mxu0
    %v4491 = vadd.f32 %v4418, %v4490
    %v4492 = vpop.f32.mrf.mxu0
    %v4493 = vadd.f32 %v4420, %v4492
    %v4494 = vpop.f32.mrf.mxu0
    %v4495 = vadd.f32 %v4422, %v4494
    %4496 = vmatprep.mubr.bf16.mxu0 %v2025
    %4497 = vmatmul.mubr.bf16.gmra.mxu0 %v2021
    %v4498 = vpop.f32.mrf.mxu0
    %v4499 = vadd.f32 %v4426, %v4498
    %v4500 = vpop.f32.mrf.mxu0
    %v4501 = vadd.f32 %v4428, %v4500
    %v4502 = vpop.f32.mrf.mxu0
    %v4503 = vadd.f32 %v4430, %v4502
    %v4504 = vpop.f32.mrf.mxu0
    %v4505 = vadd.f32 %v4432, %v4504
    %4506 = vdwg.mxu0
    %4507 = vmatprep.subr.bf16.mxu0 %v3515
    %4508 = vmatpush1.bf16.msra.mxu0 %v3514
    %4509 = vmatprep.subr.bf16.mxu0 %v3511
    %4510 = vmatpush1.bf16.msra.mxu0 %v3510
    %4511 = vmatprep.subr.bf16.mxu0 %v3507
    %4512 = vmatpush1.bf16.msra.mxu0 %v3506
    %4513 = vmatprep.subr.bf16.mxu0 %v3503
    %4514 = vmatpush1.bf16.msra.mxu0 %v3502
    %4515 = vmatprep.subr.bf16.mxu0 %v3499
    %4516 = vmatpush1.bf16.msra.mxu0 %v3498
    %4517 = vmatprep.subr.bf16.mxu0 %v3495
    %4518 = vmatpush1.bf16.msra.mxu0 %v3494
    %4519 = vmatprep.subr.bf16.mxu0 %v3491
    %4520 = vmatpush1.bf16.msra.mxu0 %v3490
    %4521 = vmatprep.subr.bf16.mxu0 %v3487
    %4522 = vmatpush1.bf16.msra.mxu0 %v3486
    %4523 = vmatprep.subr.bf16.mxu0 %v3547
    %4524 = vmatpush2.bf16.msra.mxu0 %v3546
    %4525 = vmatprep.subr.bf16.mxu0 %v3543
    %4526 = vmatpush2.bf16.msra.mxu0 %v3542
    %4527 = vmatprep.subr.bf16.mxu0 %v3539
    %4528 = vmatpush2.bf16.msra.mxu0 %v3538
    %4529 = vmatprep.subr.bf16.mxu0 %v3535
    %4530 = vmatpush2.bf16.msra.mxu0 %v3534
    %4531 = vmatprep.subr.bf16.mxu0 %v3531
    %4532 = vmatpush2.bf16.msra.mxu0 %v3530
    %4533 = vmatprep.subr.bf16.mxu0 %v3527
    %4534 = vmatpush2.bf16.msra.mxu0 %v3526
    %4535 = vmatprep.subr.bf16.mxu0 %v3523
    %4536 = vmatpush2.bf16.msra.mxu0 %v3522
    %4537 = vmatprep.subr.bf16.mxu0 %v3519
    %4538 = vmatpush2.bf16.msra.mxu0 %v3518
    %4539 = vmatprep.mubr.bf16.mxu0 %v2030
    %4540 = vmatmul.mubr.bf16.gmra.mxu0 %v2026
    %v4541 = vpop.f32.mrf.mxu0
    %v4542 = vadd.f32 %v4469, %v4541
    %v4543 = vpop.f32.mrf.mxu0
    %v4544 = vadd.f32 %v4471, %v4543
    %v4545 = vpop.f32.mrf.mxu0
    %v4546 = vadd.f32 %v4473, %v4545
    %v4547 = vpop.f32.mrf.mxu0
    %v4548 = vadd.f32 %v4475, %v4547
    %4549 = vmatprep.mubr.bf16.mxu0 %v2031
    %4550 = vmatmul.mubr.bf16.gmra.mxu0 %v2027
    %v4551 = vpop.f32.mrf.mxu0
    %v4552 = vadd.f32 %v4479, %v4551
    %v4553 = vpop.f32.mrf.mxu0
    %v4554 = vadd.f32 %v4481, %v4553
    %v4555 = vpop.f32.mrf.mxu0
    %v4556 = vadd.f32 %v4483, %v4555
    %v4557 = vpop.f32.mrf.mxu0
    %v4558 = vadd.f32 %v4485, %v4557
    %4559 = vmatprep.mubr.bf16.mxu0 %v2032
    %4560 = vmatmul.mubr.bf16.gmra.mxu0 %v2028
    %v4561 = vpop.f32.mrf.mxu0
    %v4562 = vadd.f32 %v4489, %v4561
    %v4563 = vpop.f32.mrf.mxu0
    %v4564 = vadd.f32 %v4491, %v4563
    %v4565 = vpop.f32.mrf.mxu0
    %v4566 = vadd.f32 %v4493, %v4565
    %v4567 = vpop.f32.mrf.mxu0
    %v4568 = vadd.f32 %v4495, %v4567
    %4569 = vmatprep.mubr.bf16.mxu0 %v2033
    %4570 = vmatmul.mubr.bf16.gmra.mxu0 %v2029
    %v4571 = vpop.f32.mrf.mxu0
    %v4572 = vadd.f32 %v4499, %v4571
    %v4573 = vpop.f32.mrf.mxu0
    %v4574 = vadd.f32 %v4501, %v4573
    %v4575 = vpop.f32.mrf.mxu0
    %v4576 = vadd.f32 %v4503, %v4575
    %v4577 = vpop.f32.mrf.mxu0
    %v4578 = vadd.f32 %v4505, %v4577
    %4579 = vdwg.mxu0
    %4580 = vmatprep.subr.bf16.mxu0 %v3579
    %4581 = vmatpush1.bf16.msra.mxu0 %v3578
    %4582 = vmatprep.subr.bf16.mxu0 %v3575
    %4583 = vmatpush1.bf16.msra.mxu0 %v3574
    %4584 = vmatprep.subr.bf16.mxu0 %v3571
    %4585 = vmatpush1.bf16.msra.mxu0 %v3570
    %4586 = vmatprep.subr.bf16.mxu0 %v3567
    %4587 = vmatpush1.bf16.msra.mxu0 %v3566
    %4588 = vmatprep.subr.bf16.mxu0 %v3563
    %4589 = vmatpush1.bf16.msra.mxu0 %v3562
    %4590 = vmatprep.subr.bf16.mxu0 %v3559
    %4591 = vmatpush1.bf16.msra.mxu0 %v3558
    %4592 = vmatprep.subr.bf16.mxu0 %v3555
    %4593 = vmatpush1.bf16.msra.mxu0 %v3554
    %4594 = vmatprep.subr.bf16.mxu0 %v3551
    %4595 = vmatpush1.bf16.msra.mxu0 %v3550
    %4596 = vmatprep.subr.bf16.mxu0 %v3611
    %4597 = vmatpush2.bf16.msra.mxu0 %v3610
    %4598 = vmatprep.subr.bf16.mxu0 %v3607
    %4599 = vmatpush2.bf16.msra.mxu0 %v3606
    %4600 = vmatprep.subr.bf16.mxu0 %v3603
    %4601 = vmatpush2.bf16.msra.mxu0 %v3602
    %4602 = vmatprep.subr.bf16.mxu0 %v3599
    %4603 = vmatpush2.bf16.msra.mxu0 %v3598
    %4604 = vmatprep.subr.bf16.mxu0 %v3595
    %4605 = vmatpush2.bf16.msra.mxu0 %v3594
    %4606 = vmatprep.subr.bf16.mxu0 %v3591
    %4607 = vmatpush2.bf16.msra.mxu0 %v3590
    %4608 = vmatprep.subr.bf16.mxu0 %v3587
    %4609 = vmatpush2.bf16.msra.mxu0 %v3586
    %4610 = vmatprep.subr.bf16.mxu0 %v3583
    %4611 = vmatpush2.bf16.msra.mxu0 %v3582
    %4612 = vmatprep.mubr.bf16.mxu0 %v2038
    %4613 = vmatmul.mubr.bf16.gmra.mxu0 %v2034
    %v4614 = vpop.f32.mrf.mxu0
    %v4615 = vadd.f32 %v4542, %v4614
    %v4616 = vpop.f32.mrf.mxu0
    %v4617 = vadd.f32 %v4544, %v4616
    %v4618 = vpop.f32.mrf.mxu0
    %v4619 = vadd.f32 %v4546, %v4618
    %v4620 = vpop.f32.mrf.mxu0
    %v4621 = vadd.f32 %v4548, %v4620
    %4622 = vmatprep.mubr.bf16.mxu0 %v2039
    %4623 = vmatmul.mubr.bf16.gmra.mxu0 %v2035
    %v4624 = vpop.f32.mrf.mxu0
    %v4625 = vadd.f32 %v4552, %v4624
    %v4626 = vpop.f32.mrf.mxu0
    %v4627 = vadd.f32 %v4554, %v4626
    %v4628 = vpop.f32.mrf.mxu0
    %v4629 = vadd.f32 %v4556, %v4628
    %v4630 = vpop.f32.mrf.mxu0
    %v4631 = vadd.f32 %v4558, %v4630
    %4632 = vmatprep.mubr.bf16.mxu0 %v2040
    %4633 = vmatmul.mubr.bf16.gmra.mxu0 %v2036
    %v4634 = vpop.f32.mrf.mxu0
    %v4635 = vadd.f32 %v4562, %v4634
    %v4636 = vpop.f32.mrf.mxu0
    %v4637 = vadd.f32 %v4564, %v4636
    %v4638 = vpop.f32.mrf.mxu0
    %v4639 = vadd.f32 %v4566, %v4638
    %v4640 = vpop.f32.mrf.mxu0
    %v4641 = vadd.f32 %v4568, %v4640
    %4642 = vmatprep.mubr.bf16.mxu0 %v2041
    %4643 = vmatmul.mubr.bf16.gmra.mxu0 %v2037
    %v4644 = vpop.f32.mrf.mxu0
    %v4645 = vadd.f32 %v4572, %v4644
    %v4646 = vpop.f32.mrf.mxu0
    %v4647 = vadd.f32 %v4574, %v4646
    %v4648 = vpop.f32.mrf.mxu0
    %v4649 = vadd.f32 %v4576, %v4648
    %v4650 = vpop.f32.mrf.mxu0
    %v4651 = vadd.f32 %v4578, %v4650
    %4652 = vdwg.mxu0
    %4653 = vmatprep.subr.bf16.mxu0 %v3643
    %4654 = vmatpush1.bf16.msra.mxu0 %v3642
    %4655 = vmatprep.subr.bf16.mxu0 %v3639
    %4656 = vmatpush1.bf16.msra.mxu0 %v3638
    %4657 = vmatprep.subr.bf16.mxu0 %v3635
    %4658 = vmatpush1.bf16.msra.mxu0 %v3634
    %4659 = vmatprep.subr.bf16.mxu0 %v3631
    %4660 = vmatpush1.bf16.msra.mxu0 %v3630
    %4661 = vmatprep.subr.bf16.mxu0 %v3627
    %4662 = vmatpush1.bf16.msra.mxu0 %v3626
    %4663 = vmatprep.subr.bf16.mxu0 %v3623
    %4664 = vmatpush1.bf16.msra.mxu0 %v3622
    %4665 = vmatprep.subr.bf16.mxu0 %v3619
    %4666 = vmatpush1.bf16.msra.mxu0 %v3618
    %4667 = vmatprep.subr.bf16.mxu0 %v3615
    %4668 = vmatpush1.bf16.msra.mxu0 %v3614
    %4669 = vmatprep.subr.bf16.mxu0 %v3675
    %4670 = vmatpush2.bf16.msra.mxu0 %v3674
    %4671 = vmatprep.subr.bf16.mxu0 %v3671
    %4672 = vmatpush2.bf16.msra.mxu0 %v3670
    %4673 = vmatprep.subr.bf16.mxu0 %v3667
    %4674 = vmatpush2.bf16.msra.mxu0 %v3666
    %4675 = vmatprep.subr.bf16.mxu0 %v3663
    %4676 = vmatpush2.bf16.msra.mxu0 %v3662
    %4677 = vmatprep.subr.bf16.mxu0 %v3659
    %4678 = vmatpush2.bf16.msra.mxu0 %v3658
    %4679 = vmatprep.subr.bf16.mxu0 %v3655
    %4680 = vmatpush2.bf16.msra.mxu0 %v3654
    %4681 = vmatprep.subr.bf16.mxu0 %v3651
    %4682 = vmatpush2.bf16.msra.mxu0 %v3650
    %4683 = vmatprep.subr.bf16.mxu0 %v3647
    %4684 = vmatpush2.bf16.msra.mxu0 %v3646
    %4685 = vmatprep.mubr.bf16.mxu0 %v2046
    %4686 = vmatmul.mubr.bf16.gmra.mxu0 %v2042
    %v4687 = vpop.f32.mrf.mxu0
    %v4688 = vadd.f32 %v4615, %v4687
    %v4689 = vpop.f32.mrf.mxu0
    %v4690 = vadd.f32 %v4617, %v4689
    %v4691 = vpop.f32.mrf.mxu0
    %v4692 = vadd.f32 %v4619, %v4691
    %v4693 = vpop.f32.mrf.mxu0
    %v4694 = vadd.f32 %v4621, %v4693
    %4695 = vmatprep.mubr.bf16.mxu0 %v2047
    %4696 = vmatmul.mubr.bf16.gmra.mxu0 %v2043
    %v4697 = vpop.f32.mrf.mxu0
    %v4698 = vadd.f32 %v4625, %v4697
    %v4699 = vpop.f32.mrf.mxu0
    %v4700 = vadd.f32 %v4627, %v4699
    %v4701 = vpop.f32.mrf.mxu0
    %v4702 = vadd.f32 %v4629, %v4701
    %v4703 = vpop.f32.mrf.mxu0
    %v4704 = vadd.f32 %v4631, %v4703
    %4705 = vmatprep.mubr.bf16.mxu0 %v2048
    %4706 = vmatmul.mubr.bf16.gmra.mxu0 %v2044
    %v4707 = vpop.f32.mrf.mxu0
    %v4708 = vadd.f32 %v4635, %v4707
    %v4709 = vpop.f32.mrf.mxu0
    %v4710 = vadd.f32 %v4637, %v4709
    %v4711 = vpop.f32.mrf.mxu0
    %v4712 = vadd.f32 %v4639, %v4711
    %v4713 = vpop.f32.mrf.mxu0
    %v4714 = vadd.f32 %v4641, %v4713
    %4715 = vmatprep.mubr.bf16.mxu0 %v2049
    %4716 = vmatmul.mubr.bf16.gmra.mxu0 %v2045
    %v4717 = vpop.f32.mrf.mxu0
    %v4718 = vadd.f32 %v4645, %v4717
    %v4719 = vpop.f32.mrf.mxu0
    %v4720 = vadd.f32 %v4647, %v4719
    %v4721 = vpop.f32.mrf.mxu0
    %v4722 = vadd.f32 %v4649, %v4721
    %v4723 = vpop.f32.mrf.mxu0
    %v4724 = vadd.f32 %v4651, %v4723
    %4725 = vdwg.mxu0
    %v4726 = vmax.f32 %v4323, 0.0
    %v4727 = vmax.f32 %v4325, 0.0
    %v4728 = vmax.f32 %v4688, 0.0
    %v4729 = vmax.f32 %v4690, 0.0
    %v4730 = vmax.f32 %v4327, 0.0
    %v4731 = vmax.f32 %v4329, 0.0
    %v4732 = vmax.f32 %v4692, 0.0
    %v4733 = vmax.f32 %v4694, 0.0
    %v4734 = vmax.f32 %v4333, 0.0
    %v4735 = vmax.f32 %v4335, 0.0
    %v4736 = vmax.f32 %v4698, 0.0
    %v4737 = vmax.f32 %v4700, 0.0
    %v4738 = vmax.f32 %v4337, 0.0
    %v4739 = vmax.f32 %v4339, 0.0
    %v4740 = vmax.f32 %v4702, 0.0
    %v4741 = vmax.f32 %v4704, 0.0
    %v4742 = vmax.f32 %v4343, 0.0
    %v4743 = vmax.f32 %v4345, 0.0
    %v4744 = vmax.f32 %v4708, 0.0
    %v4745 = vmax.f32 %v4710, 0.0
    %v4746 = vmax.f32 %v4347, 0.0
    %v4747 = vmax.f32 %v4349, 0.0
    %v4748 = vmax.f32 %v4712, 0.0
    %v4749 = vmax.f32 %v4714, 0.0
    %v4750 = vmax.f32 %v4353, 0.0
    %v4751 = vmax.f32 %v4355, 0.0
    %v4752 = vmax.f32 %v4718, 0.0
    %v4753 = vmax.f32 %v4720, 0.0
    %v4754 = vmax.f32 %v4357, 0.0
    %v4755 = vmax.f32 %v4359, 0.0
    %v4756 = vmax.f32 %v4722, 0.0
    %v4757 = vmax.f32 %v4724, 0.0
    %v4758 = vld [vmem:[#allocation14] sm:$0x1]
    %v4759 = vpack.c.bf16 %v4730, %v4726
    %v4760 = vpack.c.bf16 %v4731, %v4727
    %v4761 = vpack.c.bf16 %v4732, %v4728
    %v4762 = vpack.c.bf16 %v4733, %v4729
    %v4763 = vpack.c.bf16 %v4738, %v4734
    %v4764 = vpack.c.bf16 %v4739, %v4735
    %v4765 = vpack.c.bf16 %v4740, %v4736
    %v4766 = vpack.c.bf16 %v4741, %v4737
    %v4767 = vpack.c.bf16 %v4746, %v4742
    %v4768 = vpack.c.bf16 %v4747, %v4743
    %v4769 = vpack.c.bf16 %v4748, %v4744
    %v4770 = vpack.c.bf16 %v4749, %v4745
    %v4771 = vpack.c.bf16 %v4754, %v4750
    %v4772 = vpack.c.bf16 %v4755, %v4751
    %v4773 = vpack.c.bf16 %v4756, %v4752
    %v4774 = vpack.c.bf16 %v4757, %v4753
    %vm4775 = vcmask 523264
    %v4777 = vsel %vm4775, %v4758, 0
    %4779 = vmatprep.subr.bf16.mxu0 0
    %4780 = vmatpush1.bf16.msra.mxu0 0
    %4781 = vmatprep.subr.bf16.mxu0 0
    %4782 = vmatpush1.bf16.msra.mxu0 0
    %4783 = vmatprep.subr.bf16.mxu0 0
    %4784 = vmatpush1.bf16.msra.mxu0 0
    %4785 = vmatprep.subr.bf16.mxu0 0
    %4786 = vmatpush1.bf16.msra.mxu0 0
    %4787 = vmatprep.subr.bf16.mxu0 %v4772
    %4788 = vmatpush1.bf16.msra.mxu0 %v4771
    %4789 = vmatprep.subr.bf16.mxu0 %v4768
    %4790 = vmatpush1.bf16.msra.mxu0 %v4767
    %4791 = vmatprep.subr.bf16.mxu0 %v4764
    %4792 = vmatpush1.bf16.msra.mxu0 %v4763
    %4793 = vmatprep.subr.bf16.mxu0 %v4760
    %4794 = vmatpush1.bf16.msra.mxu0 %v4759
    %4795 = vmatprep.subr.bf16.mxu0 0
    %4796 = vmatpush2.bf16.msra.mxu0 0
    %4797 = vmatprep.subr.bf16.mxu0 0
    %4798 = vmatpush2.bf16.msra.mxu0 0
    %4799 = vmatprep.subr.bf16.mxu0 0
    %4800 = vmatpush2.bf16.msra.mxu0 0
    %4801 = vmatprep.subr.bf16.mxu0 0
    %4802 = vmatpush2.bf16.msra.mxu0 0
    %4803 = vmatprep.subr.bf16.mxu0 0
    %4804 = vmatpush2.bf16.msra.mxu0 0
    %4805 = vmatprep.subr.bf16.mxu0 0
    %4806 = vmatpush2.bf16.msra.mxu0 0
    %4807 = vmatprep.subr.bf16.mxu0 0
    %4808 = vmatpush2.bf16.msra.mxu0 0
    %4809 = vmatprep.subr.bf16.mxu0 0
    %4810 = vmatpush2.bf16.msra.mxu0 0
    %4811 = vmatprep.mubr.bf16.mxu0 0
    %4812 = vmatmul.mubr.bf16.gmra.mxu0 %v4777
    %v4813 = vpop.f32.mrf.mxu0
    %v4814 = vadd.f32 0.0, %v4813
    %v4815 = vpop.f32.mrf.mxu0
    %v4816 = vadd.f32 0.0, %v4815
    %v4817 = vpop.f32.mrf.mxu0
    %v4818 = vpop.f32.mrf.mxu0
    %4819 = vdwg.mxu0
    %4820 = vmatprep.subr.bf16.mxu0 0
    %4821 = vmatpush1.bf16.msra.mxu0 0
    %4822 = vmatprep.subr.bf16.mxu0 0
    %4823 = vmatpush1.bf16.msra.mxu0 0
    %4824 = vmatprep.subr.bf16.mxu0 0
    %4825 = vmatpush1.bf16.msra.mxu0 0
    %4826 = vmatprep.subr.bf16.mxu0 0
    %4827 = vmatpush1.bf16.msra.mxu0 0
    %4828 = vmatprep.subr.bf16.mxu0 %v4774
    %4829 = vmatpush1.bf16.msra.mxu0 %v4773
    %4830 = vmatprep.subr.bf16.mxu0 %v4770
    %4831 = vmatpush1.bf16.msra.mxu0 %v4769
    %4832 = vmatprep.subr.bf16.mxu0 %v4766
    %4833 = vmatpush1.bf16.msra.mxu0 %v4765
    %4834 = vmatprep.subr.bf16.mxu0 %v4762
    %4835 = vmatpush1.bf16.msra.mxu0 %v4761
    %4836 = vmatprep.subr.bf16.mxu0 0
    %4837 = vmatpush2.bf16.msra.mxu0 0
    %4838 = vmatprep.subr.bf16.mxu0 0
    %4839 = vmatpush2.bf16.msra.mxu0 0
    %4840 = vmatprep.subr.bf16.mxu0 0
    %4841 = vmatpush2.bf16.msra.mxu0 0
    %4842 = vmatprep.subr.bf16.mxu0 0
    %4843 = vmatpush2.bf16.msra.mxu0 0
    %4844 = vmatprep.subr.bf16.mxu0 0
    %4845 = vmatpush2.bf16.msra.mxu0 0
    %4846 = vmatprep.subr.bf16.mxu0 0
    %4847 = vmatpush2.bf16.msra.mxu0 0
    %4848 = vmatprep.subr.bf16.mxu0 0
    %4849 = vmatpush2.bf16.msra.mxu0 0
    %4850 = vmatprep.subr.bf16.mxu0 0
    %4851 = vmatpush2.bf16.msra.mxu0 0
    %4852 = vmatprep.mubr.bf16.mxu0 0
    %4853 = vmatmul.mubr.bf16.gmra.mxu0 %v4777
    %v4854 = vpop.f32.mrf.mxu0
    %v4855 = vadd.f32 0.0, %v4854
    %v4856 = vpop.f32.mrf.mxu0
    %v4857 = vadd.f32 0.0, %v4856
    %v4858 = vpop.f32.mrf.mxu0
    %v4859 = vpop.f32.mrf.mxu0
    %4860 = vdwg.mxu0
    %v4865 = vcombine.low %v4814, %v4816
    %v4866 = vcombine.low %v4855, %v4857
    %v4868 = vunpack.c.l.s4 1983009808
    %v4869 = vunpack.c.0.s8 %v4868
    %v4870 = vlaneseq
    %v4871 = vshrl.u32 %v4870, 7
    %v4872 = vsub.s32 %v4869, %v4871
    %v4873 = vrot.slane %v4865, %v4872
    %v4875 = vunpack.c.l.s4 1983009808
    %v4876 = vunpack.c.0.s8 %v4875
    %v4877 = vlaneseq
    %v4878 = vshrl.u32 %v4877, 7
    %v4879 = vsub.s32 %v4876, %v4878
    %v4880 = vrot.slane %v4866, %v4879
    %v4881 = vcombine.low %v4873, %v4880
    %4883 = vst [vmem:[#allocation16] sm:$0xff] %v4881
    // Predicated region
    $region58: #{tpu_custom_call.1} parent=1 // pred_check
      _
    $region59: #{tpu_custom_call.1} parent=1 // pred_check_branch
      %4885 = sbr.rel (0) target = $region61
    $region60: #{tpu_custom_call.1} parent=1 // pred_region
      %s4887 = ssub.s32 128, 128
      %4888 = vsyncadd [#allocation7], %s4887
      %s4890 = sshll.u32 [#allocation16], 4
      %s4891 = int_to_ptr.vmem [resolvable:$true] %s4890
      %4893 = dma.vmem_to_hbm [thread:$0]  %s4891, 128, %s8, [#allocation7]
    $region61: #{tpu_custom_call.1} parent=1 // pred_fallthru
      _
    // Predicated region
    $region62: #{tpu_custom_call.1} parent=1 // pred_check
      _
    $region63: #{tpu_custom_call.1} parent=1 // pred_check_branch
      %4895 = sbr.rel (0) target = $region65
    $region64: #{tpu_custom_call.1} parent=1 // pred_region
      %4896 = dma.done [#allocation7], 128
    $region65: #{tpu_custom_call.1} parent=1 // pred_fallthru
      _
    %4897 = vsyncpa [#allocation6], 1
    %4898 = vsyncpa [#allocation9], 1
    %4899 = vsyncpa [#allocation12], 1
    %4900 = vsyncpa [#allocation15], 1
    %4901 = vsyncpa [#allocation7], 1
  %4902 = vsyncmov [#allocation4]
  %s4903 = vpop.sfrf %4902
  %p4904 = scmp.eq.s32.totalorder %s4903, 0
  %p4905 = pneg %p4904
  %4907 = shalt.err (%p4905)

</llo_original>
